<compile_context>
chip_gen: v6e
topology: v6e:2x2x1
jax: 0.10.0
libtpu: 0.0.40
codegen_flags: <defaults>
</compile_context>

<pallas_src>
import jax
import jax.numpy as jnp
from jax.experimental import pallas as pl
from jax.experimental.pallas import tpu as pltpu


def _make_resblock_kernel(H, W, Cin, Cout):
    """Fused ResBlock body for one image, flattened to (H*W, C) 2-D tiles."""
    HW = H * W
    bf16 = jnp.bfloat16

    def cols3(a32):
        # a32: (HW, C) f32 -> (HW, 3C) bf16 where each row m = i*W + j holds
        # [a[i, j-1], a[i, j], a[i, j+1]] (zeros at the W boundaries).
        # The +-1 pixel shift in flattened form is a +-1 row roll along the sublane
        # axis (XLU, essentially free); wrap-around rows are masked to zero.
        C = a32.shape[-1]
        col = jax.lax.broadcasted_iota(jnp.int32, (HW, C), 0) % W
        left = jnp.where(col == 0, 0.0, pltpu.roll(a32, shift=1, axis=0))
        right = jnp.where(col == W - 1, 0.0, pltpu.roll(a32, shift=HW - 1, axis=0))
        # bf16 cast only at the MXU boundary; lane-dim concat of three C-wide pieces.
        return jnp.concatenate(
            [left.astype(bf16), a32.astype(bf16), right.astype(bf16)], axis=-1)

    def conv3x3(a32, w_ref, b_ref):
        # a32: (HW, Cin') f32 pre-activated input; w_ref: (3, 3*Cin', Cout) bf16.
        cols = cols3(a32)                                    # (HW, 3C) bf16
        c3 = cols.shape[-1]
        zrow = jnp.zeros((W, c3), bf16)                      # one zero image-row halo
        padded = jnp.concatenate([zrow, cols, zrow], axis=0)  # (HW + 2W, 3C)
        acc = jnp.zeros((HW, Cout), jnp.float32)
        for dy in range(3):                                  # 3 row-shifted MXU matmuls
            win = padded[dy * W: dy * W + HW]                # static, tile-aligned slice
            acc = acc + jnp.dot(win, w_ref[dy], preferred_element_type=jnp.float32)
        return acc + b_ref[...]                              # f32 bias add (lane-dense)

    def kernel(x_ref, w1_ref, b1_ref, w2_ref, b2_ref, o_ref):
        x = x_ref[0]                                         # (HW, Cin) f32
        # r = conv1(relu(x)) + b1
        r = conv3x3(jnp.maximum(x, 0.0), w1_ref, b1_ref)     # (HW, Cout) f32, stays in VMEM
        # y = conv2(relu(r)) + b2
        y = conv3x3(jnp.maximum(r, 0.0), w2_ref, b2_ref)
        # identity residual (downsample is None for this config), f32 add.
        o_ref[0] = (y + x).astype(o_ref.dtype)

    return kernel


def resblock_forward(x, params):
    """ResBlock forward (indim == outdim, stride == 1, downsample is None).

    x: (N, H, W, C) channels-last; params: HWIO weights (3, 3, Cin, Cout) + biases.
    Assumes W % 8 == 0 and C % 128 == 0 for lane-/sublane-dense blocks (true for real
    ResBlock channel counts).
    """
    N, H, W, Cin = x.shape
    w1, b1, w2, b2 = params["w1"], params["b1"], params["w2"], params["b2"]
    Cout = w1.shape[-1]
    if Cin != Cout:
        # TODO(synk): downsample branch not implemented (None for the exercised config).
        raise NotImplementedError("downsample (indim != outdim / stride != 1) not implemented")

    HW = H * W
    # Trace-time reshapes/casts: per-kernel-row (dy) weight slices, (dx, cin) flattened,
    # stored/DMA'd in bf16 so the MXU runs native bf16 (f32 accumulate in-kernel).
    w1f = w1.reshape(3, 3 * Cin, Cout).astype(jnp.bfloat16)
    w2f = w2.reshape(3, 3 * Cout, Cout).astype(jnp.bfloat16)
    b1r = b1.reshape(1, Cout).astype(jnp.float32)
    b2r = b2.reshape(1, Cout).astype(jnp.float32)

    # Free row-major view: (N, H, W, C) -> (N, H*W, C) so in-kernel tiles are plain 2-D.
    xf = x.reshape(N, HW, Cin)

    kernel = _make_resblock_kernel(H, W, Cin, Cout)

    out = pl.pallas_call(
        kernel,
        out_shape=jax.ShapeDtypeStruct((N, HW, Cout), x.dtype),
        grid=(N,),
        in_specs=[
            pl.BlockSpec((1, HW, Cin), lambda n: (n, 0, 0)),
            pl.BlockSpec((3, 3 * Cin, Cout), lambda n: (0, 0, 0)),
            pl.BlockSpec((1, Cout), lambda n: (0, 0)),
            pl.BlockSpec((3, 3 * Cout, Cout), lambda n: (0, 0, 0)),
            pl.BlockSpec((1, Cout), lambda n: (0, 0)),
        ],
        out_specs=pl.BlockSpec((1, HW, Cout), lambda n: (n, 0, 0)),
        compiler_params=pltpu.CompilerParams(
            dimension_semantics=("parallel",),
            vmem_limit_bytes=48 * 1024 * 1024,
        ),
    )(xf, w1f, b1r, w2f, b2r)
    return out.reshape(N, H, W, Cout)


def init_resblock_params(key, indim, outdim=None):
    if outdim is None:
        outdim = indim
    k1, k2, k3, k4 = jax.random.split(key, 4)
    fan_in = indim * 9
    scale = 1.0 / jnp.sqrt(fan_in)
    return {
        "w1": jax.random.uniform(k1, (3, 3, indim, outdim), jnp.float32, -scale, scale),
        "b1": jax.random.uniform(k2, (outdim,), jnp.float32, -scale, scale),
        "w2": jax.random.uniform(k3, (3, 3, outdim, outdim), jnp.float32, -scale, scale),
        "b2": jax.random.uniform(k4, (outdim,), jnp.float32, -scale, scale),
    }


def _reference_resblock(x, params):
    """Pure-JAX reference (XLA conv, HIGHEST f32 precision) for correctness check."""
    dn = ("NHWC", "HWIO", "NHWC")

    def conv(v, w, b):
        y = jax.lax.conv_general_dilated(
            v, w, window_strides=(1, 1), padding="SAME", dimension_numbers=dn,
            precision=jax.lax.Precision.HIGHEST,
        )
        return y + b[None, None, None, :]

    r = conv(jax.nn.relu(x), params["w1"], params["b1"])
    r = conv(jax.nn.relu(r), params["w2"], params["b2"])
    return x + r


if __name__ == "__main__":
    # Small but lane-dense shapes (PyTorch NCHW equivalent: (4, 128, 16, 16)).
    # N=4 gives 4 pipelined grid steps (2 per TensorCore on v7x).
    N, H, W, C = 4, 16, 16, 128
    key = jax.random.PRNGKey(0)
    kx, kp = jax.random.split(key)

    x = jax.random.normal(kx, (N, H, W, C), jnp.float32)
    params = init_resblock_params(kp, C)

    out = jax.block_until_ready(jax.jit(resblock_forward)(x, params))
    ref = jax.block_until_ready(_reference_resblock(x, params))

    assert out.shape == (N, H, W, C)
    max_err = jnp.max(jnp.abs(out - ref))
    # bf16 MXU inputs (f32 accumulation) vs the f32-HIGHEST reference: tolerance is
    # loosened accordingly per review (observed error is ~1e-3..1e-2 at these scales).
    assert jnp.allclose(out, ref, atol=2e-2, rtol=2e-2), f"max abs err {max_err}"
    print("KERNEL_OK")
</pallas_src>

<mosaic_0001>
module attributes {stable_mosaic.version = 11 : i64} {
  func.func @kernel(%arg0: i32, %arg1: memref<1x256x128xf32, #tpu.memory_space<vmem>>, %arg2: memref<3x384x128xbf16, #tpu.memory_space<vmem>>, %arg3: memref<1x128xf32, #tpu.memory_space<vmem>>, %arg4: memref<3x384x128xbf16, #tpu.memory_space<vmem>>, %arg5: memref<1x128xf32, #tpu.memory_space<vmem>>, %arg6: memref<1x256x128xf32, #tpu.memory_space<vmem>>) attributes {dimension_semantics = [#tpu.dimension_semantics<parallel>], iteration_bounds = array<i64: 4>, scalar_prefetch = 0 : i64, scratch_operands = 0 : i64, tpu.core_type = #tpu.core_type<tc>, window_params = [{transform_indices = @transform_0, window_bounds = array<i64: 1, 256, 128>}, {pipeline_mode = #tpu.pipeline_mode<synchronous>, transform_indices = @transform_1, window_bounds = array<i64: 3, 384, 128>}, {pipeline_mode = #tpu.pipeline_mode<synchronous>, transform_indices = @transform_2, window_bounds = array<i64: 1, 128>}, {pipeline_mode = #tpu.pipeline_mode<synchronous>, transform_indices = @transform_3, window_bounds = array<i64: 3, 384, 128>}, {pipeline_mode = #tpu.pipeline_mode<synchronous>, transform_indices = @transform_4, window_bounds = array<i64: 1, 128>}, {transform_indices = @transform_5, window_bounds = array<i64: 1, 256, 128>}]} {
    %c0 = arith.constant 0 : index
    %c0_0 = arith.constant 0 : index
    %c0_1 = arith.constant 0 : index
    %0 = vector.load %arg1[%c0, %c0_0, %c0_1] : memref<1x256x128xf32, #tpu.memory_space<vmem>>, vector<1x256x128xf32>
    %1 = vector.shape_cast %0 : vector<1x256x128xf32> to vector<256x128xf32>
    %cst = arith.constant 0.000000e+00 : f32
    %2 = vector.broadcast %cst : f32 to vector<256x128xf32>
    %3 = arith.maximumf %1, %2 : vector<256x128xf32>
    %4 = tpu.iota {dimensions = array<i32: 0>} : vector<256x128xi32>
    %c16_i32 = arith.constant 16 : i32
    %c0_i32 = arith.constant 0 : i32
    %5 = arith.cmpi eq, %c16_i32, %c0_i32 : i32
    %c1_i32 = arith.constant 1 : i32
    %6 = arith.select %5, %c1_i32, %c16_i32 : i32
    %7 = vector.broadcast %6 : i32 to vector<256x128xi32>
    %8 = arith.remsi %4, %7 : vector<256x128xi32>
    %c0_i32_2 = arith.constant 0 : i32
    %9 = vector.broadcast %c0_i32_2 : i32 to vector<256x128xi32>
    %10 = arith.cmpi ne, %8, %9 : vector<256x128xi32>
    %c0_i32_3 = arith.constant 0 : i32
    %11 = vector.broadcast %c0_i32_3 : i32 to vector<256x128xi32>
    %12 = arith.cmpi slt, %8, %11 : vector<256x128xi32>
    %c0_i32_4 = arith.constant 0 : i32
    %13 = arith.cmpi slt, %6, %c0_i32_4 : i32
    %14 = vector.broadcast %13 : i1 to vector<256x128xi1>
    %15 = vector.broadcast %14 : vector<256x128xi1> to vector<256x128xi1>
    %16 = arith.xori %12, %15 : vector<256x128xi1>
    %17 = arith.andi %16, %10 : vector<256x128xi1>
    %18 = vector.broadcast %6 : i32 to vector<256x128xi32>
    %19 = arith.addi %8, %18 : vector<256x128xi32>
    %20 = arith.select %17, %19, %8 : vector<256x128xi1>, vector<256x128xi32>
    %c0_i32_5 = arith.constant 0 : i32
    %21 = vector.broadcast %c0_i32_5 : i32 to vector<256x128xi32>
    %22 = arith.cmpi eq, %20, %21 : vector<256x128xi32>
    %c1_i32_6 = arith.constant 1 : i32
    %23 = tpu.dynamic_rotate %3 by %c1_i32_6 dim 0 : vector<256x128xf32>, i32 -> vector<256x128xf32>
    %cst_7 = arith.constant 0.000000e+00 : f32
    %24 = vector.broadcast %cst_7 : f32 to vector<256x128xf32>
    %25 = arith.select %22, %24, %23 : vector<256x128xi1>, vector<256x128xf32>
    %c15_i32 = arith.constant 15 : i32
    %26 = vector.broadcast %c15_i32 : i32 to vector<256x128xi32>
    %27 = arith.cmpi eq, %20, %26 : vector<256x128xi32>
    %c255_i32 = arith.constant 255 : i32
    %28 = tpu.dynamic_rotate %3 by %c255_i32 dim 0 : vector<256x128xf32>, i32 -> vector<256x128xf32>
    %cst_8 = arith.constant 0.000000e+00 : f32
    %29 = vector.broadcast %cst_8 : f32 to vector<256x128xf32>
    %30 = arith.select %27, %29, %28 : vector<256x128xi1>, vector<256x128xf32>
    %31 = arith.truncf %25 : vector<256x128xf32> to vector<256x128xbf16>
    %32 = arith.truncf %3 : vector<256x128xf32> to vector<256x128xbf16>
    %33 = arith.truncf %30 : vector<256x128xf32> to vector<256x128xbf16>
    %34 = tpu.concatenate %31, %32, %33 in 1 : vector<256x128xbf16>, vector<256x128xbf16>, vector<256x128xbf16> -> vector<256x384xbf16>
    %cst_9 = arith.constant 0.000000e+00 : bf16
    %35 = vector.broadcast %cst_9 : bf16 to vector<16x384xbf16>
    %36 = tpu.concatenate %35, %34, %35 in 0 : vector<16x384xbf16>, vector<256x384xbf16>, vector<16x384xbf16> -> vector<288x384xbf16>
    %cst_10 = arith.constant 0.000000e+00 : f32
    %37 = vector.broadcast %cst_10 : f32 to vector<256x128xf32>
    %38 = vector.extract_strided_slice %36 {offsets = [0, 0], sizes = [256, 384], strides = [1, 1]} : vector<288x384xbf16> to vector<256x384xbf16>
    %c0_11 = arith.constant 0 : index
    %c0_12 = arith.constant 0 : index
    %c0_13 = arith.constant 0 : index
    %39 = vector.load %arg2[%c0_11, %c0_12, %c0_13] : memref<3x384x128xbf16, #tpu.memory_space<vmem>>, vector<1x384x128xbf16>
    %40 = vector.shape_cast %39 : vector<1x384x128xbf16> to vector<384x128xbf16>
    %cst_14 = arith.constant dense<0.000000e+00> : vector<256x128xf32>
    %41 = tpu.matmul %38, %40, %cst_14 {dimension_numbers = #tpu.dot_dimension_numbers<[1], [0], [0], [1], [0, 0, 1, 1], [], []>} : vector<256x384xbf16>, vector<384x128xbf16>, vector<256x128xf32> -> vector<256x128xf32>
    %42 = arith.addf %37, %41 : vector<256x128xf32>
    %43 = vector.extract_strided_slice %36 {offsets = [16, 0], sizes = [256, 384], strides = [1, 1]} : vector<288x384xbf16> to vector<256x384xbf16>
    %c1 = arith.constant 1 : index
    %c0_15 = arith.constant 0 : index
    %c0_16 = arith.constant 0 : index
    %44 = vector.load %arg2[%c1, %c0_15, %c0_16] : memref<3x384x128xbf16, #tpu.memory_space<vmem>>, vector<1x384x128xbf16>
    %45 = vector.shape_cast %44 : vector<1x384x128xbf16> to vector<384x128xbf16>
    %cst_17 = arith.constant dense<0.000000e+00> : vector<256x128xf32>
    %46 = tpu.matmul %43, %45, %cst_17 {dimension_numbers = #tpu.dot_dimension_numbers<[1], [0], [0], [1], [0, 0, 1, 1], [], []>} : vector<256x384xbf16>, vector<384x128xbf16>, vector<256x128xf32> -> vector<256x128xf32>
    %47 = arith.addf %42, %46 : vector<256x128xf32>
    %48 = vector.extract_strided_slice %36 {offsets = [32, 0], sizes = [256, 384], strides = [1, 1]} : vector<288x384xbf16> to vector<256x384xbf16>
    %c2 = arith.constant 2 : index
    %c0_18 = arith.constant 0 : index
    %c0_19 = arith.constant 0 : index
    %49 = vector.load %arg2[%c2, %c0_18, %c0_19] : memref<3x384x128xbf16, #tpu.memory_space<vmem>>, vector<1x384x128xbf16>
    %50 = vector.shape_cast %49 : vector<1x384x128xbf16> to vector<384x128xbf16>
    %cst_20 = arith.constant dense<0.000000e+00> : vector<256x128xf32>
    %51 = tpu.matmul %48, %50, %cst_20 {dimension_numbers = #tpu.dot_dimension_numbers<[1], [0], [0], [1], [0, 0, 1, 1], [], []>} : vector<256x384xbf16>, vector<384x128xbf16>, vector<256x128xf32> -> vector<256x128xf32>
    %52 = arith.addf %47, %51 : vector<256x128xf32>
    %c0_21 = arith.constant 0 : index
    %c0_22 = arith.constant 0 : index
    %53 = vector.load %arg3[%c0_21, %c0_22] : memref<1x128xf32, #tpu.memory_space<vmem>>, vector<1x128xf32>
    %54 = vector.broadcast %53 : vector<1x128xf32> to vector<256x128xf32>
    %55 = arith.addf %52, %54 : vector<256x128xf32>
    %cst_23 = arith.constant 0.000000e+00 : f32
    %56 = vector.broadcast %cst_23 : f32 to vector<256x128xf32>
    %57 = arith.maximumf %55, %56 : vector<256x128xf32>
    %58 = tpu.iota {dimensions = array<i32: 0>} : vector<256x128xi32>
    %c16_i32_24 = arith.constant 16 : i32
    %c0_i32_25 = arith.constant 0 : i32
    %59 = arith.cmpi eq, %c16_i32_24, %c0_i32_25 : i32
    %c1_i32_26 = arith.constant 1 : i32
    %60 = arith.select %59, %c1_i32_26, %c16_i32_24 : i32
    %61 = vector.broadcast %60 : i32 to vector<256x128xi32>
    %62 = arith.remsi %58, %61 : vector<256x128xi32>
    %c0_i32_27 = arith.constant 0 : i32
    %63 = vector.broadcast %c0_i32_27 : i32 to vector<256x128xi32>
    %64 = arith.cmpi ne, %62, %63 : vector<256x128xi32>
    %c0_i32_28 = arith.constant 0 : i32
    %65 = vector.broadcast %c0_i32_28 : i32 to vector<256x128xi32>
    %66 = arith.cmpi slt, %62, %65 : vector<256x128xi32>
    %c0_i32_29 = arith.constant 0 : i32
    %67 = arith.cmpi slt, %60, %c0_i32_29 : i32
    %68 = vector.broadcast %67 : i1 to vector<256x128xi1>
    %69 = vector.broadcast %68 : vector<256x128xi1> to vector<256x128xi1>
    %70 = arith.xori %66, %69 : vector<256x128xi1>
    %71 = arith.andi %70, %64 : vector<256x128xi1>
    %72 = vector.broadcast %60 : i32 to vector<256x128xi32>
    %73 = arith.addi %62, %72 : vector<256x128xi32>
    %74 = arith.select %71, %73, %62 : vector<256x128xi1>, vector<256x128xi32>
    %c0_i32_30 = arith.constant 0 : i32
    %75 = vector.broadcast %c0_i32_30 : i32 to vector<256x128xi32>
    %76 = arith.cmpi eq, %74, %75 : vector<256x128xi32>
    %c1_i32_31 = arith.constant 1 : i32
    %77 = tpu.dynamic_rotate %57 by %c1_i32_31 dim 0 : vector<256x128xf32>, i32 -> vector<256x128xf32>
    %cst_32 = arith.constant 0.000000e+00 : f32
    %78 = vector.broadcast %cst_32 : f32 to vector<256x128xf32>
    %79 = arith.select %76, %78, %77 : vector<256x128xi1>, vector<256x128xf32>
    %c15_i32_33 = arith.constant 15 : i32
    %80 = vector.broadcast %c15_i32_33 : i32 to vector<256x128xi32>
    %81 = arith.cmpi eq, %74, %80 : vector<256x128xi32>
    %c255_i32_34 = arith.constant 255 : i32
    %82 = tpu.dynamic_rotate %57 by %c255_i32_34 dim 0 : vector<256x128xf32>, i32 -> vector<256x128xf32>
    %cst_35 = arith.constant 0.000000e+00 : f32
    %83 = vector.broadcast %cst_35 : f32 to vector<256x128xf32>
    %84 = arith.select %81, %83, %82 : vector<256x128xi1>, vector<256x128xf32>
    %85 = arith.truncf %79 : vector<256x128xf32> to vector<256x128xbf16>
    %86 = arith.truncf %57 : vector<256x128xf32> to vector<256x128xbf16>
    %87 = arith.truncf %84 : vector<256x128xf32> to vector<256x128xbf16>
    %88 = tpu.concatenate %85, %86, %87 in 1 : vector<256x128xbf16>, vector<256x128xbf16>, vector<256x128xbf16> -> vector<256x384xbf16>
    %cst_36 = arith.constant 0.000000e+00 : bf16
    %89 = vector.broadcast %cst_36 : bf16 to vector<16x384xbf16>
    %90 = tpu.concatenate %89, %88, %89 in 0 : vector<16x384xbf16>, vector<256x384xbf16>, vector<16x384xbf16> -> vector<288x384xbf16>
    %cst_37 = arith.constant 0.000000e+00 : f32
    %91 = vector.broadcast %cst_37 : f32 to vector<256x128xf32>
    %92 = vector.extract_strided_slice %90 {offsets = [0, 0], sizes = [256, 384], strides = [1, 1]} : vector<288x384xbf16> to vector<256x384xbf16>
    %c0_38 = arith.constant 0 : index
    %c0_39 = arith.constant 0 : index
    %c0_40 = arith.constant 0 : index
    %93 = vector.load %arg4[%c0_38, %c0_39, %c0_40] : memref<3x384x128xbf16, #tpu.memory_space<vmem>>, vector<1x384x128xbf16>
    %94 = vector.shape_cast %93 : vector<1x384x128xbf16> to vector<384x128xbf16>
    %cst_41 = arith.constant dense<0.000000e+00> : vector<256x128xf32>
    %95 = tpu.matmul %92, %94, %cst_41 {dimension_numbers = #tpu.dot_dimension_numbers<[1], [0], [0], [1], [0, 0, 1, 1], [], []>} : vector<256x384xbf16>, vector<384x128xbf16>, vector<256x128xf32> -> vector<256x128xf32>
    %96 = arith.addf %91, %95 : vector<256x128xf32>
    %97 = vector.extract_strided_slice %90 {offsets = [16, 0], sizes = [256, 384], strides = [1, 1]} : vector<288x384xbf16> to vector<256x384xbf16>
    %c1_42 = arith.constant 1 : index
    %c0_43 = arith.constant 0 : index
    %c0_44 = arith.constant 0 : index
    %98 = vector.load %arg4[%c1_42, %c0_43, %c0_44] : memref<3x384x128xbf16, #tpu.memory_space<vmem>>, vector<1x384x128xbf16>
    %99 = vector.shape_cast %98 : vector<1x384x128xbf16> to vector<384x128xbf16>
    %cst_45 = arith.constant dense<0.000000e+00> : vector<256x128xf32>
    %100 = tpu.matmul %97, %99, %cst_45 {dimension_numbers = #tpu.dot_dimension_numbers<[1], [0], [0], [1], [0, 0, 1, 1], [], []>} : vector<256x384xbf16>, vector<384x128xbf16>, vector<256x128xf32> -> vector<256x128xf32>
    %101 = arith.addf %96, %100 : vector<256x128xf32>
    %102 = vector.extract_strided_slice %90 {offsets = [32, 0], sizes = [256, 384], strides = [1, 1]} : vector<288x384xbf16> to vector<256x384xbf16>
    %c2_46 = arith.constant 2 : index
    %c0_47 = arith.constant 0 : index
    %c0_48 = arith.constant 0 : index
    %103 = vector.load %arg4[%c2_46, %c0_47, %c0_48] : memref<3x384x128xbf16, #tpu.memory_space<vmem>>, vector<1x384x128xbf16>
    %104 = vector.shape_cast %103 : vector<1x384x128xbf16> to vector<384x128xbf16>
    %cst_49 = arith.constant dense<0.000000e+00> : vector<256x128xf32>
    %105 = tpu.matmul %102, %104, %cst_49 {dimension_numbers = #tpu.dot_dimension_numbers<[1], [0], [0], [1], [0, 0, 1, 1], [], []>} : vector<256x384xbf16>, vector<384x128xbf16>, vector<256x128xf32> -> vector<256x128xf32>
    %106 = arith.addf %101, %105 : vector<256x128xf32>
    %c0_50 = arith.constant 0 : index
    %c0_51 = arith.constant 0 : index
    %107 = vector.load %arg5[%c0_50, %c0_51] : memref<1x128xf32, #tpu.memory_space<vmem>>, vector<1x128xf32>
    %108 = vector.broadcast %107 : vector<1x128xf32> to vector<256x128xf32>
    %109 = arith.addf %106, %108 : vector<256x128xf32>
    %110 = arith.addf %109, %1 : vector<256x128xf32>
    %c0_52 = arith.constant 0 : index
    %c0_53 = arith.constant 0 : index
    %c0_54 = arith.constant 0 : index
    %111 = vector.load %arg6[%c0_52, %c0_53, %c0_54] : memref<1x256x128xf32, #tpu.memory_space<vmem>>, vector<1x256x128xf32>
    %112 = vector.shape_cast %111 : vector<1x256x128xf32> to vector<256x128xf32>
    %113 = vector.shape_cast %110 : vector<256x128xf32> to vector<1x256x128xf32>
    tpu.vector_store %arg6[%c0_52, %c0_53, %c0_54], %113 {strides = array<i32>} : memref<1x256x128xf32, #tpu.memory_space<vmem>>, vector<1x256x128xf32>,
    return
  }
  func.func @transform_0(%arg0: i32) -> (i32, i32, i32) {
    %c0_i32 = arith.constant 0 : i32
    %c0_i32_0 = arith.constant 0 : i32
    %c0_i32_1 = arith.constant 0 : i32
    return %arg0, %c0_i32, %c0_i32_0 : i32, i32, i32
  }
  func.func @transform_1(%arg0: i32) -> (i32, i32, i32) {
    %c0_i32 = arith.constant 0 : i32
    %c0_i32_0 = arith.constant 0 : i32
    %c0_i32_1 = arith.constant 0 : i32
    %c0_i32_2 = arith.constant 0 : i32
    return %c0_i32, %c0_i32_0, %c0_i32_1 : i32, i32, i32
  }
  func.func @transform_2(%arg0: i32) -> (i32, i32) {
    %c0_i32 = arith.constant 0 : i32
    %c0_i32_0 = arith.constant 0 : i32
    %c0_i32_1 = arith.constant 0 : i32
    return %c0_i32, %c0_i32_0 : i32, i32
  }
  func.func @transform_3(%arg0: i32) -> (i32, i32, i32) {
    %c0_i32 = arith.constant 0 : i32
    %c0_i32_0 = arith.constant 0 : i32
    %c0_i32_1 = arith.constant 0 : i32
    %c0_i32_2 = arith.constant 0 : i32
    return %c0_i32, %c0_i32_0, %c0_i32_1 : i32, i32, i32
  }
  func.func @transform_4(%arg0: i32) -> (i32, i32) {
    %c0_i32 = arith.constant 0 : i32
    %c0_i32_0 = arith.constant 0 : i32
    %c0_i32_1 = arith.constant 0 : i32
    return %c0_i32, %c0_i32_0 : i32, i32
  }
  func.func @transform_5(%arg0: i32) -> (i32, i32, i32) {
    %c0_i32 = arith.constant 0 : i32
    %c0_i32_0 = arith.constant 0 : i32
    %c0_i32_1 = arith.constant 0 : i32
    return %arg0, %c0_i32, %c0_i32_0 : i32, i32, i32
  }
}

</mosaic_0001>

<llo_original>
// kernel: resblock_forward.1
$region0: #{resblock_forward.1}
  #allocation0 [shape = 'u32[]', space=smem, size = 0x4, offset = 0x4, fixed_abs, tag = 'smem constant byte address 0x4 - core index']
  #allocation1 [shape = 'u32[144,128]{1,0:T(1,128)}', space=vmem, size = 0x12000, scoped, tag = 'internal scratch']
  %s0 = inlined_call_operand.vmem [shape: f32[4,256,128], index: 0, kind: input, shape index: {}]
  %s1 = inlined_call_operand.vmem [shape: bf16[3,384,128], index: 1, kind: input, shape index: {}]
  %s2 = inlined_call_operand.vmem [shape: f32[1,128], index: 2, kind: input, shape index: {}]
  %s3 = inlined_call_operand.vmem [shape: bf16[3,384,128], index: 3, kind: input, shape index: {}]
  %s4 = inlined_call_operand.vmem [shape: f32[1,128], index: 4, kind: input, shape index: {}]
  %s5 = inlined_call_operand.hbm [shape: f32[4,256,128], index: 5, kind: output, shape index: {}]
  %s6 = sld [smem:[#allocation0]]
  $region53: #{resblock_forward.1} parent=0
    _
  %s8 = ssub.s32 1, %s6
  %s9 = scalar_select 0, %s8, %s6
  $region1: #{resblock_forward.1} parent=0
    #allocation2 [shape = 'u8[262144]{0}', space=vmem, size = 0x40000, scoped, tag = 'output window, operand 0']
    #allocation3 [shape = 's32[2]{0}', space=sflag, size = 0x8, scoped, tag = 'scoped memory for resblock_forward.1']
    %10 = vsyncpa [#allocation3], 0
    %s11 = scalar_lea.sflag [#allocation3], 1
    %12 = vsyncpa %s11, 0
    loop: start=0, step=1, limit=6
    $region2: #{resblock_forward.1} parent=1 // loop_pre_header
      _
    $region3: #{resblock_forward.1} parent=1 // loop_header
      %s14 = sphi 0, %s18
      %p15 = scmp.ge.s32.totalorder %s14, 6
      %s24 = sphi 0, %s26
      %s27 = sphi 0, %s24
      %s28 = sphi 0, %s27
      %s44 = sphi 0, %s28
      %s48 = sphi 0, %s48
      %s50 = sphi 0, %s48
      %s51 = sphi 0, %s50
      %s65 = sphi 0, %s51
      %s69 = sphi 0, %s69
      %s71 = sphi 0, %s69
      %s72 = sphi 0, %s71
      %s86 = sphi 0, %s72
      %s90 = sphi 0, %s90
      %s92 = sphi 0, %s90
      %s93 = sphi 0, %s92
      %s107 = sphi 0, %s93
      %s111 = sphi 0, %s111
      %s113 = sphi 0, %s111
      %s114 = sphi 0, %s113
      %s128 = sphi 0, %s114
      %s134 = sphi 0, %s136
      %s137 = sphi 0, %s134
      %s138 = sphi 0, %s137
      %s154 = sphi 0, %s138
    $region4: #{resblock_forward.1} parent=1 // loop_header_branch
      %17 = sbr.rel (%p15) target = $region8
    $region5: #{resblock_forward.1} parent=1 // loop_body
      %s19 = ssub.s32 %s14, 1
      %s20 = ssub.s32 %s14, 2
      %s21 = sadd.s32 %s14, 1
      %s22 = ssub.s32 %s14, %s21
      %p23 = scmp.eq.s32.totalorder %s22, 0
      %s25 = sadd.s32 %s24, 1
      %s26 = scalar_select %p23, %s24, %s25
      %p29 = pneg %p23
      %p30 = scmp.eq.s32.totalorder %s14, 3
      %p31 = por %p29, %p30
      %p32 = scmp.ne.s32.totalorder %s24, %s27
      %p33 = scmp.eq.s32.totalorder %s14, 0
      %p34 = por %p32, %p33
      %p35 = scmp.ne.s32.totalorder %s24, %s27
      %p36 = scmp.eq.s32.totalorder %s19, 3
      %p37 = por %p35, %p36
      %p38 = scmp.ne.s32.totalorder %s27, %s28
      %p39 = scmp.eq.s32.totalorder %s19, 0
      %p40 = por %p38, %p39
      %p41 = scmp.ne.s32.totalorder %s27, %s28
      %p42 = scmp.eq.s32.totalorder %s20, 3
      %p43 = por %p41, %p42
      %p45 = scmp.ne.s32.totalorder %s28, %s44
      %p46 = scmp.eq.s32.totalorder %s20, 0
      %p47 = por %p45, %p46
      %s49 = sadd.s32 %s48, 1
      %p52 = scmp.eq.s32.totalorder %s14, 3
      %p53 = scmp.ne.s32.totalorder %s48, %s50
      %p54 = scmp.eq.s32.totalorder %s14, 0
      %p55 = por %p53, %p54
      %p56 = scmp.ne.s32.totalorder %s48, %s50
      %p57 = scmp.eq.s32.totalorder %s19, 3
      %p58 = por %p56, %p57
      %p59 = scmp.ne.s32.totalorder %s50, %s51
      %p60 = scmp.eq.s32.totalorder %s19, 0
      %p61 = por %p59, %p60
      %p62 = scmp.ne.s32.totalorder %s50, %s51
      %p63 = scmp.eq.s32.totalorder %s20, 3
      %p64 = por %p62, %p63
      %p66 = scmp.ne.s32.totalorder %s51, %s65
      %p67 = scmp.eq.s32.totalorder %s20, 0
      %p68 = por %p66, %p67
      %s70 = sadd.s32 %s69, 1
      %p73 = scmp.eq.s32.totalorder %s14, 3
      %p74 = scmp.ne.s32.totalorder %s69, %s71
      %p75 = scmp.eq.s32.totalorder %s14, 0
      %p76 = por %p74, %p75
      %p77 = scmp.ne.s32.totalorder %s69, %s71
      %p78 = scmp.eq.s32.totalorder %s19, 3
      %p79 = por %p77, %p78
      %p80 = scmp.ne.s32.totalorder %s71, %s72
      %p81 = scmp.eq.s32.totalorder %s19, 0
      %p82 = por %p80, %p81
      %p83 = scmp.ne.s32.totalorder %s71, %s72
      %p84 = scmp.eq.s32.totalorder %s20, 3
      %p85 = por %p83, %p84
      %p87 = scmp.ne.s32.totalorder %s72, %s86
      %p88 = scmp.eq.s32.totalorder %s20, 0
      %p89 = por %p87, %p88
      %s91 = sadd.s32 %s90, 1
      %p94 = scmp.eq.s32.totalorder %s14, 3
      %p95 = scmp.ne.s32.totalorder %s90, %s92
      %p96 = scmp.eq.s32.totalorder %s14, 0
      %p97 = por %p95, %p96
      %p98 = scmp.ne.s32.totalorder %s90, %s92
      %p99 = scmp.eq.s32.totalorder %s19, 3
      %p100 = por %p98, %p99
      %p101 = scmp.ne.s32.totalorder %s92, %s93
      %p102 = scmp.eq.s32.totalorder %s19, 0
      %p103 = por %p101, %p102
      %p104 = scmp.ne.s32.totalorder %s92, %s93
      %p105 = scmp.eq.s32.totalorder %s20, 3
      %p106 = por %p104, %p105
      %p108 = scmp.ne.s32.totalorder %s93, %s107
      %p109 = scmp.eq.s32.totalorder %s20, 0
      %p110 = por %p108, %p109
      %s112 = sadd.s32 %s111, 1
      %p115 = scmp.eq.s32.totalorder %s14, 3
      %p116 = scmp.ne.s32.totalorder %s111, %s113
      %p117 = scmp.eq.s32.totalorder %s14, 0
      %p118 = por %p116, %p117
      %p119 = scmp.ne.s32.totalorder %s111, %s113
      %p120 = scmp.eq.s32.totalorder %s19, 3
      %p121 = por %p119, %p120
      %p122 = scmp.ne.s32.totalorder %s113, %s114
      %p123 = scmp.eq.s32.totalorder %s19, 0
      %p124 = por %p122, %p123
      %p125 = scmp.ne.s32.totalorder %s113, %s114
      %p126 = scmp.eq.s32.totalorder %s20, 3
      %p127 = por %p125, %p126
      %p129 = scmp.ne.s32.totalorder %s114, %s128
      %p130 = scmp.eq.s32.totalorder %s20, 0
      %p131 = por %p129, %p130
      %s132 = ssub.s32 %s14, %s21
      %p133 = scmp.eq.s32.totalorder %s132, 0
      %s135 = sadd.s32 %s134, 1
      %s136 = scalar_select %p133, %s134, %s135
      %p139 = pneg %p133
      %p140 = scmp.eq.s32.totalorder %s14, 3
      %p141 = por %p139, %p140
      %p142 = scmp.ne.s32.totalorder %s134, %s137
      %p143 = scmp.eq.s32.totalorder %s14, 0
      %p144 = por %p142, %p143
      %p145 = scmp.ne.s32.totalorder %s134, %s137
      %p146 = scmp.eq.s32.totalorder %s19, 3
      %p147 = por %p145, %p146
      %p148 = scmp.ne.s32.totalorder %s137, %s138
      %p149 = scmp.eq.s32.totalorder %s19, 0
      %p150 = por %p148, %p149
      %p151 = scmp.ne.s32.totalorder %s137, %s138
      %p152 = scmp.eq.s32.totalorder %s20, 3
      %p153 = por %p151, %p152
      %p155 = scmp.ne.s32.totalorder %s138, %s154
      %p156 = scmp.eq.s32.totalorder %s20, 0
      %p157 = por %p155, %p156
      %p158 = scmp.le.s32.totalorder 1, %s14
      %p159 = scmp.lt.s32.totalorder %s14, 5
      %p160 = pnand %p158, %p159
      %p161 = pneg %p160
      // Predicated region
      $region9: #{resblock_forward.1} parent=5 // pred_check
        _
      $region10: #{resblock_forward.1} parent=5 // pred_check_branch
        %163 = sbr.rel (%p160) target = $region12
      $region11: #{resblock_forward.1} parent=5 // pred_region
        %s164 = ssub.s32 %s14, 1
        // Predicated region
        $region13: #{resblock_forward.1} parent=11 // pred_check
          %p165 = pneg %p61
        $region14: #{resblock_forward.1} parent=11 // pred_check_branch
          %167 = sbr.rel (%p165) target = $region16
        $region15: #{resblock_forward.1} parent=11 // pred_region
          _
        $region16: #{resblock_forward.1} parent=11 // pred_fallthru
          _
        // Predicated region
        $region17: #{resblock_forward.1} parent=11 // pred_check
          %p168 = pneg %p82
        $region18: #{resblock_forward.1} parent=11 // pred_check_branch
          %170 = sbr.rel (%p168) target = $region20
        $region19: #{resblock_forward.1} parent=11 // pred_region
          _
        $region20: #{resblock_forward.1} parent=11 // pred_fallthru
          _
        // Predicated region
        $region21: #{resblock_forward.1} parent=11 // pred_check
          %p171 = pneg %p103
        $region22: #{resblock_forward.1} parent=11 // pred_check_branch
          %173 = sbr.rel (%p171) target = $region24
        $region23: #{resblock_forward.1} parent=11 // pred_region
          _
        $region24: #{resblock_forward.1} parent=11 // pred_fallthru
          _
        // Predicated region
        $region25: #{resblock_forward.1} parent=11 // pred_check
          %p174 = pneg %p124
        $region26: #{resblock_forward.1} parent=11 // pred_check_branch
          %176 = sbr.rel (%p174) target = $region28
        $region27: #{resblock_forward.1} parent=11 // pred_region
          _
        $region28: #{resblock_forward.1} parent=11 // pred_fallthru
          _
      $region12: #{resblock_forward.1} parent=5 // pred_fallthru
        _
      %p177 = scmp.lt.s32.totalorder %s14, 4
      // Predicated region
      $region29: #{resblock_forward.1} parent=5 // pred_check
        %p178 = pneg %p177
      $region30: #{resblock_forward.1} parent=5 // pred_check_branch
        %180 = sbr.rel (%p178) target = $region32
      $region31: #{resblock_forward.1} parent=5 // pred_region
        // Predicated region
        $region33: #{resblock_forward.1} parent=31 // pred_check
          %p181 = pneg %p34
        $region34: #{resblock_forward.1} parent=31 // pred_check_branch
          %183 = sbr.rel (%p181) target = $region36
        $region35: #{resblock_forward.1} parent=31 // pred_region
          %p184 = scmp.lt.s32.totalorder %s14, 3
          %s185 = scalar_select %p184, %s14, 3
          %s186 = smul.addr %s185, 32
          %s187 = smul.addr %s186, 8
          %s188 = scalar_lea.vmem %s0, %s187
        $region36: #{resblock_forward.1} parent=31 // pred_fallthru
          _
      $region32: #{resblock_forward.1} parent=5 // pred_fallthru
        _
      %p189 = scmp.le.s32.totalorder 1, %s14
      %p190 = scmp.lt.s32.totalorder %s14, 5
      %p191 = pnand %p189, %p190
      %p192 = pneg %p191
      // Predicated region
      $region37: #{resblock_forward.1} parent=5 // pred_check
        _
      $region38: #{resblock_forward.1} parent=5 // pred_check_branch
        %194 = sbr.rel (%p191) target = $region40
      $region39: #{resblock_forward.1} parent=5 // pred_region
        %s195 = ssub.s32 %s14, 1
        %p196 = scmp.lt.s32.totalorder %s19, 3
        %s197 = scalar_select %p196, %s19, 3
        %s198 = smul.addr %s197, 32
        %s199 = smul.addr %s198, 8
        %s200 = scalar_lea.vmem %s0, %s199
        %p201 = pneg %p40
        %p202 = pneg %p37
        %p203 = pneg %p61
        %p204 = pneg %p58
        %p205 = pneg %p82
        %p206 = pneg %p79
        %p207 = pneg %p103
        %p208 = pneg %p100
        %p209 = pneg %p124
        %p210 = pneg %p121
        %p211 = pneg %p150
        %p212 = pneg %p147
        %s213 = sand.u32 %s137, 1
        %s214 = scalar_lea.sflag [#allocation3], %s213
        %s215 = sand.u32 %s137, 1
        %s216 = smul.addr %s215, 256
        %s217 = scalar_lea.vmem [#allocation2], %s216
        %p218 = scmp.lt.s32.totalorder %s19, 3
        %s219 = scalar_select %p218, %s19, 3
        %s220 = smul.addr %s219, 32
        %s221 = smul.addr %s220, 8
        %s222 = scalar_lea.vmem %s0, %s221
        %v224 = vld [vmem:[%s222] sm:$0xff]
        %v225 = vld [vmem:[%s222 + $0x8] sm:$0xff]
        %v226 = vld [vmem:[%s222 + $0x10] sm:$0xff]
        %v227 = vld [vmem:[%s222 + $0x18] sm:$0xff]
        %v228 = vld [vmem:[%s222 + $0x20] sm:$0xff]
        %v229 = vld [vmem:[%s222 + $0x28] sm:$0xff]
        %v230 = vld [vmem:[%s222 + $0x30] sm:$0xff]
        %v231 = vld [vmem:[%s222 + $0x38] sm:$0xff]
        %v232 = vld [vmem:[%s222 + $0x40] sm:$0xff]
        %v233 = vld [vmem:[%s222 + $0x48] sm:$0xff]
        %v234 = vld [vmem:[%s222 + $0x50] sm:$0xff]
        %v235 = vld [vmem:[%s222 + $0x58] sm:$0xff]
        %v236 = vld [vmem:[%s222 + $0x60] sm:$0xff]
        %v237 = vld [vmem:[%s222 + $0x68] sm:$0xff]
        %v238 = vld [vmem:[%s222 + $0x70] sm:$0xff]
        %v239 = vld [vmem:[%s222 + $0x78] sm:$0xff]
        %v240 = vld [vmem:[%s222 + $0x80] sm:$0xff]
        %v241 = vld [vmem:[%s222 + $0x88] sm:$0xff]
        %v242 = vld [vmem:[%s222 + $0x90] sm:$0xff]
        %v243 = vld [vmem:[%s222 + $0x98] sm:$0xff]
        %v244 = vld [vmem:[%s222 + $0xa0] sm:$0xff]
        %v245 = vld [vmem:[%s222 + $0xa8] sm:$0xff]
        %v246 = vld [vmem:[%s222 + $0xb0] sm:$0xff]
        %v247 = vld [vmem:[%s222 + $0xb8] sm:$0xff]
        %v248 = vld [vmem:[%s222 + $0xc0] sm:$0xff]
        %v249 = vld [vmem:[%s222 + $0xc8] sm:$0xff]
        %v250 = vld [vmem:[%s222 + $0xd0] sm:$0xff]
        %v251 = vld [vmem:[%s222 + $0xd8] sm:$0xff]
        %v252 = vld [vmem:[%s222 + $0xe0] sm:$0xff]
        %v253 = vld [vmem:[%s222 + $0xe8] sm:$0xff]
        %v254 = vld [vmem:[%s222 + $0xf0] sm:$0xff]
        %v255 = vld [vmem:[%s222 + $0xf8] sm:$0xff]
        %v256 = vmax.f32 %v224, 0.0
        %v257 = vmax.f32 %v225, 0.0
        %v258 = vmax.f32 %v226, 0.0
        %v259 = vmax.f32 %v227, 0.0
        %v260 = vmax.f32 %v228, 0.0
        %v261 = vmax.f32 %v229, 0.0
        %v262 = vmax.f32 %v230, 0.0
        %v263 = vmax.f32 %v231, 0.0
        %v264 = vmax.f32 %v232, 0.0
        %v265 = vmax.f32 %v233, 0.0
        %v266 = vmax.f32 %v234, 0.0
        %v267 = vmax.f32 %v235, 0.0
        %v268 = vmax.f32 %v236, 0.0
        %v269 = vmax.f32 %v237, 0.0
        %v270 = vmax.f32 %v238, 0.0
        %v271 = vmax.f32 %v239, 0.0
        %v272 = vmax.f32 %v240, 0.0
        %v273 = vmax.f32 %v241, 0.0
        %v274 = vmax.f32 %v242, 0.0
        %v275 = vmax.f32 %v243, 0.0
        %v276 = vmax.f32 %v244, 0.0
        %v277 = vmax.f32 %v245, 0.0
        %v278 = vmax.f32 %v246, 0.0
        %v279 = vmax.f32 %v247, 0.0
        %v280 = vmax.f32 %v248, 0.0
        %v281 = vmax.f32 %v249, 0.0
        %v282 = vmax.f32 %v250, 0.0
        %v283 = vmax.f32 %v251, 0.0
        %v284 = vmax.f32 %v252, 0.0
        %v285 = vmax.f32 %v253, 0.0
        %v286 = vmax.f32 %v254, 0.0
        %v287 = vmax.f32 %v255, 0.0
        %v288 = vlaneseq
        %v289 = vshrl.u32 %v288, 7
        %v290 = vadd.s32 %v289, 8
        %v291 = vadd.s32 %v289, 16
        %v292 = vadd.s32 %v289, 24
        %v293 = vadd.s32 %v289, 32
        %v294 = vadd.s32 %v289, 40
        %v295 = vadd.s32 %v289, 48
        %v296 = vadd.s32 %v289, 56
        %v297 = vadd.s32 %v289, 64
        %v298 = vadd.s32 %v289, 72
        %v299 = vadd.s32 %v289, 80
        %v300 = vadd.s32 %v289, 88
        %v301 = vadd.s32 %v289, 96
        %v302 = vadd.s32 %v289, 104
        %v303 = vadd.s32 %v289, 112
        %v304 = vadd.s32 %v289, 120
        %v305 = vadd.s32 %v289, 128
        %v306 = vadd.s32 %v289, 136
        %v307 = vadd.s32 %v289, 144
        %v308 = vadd.s32 %v289, 152
        %v309 = vadd.s32 %v289, 160
        %v310 = vadd.s32 %v289, 168
        %v311 = vadd.s32 %v289, 176
        %v312 = vadd.s32 %v289, 184
        %v313 = vadd.s32 %v289, 192
        %v314 = vadd.s32 %v289, 200
        %v315 = vadd.s32 %v289, 208
        %v316 = vadd.s32 %v289, 216
        %v317 = vadd.s32 %v289, 224
        %v318 = vadd.s32 %v289, 232
        %v319 = vadd.s32 %v289, 240
        %v320 = vadd.s32 %v289, 248
        %vm321 = vcmp.lt.s32.totalorder %v289, 0
        %v322 = vsub.s32 0, %v289
        %v323 = vsel %vm321, %v322, %v289
        %v324 = vshrl.u32 %v323, 4
        %v325 = vand.u32 %v323, 15
        %v326 = vsub.s32 0, %v325
        %v327 = vsel %vm321, %v326, %v325
        %vm328 = vcmp.lt.s32.totalorder %v290, 0
        %v329 = vsub.s32 0, %v290
        %v330 = vsel %vm328, %v329, %v290
        %v331 = vshrl.u32 %v330, 4
        %v332 = vand.u32 %v330, 15
        %v333 = vsub.s32 0, %v332
        %v334 = vsel %vm328, %v333, %v332
        %vm335 = vcmp.lt.s32.totalorder %v291, 0
        %v336 = vsub.s32 0, %v291
        %v337 = vsel %vm335, %v336, %v291
        %v338 = vshrl.u32 %v337, 4
        %v339 = vand.u32 %v337, 15
        %v340 = vsub.s32 0, %v339
        %v341 = vsel %vm335, %v340, %v339
        %vm342 = vcmp.lt.s32.totalorder %v292, 0
        %v343 = vsub.s32 0, %v292
        %v344 = vsel %vm342, %v343, %v292
        %v345 = vshrl.u32 %v344, 4
        %v346 = vand.u32 %v344, 15
        %v347 = vsub.s32 0, %v346
        %v348 = vsel %vm342, %v347, %v346
        %vm349 = vcmp.lt.s32.totalorder %v293, 0
        %v350 = vsub.s32 0, %v293
        %v351 = vsel %vm349, %v350, %v293
        %v352 = vshrl.u32 %v351, 4
        %v353 = vand.u32 %v351, 15
        %v354 = vsub.s32 0, %v353
        %v355 = vsel %vm349, %v354, %v353
        %vm356 = vcmp.lt.s32.totalorder %v294, 0
        %v357 = vsub.s32 0, %v294
        %v358 = vsel %vm356, %v357, %v294
        %v359 = vshrl.u32 %v358, 4
        %v360 = vand.u32 %v358, 15
        %v361 = vsub.s32 0, %v360
        %v362 = vsel %vm356, %v361, %v360
        %vm363 = vcmp.lt.s32.totalorder %v295, 0
        %v364 = vsub.s32 0, %v295
        %v365 = vsel %vm363, %v364, %v295
        %v366 = vshrl.u32 %v365, 4
        %v367 = vand.u32 %v365, 15
        %v368 = vsub.s32 0, %v367
        %v369 = vsel %vm363, %v368, %v367
        %vm370 = vcmp.lt.s32.totalorder %v296, 0
        %v371 = vsub.s32 0, %v296
        %v372 = vsel %vm370, %v371, %v296
        %v373 = vshrl.u32 %v372, 4
        %v374 = vand.u32 %v372, 15
        %v375 = vsub.s32 0, %v374
        %v376 = vsel %vm370, %v375, %v374
        %vm377 = vcmp.lt.s32.totalorder %v297, 0
        %v378 = vsub.s32 0, %v297
        %v379 = vsel %vm377, %v378, %v297
        %v380 = vshrl.u32 %v379, 4
        %v381 = vand.u32 %v379, 15
        %v382 = vsub.s32 0, %v381
        %v383 = vsel %vm377, %v382, %v381
        %vm384 = vcmp.lt.s32.totalorder %v298, 0
        %v385 = vsub.s32 0, %v298
        %v386 = vsel %vm384, %v385, %v298
        %v387 = vshrl.u32 %v386, 4
        %v388 = vand.u32 %v386, 15
        %v389 = vsub.s32 0, %v388
        %v390 = vsel %vm384, %v389, %v388
        %vm391 = vcmp.lt.s32.totalorder %v299, 0
        %v392 = vsub.s32 0, %v299
        %v393 = vsel %vm391, %v392, %v299
        %v394 = vshrl.u32 %v393, 4
        %v395 = vand.u32 %v393, 15
        %v396 = vsub.s32 0, %v395
        %v397 = vsel %vm391, %v396, %v395
        %vm398 = vcmp.lt.s32.totalorder %v300, 0
        %v399 = vsub.s32 0, %v300
        %v400 = vsel %vm398, %v399, %v300
        %v401 = vshrl.u32 %v400, 4
        %v402 = vand.u32 %v400, 15
        %v403 = vsub.s32 0, %v402
        %v404 = vsel %vm398, %v403, %v402
        %vm405 = vcmp.lt.s32.totalorder %v301, 0
        %v406 = vsub.s32 0, %v301
        %v407 = vsel %vm405, %v406, %v301
        %v408 = vshrl.u32 %v407, 4
        %v409 = vand.u32 %v407, 15
        %v410 = vsub.s32 0, %v409
        %v411 = vsel %vm405, %v410, %v409
        %vm412 = vcmp.lt.s32.totalorder %v302, 0
        %v413 = vsub.s32 0, %v302
        %v414 = vsel %vm412, %v413, %v302
        %v415 = vshrl.u32 %v414, 4
        %v416 = vand.u32 %v414, 15
        %v417 = vsub.s32 0, %v416
        %v418 = vsel %vm412, %v417, %v416
        %vm419 = vcmp.lt.s32.totalorder %v303, 0
        %v420 = vsub.s32 0, %v303
        %v421 = vsel %vm419, %v420, %v303
        %v422 = vshrl.u32 %v421, 4
        %v423 = vand.u32 %v421, 15
        %v424 = vsub.s32 0, %v423
        %v425 = vsel %vm419, %v424, %v423
        %vm426 = vcmp.lt.s32.totalorder %v304, 0
        %v427 = vsub.s32 0, %v304
        %v428 = vsel %vm426, %v427, %v304
        %v429 = vshrl.u32 %v428, 4
        %v430 = vand.u32 %v428, 15
        %v431 = vsub.s32 0, %v430
        %v432 = vsel %vm426, %v431, %v430
        %vm433 = vcmp.lt.s32.totalorder %v305, 0
        %v434 = vsub.s32 0, %v305
        %v435 = vsel %vm433, %v434, %v305
        %v436 = vshrl.u32 %v435, 4
        %v437 = vand.u32 %v435, 15
        %v438 = vsub.s32 0, %v437
        %v439 = vsel %vm433, %v438, %v437
        %vm440 = vcmp.lt.s32.totalorder %v306, 0
        %v441 = vsub.s32 0, %v306
        %v442 = vsel %vm440, %v441, %v306
        %v443 = vshrl.u32 %v442, 4
        %v444 = vand.u32 %v442, 15
        %v445 = vsub.s32 0, %v444
        %v446 = vsel %vm440, %v445, %v444
        %vm447 = vcmp.lt.s32.totalorder %v307, 0
        %v448 = vsub.s32 0, %v307
        %v449 = vsel %vm447, %v448, %v307
        %v450 = vshrl.u32 %v449, 4
        %v451 = vand.u32 %v449, 15
        %v452 = vsub.s32 0, %v451
        %v453 = vsel %vm447, %v452, %v451
        %vm454 = vcmp.lt.s32.totalorder %v308, 0
        %v455 = vsub.s32 0, %v308
        %v456 = vsel %vm454, %v455, %v308
        %v457 = vshrl.u32 %v456, 4
        %v458 = vand.u32 %v456, 15
        %v459 = vsub.s32 0, %v458
        %v460 = vsel %vm454, %v459, %v458
        %vm461 = vcmp.lt.s32.totalorder %v309, 0
        %v462 = vsub.s32 0, %v309
        %v463 = vsel %vm461, %v462, %v309
        %v464 = vshrl.u32 %v463, 4
        %v465 = vand.u32 %v463, 15
        %v466 = vsub.s32 0, %v465
        %v467 = vsel %vm461, %v466, %v465
        %vm468 = vcmp.lt.s32.totalorder %v310, 0
        %v469 = vsub.s32 0, %v310
        %v470 = vsel %vm468, %v469, %v310
        %v471 = vshrl.u32 %v470, 4
        %v472 = vand.u32 %v470, 15
        %v473 = vsub.s32 0, %v472
        %v474 = vsel %vm468, %v473, %v472
        %vm475 = vcmp.lt.s32.totalorder %v311, 0
        %v476 = vsub.s32 0, %v311
        %v477 = vsel %vm475, %v476, %v311
        %v478 = vshrl.u32 %v477, 4
        %v479 = vand.u32 %v477, 15
        %v480 = vsub.s32 0, %v479
        %v481 = vsel %vm475, %v480, %v479
        %vm482 = vcmp.lt.s32.totalorder %v312, 0
        %v483 = vsub.s32 0, %v312
        %v484 = vsel %vm482, %v483, %v312
        %v485 = vshrl.u32 %v484, 4
        %v486 = vand.u32 %v484, 15
        %v487 = vsub.s32 0, %v486
        %v488 = vsel %vm482, %v487, %v486
        %vm489 = vcmp.lt.s32.totalorder %v313, 0
        %v490 = vsub.s32 0, %v313
        %v491 = vsel %vm489, %v490, %v313
        %v492 = vshrl.u32 %v491, 4
        %v493 = vand.u32 %v491, 15
        %v494 = vsub.s32 0, %v493
        %v495 = vsel %vm489, %v494, %v493
        %vm496 = vcmp.lt.s32.totalorder %v314, 0
        %v497 = vsub.s32 0, %v314
        %v498 = vsel %vm496, %v497, %v314
        %v499 = vshrl.u32 %v498, 4
        %v500 = vand.u32 %v498, 15
        %v501 = vsub.s32 0, %v500
        %v502 = vsel %vm496, %v501, %v500
        %vm503 = vcmp.lt.s32.totalorder %v315, 0
        %v504 = vsub.s32 0, %v315
        %v505 = vsel %vm503, %v504, %v315
        %v506 = vshrl.u32 %v505, 4
        %v507 = vand.u32 %v505, 15
        %v508 = vsub.s32 0, %v507
        %v509 = vsel %vm503, %v508, %v507
        %vm510 = vcmp.lt.s32.totalorder %v316, 0
        %v511 = vsub.s32 0, %v316
        %v512 = vsel %vm510, %v511, %v316
        %v513 = vshrl.u32 %v512, 4
        %v514 = vand.u32 %v512, 15
        %v515 = vsub.s32 0, %v514
        %v516 = vsel %vm510, %v515, %v514
        %vm517 = vcmp.lt.s32.totalorder %v317, 0
        %v518 = vsub.s32 0, %v317
        %v519 = vsel %vm517, %v518, %v317
        %v520 = vshrl.u32 %v519, 4
        %v521 = vand.u32 %v519, 15
        %v522 = vsub.s32 0, %v521
        %v523 = vsel %vm517, %v522, %v521
        %vm524 = vcmp.lt.s32.totalorder %v318, 0
        %v525 = vsub.s32 0, %v318
        %v526 = vsel %vm524, %v525, %v318
        %v527 = vshrl.u32 %v526, 4
        %v528 = vand.u32 %v526, 15
        %v529 = vsub.s32 0, %v528
        %v530 = vsel %vm524, %v529, %v528
        %vm531 = vcmp.lt.s32.totalorder %v319, 0
        %v532 = vsub.s32 0, %v319
        %v533 = vsel %vm531, %v532, %v319
        %v534 = vshrl.u32 %v533, 4
        %v535 = vand.u32 %v533, 15
        %v536 = vsub.s32 0, %v535
        %v537 = vsel %vm531, %v536, %v535
        %vm538 = vcmp.lt.s32.totalorder %v320, 0
        %v539 = vsub.s32 0, %v320
        %v540 = vsel %vm538, %v539, %v320
        %v541 = vshrl.u32 %v540, 4
        %v542 = vand.u32 %v540, 15
        %v543 = vsub.s32 0, %v542
        %v544 = vsel %vm538, %v543, %v542
        %vm545 = vcmp.ne.s32.totalorder %v327, 0
        %vm546 = vcmp.ne.s32.totalorder %v334, 0
        %vm547 = vcmp.ne.s32.totalorder %v341, 0
        %vm548 = vcmp.ne.s32.totalorder %v348, 0
        %vm549 = vcmp.ne.s32.totalorder %v355, 0
        %vm550 = vcmp.ne.s32.totalorder %v362, 0
        %vm551 = vcmp.ne.s32.totalorder %v369, 0
        %vm552 = vcmp.ne.s32.totalorder %v376, 0
        %vm553 = vcmp.ne.s32.totalorder %v383, 0
        %vm554 = vcmp.ne.s32.totalorder %v390, 0
        %vm555 = vcmp.ne.s32.totalorder %v397, 0
        %vm556 = vcmp.ne.s32.totalorder %v404, 0
        %vm557 = vcmp.ne.s32.totalorder %v411, 0
        %vm558 = vcmp.ne.s32.totalorder %v418, 0
        %vm559 = vcmp.ne.s32.totalorder %v425, 0
        %vm560 = vcmp.ne.s32.totalorder %v432, 0
        %vm561 = vcmp.ne.s32.totalorder %v439, 0
        %vm562 = vcmp.ne.s32.totalorder %v446, 0
        %vm563 = vcmp.ne.s32.totalorder %v453, 0
        %vm564 = vcmp.ne.s32.totalorder %v460, 0
        %vm565 = vcmp.ne.s32.totalorder %v467, 0
        %vm566 = vcmp.ne.s32.totalorder %v474, 0
        %vm567 = vcmp.ne.s32.totalorder %v481, 0
        %vm568 = vcmp.ne.s32.totalorder %v488, 0
        %vm569 = vcmp.ne.s32.totalorder %v495, 0
        %vm570 = vcmp.ne.s32.totalorder %v502, 0
        %vm571 = vcmp.ne.s32.totalorder %v509, 0
        %vm572 = vcmp.ne.s32.totalorder %v516, 0
        %vm573 = vcmp.ne.s32.totalorder %v523, 0
        %vm574 = vcmp.ne.s32.totalorder %v530, 0
        %vm575 = vcmp.ne.s32.totalorder %v537, 0
        %vm576 = vcmp.ne.s32.totalorder %v544, 0
        %vm577 = vcmp.lt.s32.totalorder %v327, 0
        %vm578 = vcmp.lt.s32.totalorder %v334, 0
        %vm579 = vcmp.lt.s32.totalorder %v341, 0
        %vm580 = vcmp.lt.s32.totalorder %v348, 0
        %vm581 = vcmp.lt.s32.totalorder %v355, 0
        %vm582 = vcmp.lt.s32.totalorder %v362, 0
        %vm583 = vcmp.lt.s32.totalorder %v369, 0
        %vm584 = vcmp.lt.s32.totalorder %v376, 0
        %vm585 = vcmp.lt.s32.totalorder %v383, 0
        %vm586 = vcmp.lt.s32.totalorder %v390, 0
        %vm587 = vcmp.lt.s32.totalorder %v397, 0
        %vm588 = vcmp.lt.s32.totalorder %v404, 0
        %vm589 = vcmp.lt.s32.totalorder %v411, 0
        %vm590 = vcmp.lt.s32.totalorder %v418, 0
        %vm591 = vcmp.lt.s32.totalorder %v425, 0
        %vm592 = vcmp.lt.s32.totalorder %v432, 0
        %vm593 = vcmp.lt.s32.totalorder %v439, 0
        %vm594 = vcmp.lt.s32.totalorder %v446, 0
        %vm595 = vcmp.lt.s32.totalorder %v453, 0
        %vm596 = vcmp.lt.s32.totalorder %v460, 0
        %vm597 = vcmp.lt.s32.totalorder %v467, 0
        %vm598 = vcmp.lt.s32.totalorder %v474, 0
        %vm599 = vcmp.lt.s32.totalorder %v481, 0
        %vm600 = vcmp.lt.s32.totalorder %v488, 0
        %vm601 = vcmp.lt.s32.totalorder %v495, 0
        %vm602 = vcmp.lt.s32.totalorder %v502, 0
        %vm603 = vcmp.lt.s32.totalorder %v509, 0
        %vm604 = vcmp.lt.s32.totalorder %v516, 0
        %vm605 = vcmp.lt.s32.totalorder %v523, 0
        %vm606 = vcmp.lt.s32.totalorder %v530, 0
        %vm607 = vcmp.lt.s32.totalorder %v537, 0
        %vm608 = vcmp.lt.s32.totalorder %v544, 0
        %vm609 = vmand %vm577, %vm545
        %vm610 = vmand %vm578, %vm546
        %vm611 = vmand %vm579, %vm547
        %vm612 = vmand %vm580, %vm548
        %vm613 = vmand %vm581, %vm549
        %vm614 = vmand %vm582, %vm550
        %vm615 = vmand %vm583, %vm551
        %vm616 = vmand %vm584, %vm552
        %vm617 = vmand %vm585, %vm553
        %vm618 = vmand %vm586, %vm554
        %vm619 = vmand %vm587, %vm555
        %vm620 = vmand %vm588, %vm556
        %vm621 = vmand %vm589, %vm557
        %vm622 = vmand %vm590, %vm558
        %vm623 = vmand %vm591, %vm559
        %vm624 = vmand %vm592, %vm560
        %vm625 = vmand %vm593, %vm561
        %vm626 = vmand %vm594, %vm562
        %vm627 = vmand %vm595, %vm563
        %vm628 = vmand %vm596, %vm564
        %vm629 = vmand %vm597, %vm565
        %vm630 = vmand %vm598, %vm566
        %vm631 = vmand %vm599, %vm567
        %vm632 = vmand %vm600, %vm568
        %vm633 = vmand %vm601, %vm569
        %vm634 = vmand %vm602, %vm570
        %vm635 = vmand %vm603, %vm571
        %vm636 = vmand %vm604, %vm572
        %vm637 = vmand %vm605, %vm573
        %vm638 = vmand %vm606, %vm574
        %vm639 = vmand %vm607, %vm575
        %vm640 = vmand %vm608, %vm576
        %v641 = vadd.s32 %v327, 16
        %v642 = vadd.s32 %v334, 16
        %v643 = vadd.s32 %v341, 16
        %v644 = vadd.s32 %v348, 16
        %v645 = vadd.s32 %v355, 16
        %v646 = vadd.s32 %v362, 16
        %v647 = vadd.s32 %v369, 16
        %v648 = vadd.s32 %v376, 16
        %v649 = vadd.s32 %v383, 16
        %v650 = vadd.s32 %v390, 16
        %v651 = vadd.s32 %v397, 16
        %v652 = vadd.s32 %v404, 16
        %v653 = vadd.s32 %v411, 16
        %v654 = vadd.s32 %v418, 16
        %v655 = vadd.s32 %v425, 16
        %v656 = vadd.s32 %v432, 16
        %v657 = vadd.s32 %v439, 16
        %v658 = vadd.s32 %v446, 16
        %v659 = vadd.s32 %v453, 16
        %v660 = vadd.s32 %v460, 16
        %v661 = vadd.s32 %v467, 16
        %v662 = vadd.s32 %v474, 16
        %v663 = vadd.s32 %v481, 16
        %v664 = vadd.s32 %v488, 16
        %v665 = vadd.s32 %v495, 16
        %v666 = vadd.s32 %v502, 16
        %v667 = vadd.s32 %v509, 16
        %v668 = vadd.s32 %v516, 16
        %v669 = vadd.s32 %v523, 16
        %v670 = vadd.s32 %v530, 16
        %v671 = vadd.s32 %v537, 16
        %v672 = vadd.s32 %v544, 16
        %v673 = vsel %vm609, %v641, %v327
        %v674 = vsel %vm610, %v642, %v334
        %v675 = vsel %vm611, %v643, %v341
        %v676 = vsel %vm612, %v644, %v348
        %v677 = vsel %vm613, %v645, %v355
        %v678 = vsel %vm614, %v646, %v362
        %v679 = vsel %vm615, %v647, %v369
        %v680 = vsel %vm616, %v648, %v376
        %v681 = vsel %vm617, %v649, %v383
        %v682 = vsel %vm618, %v650, %v390
        %v683 = vsel %vm619, %v651, %v397
        %v684 = vsel %vm620, %v652, %v404
        %v685 = vsel %vm621, %v653, %v411
        %v686 = vsel %vm622, %v654, %v418
        %v687 = vsel %vm623, %v655, %v425
        %v688 = vsel %vm624, %v656, %v432
        %v689 = vsel %vm625, %v657, %v439
        %v690 = vsel %vm626, %v658, %v446
        %v691 = vsel %vm627, %v659, %v453
        %v692 = vsel %vm628, %v660, %v460
        %v693 = vsel %vm629, %v661, %v467
        %v694 = vsel %vm630, %v662, %v474
        %v695 = vsel %vm631, %v663, %v481
        %v696 = vsel %vm632, %v664, %v488
        %v697 = vsel %vm633, %v665, %v495
        %v698 = vsel %vm634, %v666, %v502
        %v699 = vsel %vm635, %v667, %v509
        %v700 = vsel %vm636, %v668, %v516
        %v701 = vsel %vm637, %v669, %v523
        %v702 = vsel %vm638, %v670, %v530
        %v703 = vsel %vm639, %v671, %v537
        %v704 = vsel %vm640, %v672, %v544
        %vm705 = vcmp.eq.s32.totalorder %v673, 0
        %vm706 = vcmp.eq.s32.totalorder %v674, 0
        %vm707 = vcmp.eq.s32.totalorder %v675, 0
        %vm708 = vcmp.eq.s32.totalorder %v676, 0
        %vm709 = vcmp.eq.s32.totalorder %v677, 0
        %vm710 = vcmp.eq.s32.totalorder %v678, 0
        %vm711 = vcmp.eq.s32.totalorder %v679, 0
        %vm712 = vcmp.eq.s32.totalorder %v680, 0
        %vm713 = vcmp.eq.s32.totalorder %v681, 0
        %vm714 = vcmp.eq.s32.totalorder %v682, 0
        %vm715 = vcmp.eq.s32.totalorder %v683, 0
        %vm716 = vcmp.eq.s32.totalorder %v684, 0
        %vm717 = vcmp.eq.s32.totalorder %v685, 0
        %vm718 = vcmp.eq.s32.totalorder %v686, 0
        %vm719 = vcmp.eq.s32.totalorder %v687, 0
        %vm720 = vcmp.eq.s32.totalorder %v688, 0
        %vm721 = vcmp.eq.s32.totalorder %v689, 0
        %vm722 = vcmp.eq.s32.totalorder %v690, 0
        %vm723 = vcmp.eq.s32.totalorder %v691, 0
        %vm724 = vcmp.eq.s32.totalorder %v692, 0
        %vm725 = vcmp.eq.s32.totalorder %v693, 0
        %vm726 = vcmp.eq.s32.totalorder %v694, 0
        %vm727 = vcmp.eq.s32.totalorder %v695, 0
        %vm728 = vcmp.eq.s32.totalorder %v696, 0
        %vm729 = vcmp.eq.s32.totalorder %v697, 0
        %vm730 = vcmp.eq.s32.totalorder %v698, 0
        %vm731 = vcmp.eq.s32.totalorder %v699, 0
        %vm732 = vcmp.eq.s32.totalorder %v700, 0
        %vm733 = vcmp.eq.s32.totalorder %v701, 0
        %vm734 = vcmp.eq.s32.totalorder %v702, 0
        %vm735 = vcmp.eq.s32.totalorder %v703, 0
        %vm736 = vcmp.eq.s32.totalorder %v704, 0
        %v737 = vrot.slane %v256, 7
        %v738 = vrot.slane %v257, 7
        %v739 = vrot.slane %v258, 7
        %v740 = vrot.slane %v259, 7
        %v741 = vrot.slane %v260, 7
        %v742 = vrot.slane %v261, 7
        %v743 = vrot.slane %v262, 7
        %v744 = vrot.slane %v263, 7
        %v745 = vrot.slane %v264, 7
        %v746 = vrot.slane %v265, 7
        %v747 = vrot.slane %v266, 7
        %v748 = vrot.slane %v267, 7
        %v749 = vrot.slane %v268, 7
        %v750 = vrot.slane %v269, 7
        %v751 = vrot.slane %v270, 7
        %v752 = vrot.slane %v271, 7
        %v753 = vrot.slane %v272, 7
        %v754 = vrot.slane %v273, 7
        %v755 = vrot.slane %v274, 7
        %v756 = vrot.slane %v275, 7
        %v757 = vrot.slane %v276, 7
        %v758 = vrot.slane %v277, 7
        %v759 = vrot.slane %v278, 7
        %v760 = vrot.slane %v279, 7
        %v761 = vrot.slane %v280, 7
        %v762 = vrot.slane %v281, 7
        %v763 = vrot.slane %v282, 7
        %v764 = vrot.slane %v283, 7
        %v765 = vrot.slane %v284, 7
        %v766 = vrot.slane %v285, 7
        %v767 = vrot.slane %v286, 7
        %v768 = vrot.slane %v287, 7
        %vm769 = vcmp.lt.s32.totalorder %v289, 1
        %v770 = vsel %vm769, %v767, %v768
        %v771 = vsel %vm769, %v766, %v767
        %v772 = vsel %vm769, %v765, %v766
        %v773 = vsel %vm769, %v764, %v765
        %v774 = vsel %vm769, %v763, %v764
        %v775 = vsel %vm769, %v762, %v763
        %v776 = vsel %vm769, %v761, %v762
        %v777 = vsel %vm769, %v760, %v761
        %v778 = vsel %vm769, %v759, %v760
        %v779 = vsel %vm769, %v758, %v759
        %v780 = vsel %vm769, %v757, %v758
        %v781 = vsel %vm769, %v756, %v757
        %v782 = vsel %vm769, %v755, %v756
        %v783 = vsel %vm769, %v754, %v755
        %v784 = vsel %vm769, %v753, %v754
        %v785 = vsel %vm769, %v752, %v753
        %v786 = vsel %vm769, %v751, %v752
        %v787 = vsel %vm769, %v750, %v751
        %v788 = vsel %vm769, %v749, %v750
        %v789 = vsel %vm769, %v748, %v749
        %v790 = vsel %vm769, %v747, %v748
        %v791 = vsel %vm769, %v746, %v747
        %v792 = vsel %vm769, %v745, %v746
        %v793 = vsel %vm769, %v744, %v745
        %v794 = vsel %vm769, %v743, %v744
        %v795 = vsel %vm769, %v742, %v743
        %v796 = vsel %vm769, %v741, %v742
        %v797 = vsel %vm769, %v740, %v741
        %v798 = vsel %vm769, %v739, %v740
        %v799 = vsel %vm769, %v738, %v739
        %v800 = vsel %vm769, %v737, %v738
        %v801 = vsel %vm769, %v768, %v737
        %v802 = vsel %vm705, 0.0, %v801
        %v803 = vsel %vm706, 0.0, %v800
        %v804 = vsel %vm707, 0.0, %v799
        %v805 = vsel %vm708, 0.0, %v798
        %v806 = vsel %vm709, 0.0, %v797
        %v807 = vsel %vm710, 0.0, %v796
        %v808 = vsel %vm711, 0.0, %v795
        %v809 = vsel %vm712, 0.0, %v794
        %v810 = vsel %vm713, 0.0, %v793
        %v811 = vsel %vm714, 0.0, %v792
        %v812 = vsel %vm715, 0.0, %v791
        %v813 = vsel %vm716, 0.0, %v790
        %v814 = vsel %vm717, 0.0, %v789
        %v815 = vsel %vm718, 0.0, %v788
        %v816 = vsel %vm719, 0.0, %v787
        %v817 = vsel %vm720, 0.0, %v786
        %v818 = vsel %vm721, 0.0, %v785
        %v819 = vsel %vm722, 0.0, %v784
        %v820 = vsel %vm723, 0.0, %v783
        %v821 = vsel %vm724, 0.0, %v782
        %v822 = vsel %vm725, 0.0, %v781
        %v823 = vsel %vm726, 0.0, %v780
        %v824 = vsel %vm727, 0.0, %v779
        %v825 = vsel %vm728, 0.0, %v778
        %v826 = vsel %vm729, 0.0, %v777
        %v827 = vsel %vm730, 0.0, %v776
        %v828 = vsel %vm731, 0.0, %v775
        %v829 = vsel %vm732, 0.0, %v774
        %v830 = vsel %vm733, 0.0, %v773
        %v831 = vsel %vm734, 0.0, %v772
        %v832 = vsel %vm735, 0.0, %v771
        %v833 = vsel %vm736, 0.0, %v770
        %vm834 = vcmp.eq.s32.totalorder %v673, 15
        %vm835 = vcmp.eq.s32.totalorder %v674, 15
        %vm836 = vcmp.eq.s32.totalorder %v675, 15
        %vm837 = vcmp.eq.s32.totalorder %v676, 15
        %vm838 = vcmp.eq.s32.totalorder %v677, 15
        %vm839 = vcmp.eq.s32.totalorder %v678, 15
        %vm840 = vcmp.eq.s32.totalorder %v679, 15
        %vm841 = vcmp.eq.s32.totalorder %v680, 15
        %vm842 = vcmp.eq.s32.totalorder %v681, 15
        %vm843 = vcmp.eq.s32.totalorder %v682, 15
        %vm844 = vcmp.eq.s32.totalorder %v683, 15
        %vm845 = vcmp.eq.s32.totalorder %v684, 15
        %vm846 = vcmp.eq.s32.totalorder %v685, 15
        %vm847 = vcmp.eq.s32.totalorder %v686, 15
        %vm848 = vcmp.eq.s32.totalorder %v687, 15
        %vm849 = vcmp.eq.s32.totalorder %v688, 15
        %vm850 = vcmp.eq.s32.totalorder %v689, 15
        %vm851 = vcmp.eq.s32.totalorder %v690, 15
        %vm852 = vcmp.eq.s32.totalorder %v691, 15
        %vm853 = vcmp.eq.s32.totalorder %v692, 15
        %vm854 = vcmp.eq.s32.totalorder %v693, 15
        %vm855 = vcmp.eq.s32.totalorder %v694, 15
        %vm856 = vcmp.eq.s32.totalorder %v695, 15
        %vm857 = vcmp.eq.s32.totalorder %v696, 15
        %vm858 = vcmp.eq.s32.totalorder %v697, 15
        %vm859 = vcmp.eq.s32.totalorder %v698, 15
        %vm860 = vcmp.eq.s32.totalorder %v699, 15
        %vm861 = vcmp.eq.s32.totalorder %v700, 15
        %vm862 = vcmp.eq.s32.totalorder %v701, 15
        %vm863 = vcmp.eq.s32.totalorder %v702, 15
        %vm864 = vcmp.eq.s32.totalorder %v703, 15
        %vm865 = vcmp.eq.s32.totalorder %v704, 15
        %v866 = vrot.slane %v256, 1
        %v867 = vrot.slane %v257, 1
        %v868 = vrot.slane %v258, 1
        %v869 = vrot.slane %v259, 1
        %v870 = vrot.slane %v260, 1
        %v871 = vrot.slane %v261, 1
        %v872 = vrot.slane %v262, 1
        %v873 = vrot.slane %v263, 1
        %v874 = vrot.slane %v264, 1
        %v875 = vrot.slane %v265, 1
        %v876 = vrot.slane %v266, 1
        %v877 = vrot.slane %v267, 1
        %v878 = vrot.slane %v268, 1
        %v879 = vrot.slane %v269, 1
        %v880 = vrot.slane %v270, 1
        %v881 = vrot.slane %v271, 1
        %v882 = vrot.slane %v272, 1
        %v883 = vrot.slane %v273, 1
        %v884 = vrot.slane %v274, 1
        %v885 = vrot.slane %v275, 1
        %v886 = vrot.slane %v276, 1
        %v887 = vrot.slane %v277, 1
        %v888 = vrot.slane %v278, 1
        %v889 = vrot.slane %v279, 1
        %v890 = vrot.slane %v280, 1
        %v891 = vrot.slane %v281, 1
        %v892 = vrot.slane %v282, 1
        %v893 = vrot.slane %v283, 1
        %v894 = vrot.slane %v284, 1
        %v895 = vrot.slane %v285, 1
        %v896 = vrot.slane %v286, 1
        %v897 = vrot.slane %v287, 1
        %vm898 = vcmp.lt.s32.totalorder %v289, 7
        %v899 = vsel %vm898, %v896, %v897
        %v900 = vsel %vm898, %v895, %v896
        %v901 = vsel %vm898, %v894, %v895
        %v902 = vsel %vm898, %v893, %v894
        %v903 = vsel %vm898, %v892, %v893
        %v904 = vsel %vm898, %v891, %v892
        %v905 = vsel %vm898, %v890, %v891
        %v906 = vsel %vm898, %v889, %v890
        %v907 = vsel %vm898, %v888, %v889
        %v908 = vsel %vm898, %v887, %v888
        %v909 = vsel %vm898, %v886, %v887
        %v910 = vsel %vm898, %v885, %v886
        %v911 = vsel %vm898, %v884, %v885
        %v912 = vsel %vm898, %v883, %v884
        %v913 = vsel %vm898, %v882, %v883
        %v914 = vsel %vm898, %v881, %v882
        %v915 = vsel %vm898, %v880, %v881
        %v916 = vsel %vm898, %v879, %v880
        %v917 = vsel %vm898, %v878, %v879
        %v918 = vsel %vm898, %v877, %v878
        %v919 = vsel %vm898, %v876, %v877
        %v920 = vsel %vm898, %v875, %v876
        %v921 = vsel %vm898, %v874, %v875
        %v922 = vsel %vm898, %v873, %v874
        %v923 = vsel %vm898, %v872, %v873
        %v924 = vsel %vm898, %v871, %v872
        %v925 = vsel %vm898, %v870, %v871
        %v926 = vsel %vm898, %v869, %v870
        %v927 = vsel %vm898, %v868, %v869
        %v928 = vsel %vm898, %v867, %v868
        %v929 = vsel %vm898, %v866, %v867
        %v930 = vsel %vm898, %v897, %v866
        %v931 = vsel %vm834, 0.0, %v929
        %v932 = vsel %vm835, 0.0, %v928
        %v933 = vsel %vm836, 0.0, %v927
        %v934 = vsel %vm837, 0.0, %v926
        %v935 = vsel %vm838, 0.0, %v925
        %v936 = vsel %vm839, 0.0, %v924
        %v937 = vsel %vm840, 0.0, %v923
        %v938 = vsel %vm841, 0.0, %v922
        %v939 = vsel %vm842, 0.0, %v921
        %v940 = vsel %vm843, 0.0, %v920
        %v941 = vsel %vm844, 0.0, %v919
        %v942 = vsel %vm845, 0.0, %v918
        %v943 = vsel %vm846, 0.0, %v917
        %v944 = vsel %vm847, 0.0, %v916
        %v945 = vsel %vm848, 0.0, %v915
        %v946 = vsel %vm849, 0.0, %v914
        %v947 = vsel %vm850, 0.0, %v913
        %v948 = vsel %vm851, 0.0, %v912
        %v949 = vsel %vm852, 0.0, %v911
        %v950 = vsel %vm853, 0.0, %v910
        %v951 = vsel %vm854, 0.0, %v909
        %v952 = vsel %vm855, 0.0, %v908
        %v953 = vsel %vm856, 0.0, %v907
        %v954 = vsel %vm857, 0.0, %v906
        %v955 = vsel %vm858, 0.0, %v905
        %v956 = vsel %vm859, 0.0, %v904
        %v957 = vsel %vm860, 0.0, %v903
        %v958 = vsel %vm861, 0.0, %v902
        %v959 = vsel %vm862, 0.0, %v901
        %v960 = vsel %vm863, 0.0, %v900
        %v961 = vsel %vm864, 0.0, %v899
        %v962 = vsel %vm865, 0.0, %v930
        %v963 = vpack.c.bf16 %v803, %v802
        %v964 = vpack.c.bf16 %v805, %v804
        %v965 = vpack.c.bf16 %v807, %v806
        %v966 = vpack.c.bf16 %v809, %v808
        %v967 = vpack.c.bf16 %v811, %v810
        %v968 = vpack.c.bf16 %v813, %v812
        %v969 = vpack.c.bf16 %v815, %v814
        %v970 = vpack.c.bf16 %v817, %v816
        %v971 = vpack.c.bf16 %v819, %v818
        %v972 = vpack.c.bf16 %v821, %v820
        %v973 = vpack.c.bf16 %v823, %v822
        %v974 = vpack.c.bf16 %v825, %v824
        %v975 = vpack.c.bf16 %v827, %v826
        %v976 = vpack.c.bf16 %v829, %v828
        %v977 = vpack.c.bf16 %v831, %v830
        %v978 = vpack.c.bf16 %v833, %v832
        %v979 = vpack.c.bf16 %v257, %v256
        %v980 = vpack.c.bf16 %v259, %v258
        %v981 = vpack.c.bf16 %v261, %v260
        %v982 = vpack.c.bf16 %v263, %v262
        %v983 = vpack.c.bf16 %v265, %v264
        %v984 = vpack.c.bf16 %v267, %v266
        %v985 = vpack.c.bf16 %v269, %v268
        %v986 = vpack.c.bf16 %v271, %v270
        %v987 = vpack.c.bf16 %v273, %v272
        %v988 = vpack.c.bf16 %v275, %v274
        %v989 = vpack.c.bf16 %v277, %v276
        %v990 = vpack.c.bf16 %v279, %v278
        %v991 = vpack.c.bf16 %v281, %v280
        %v992 = vpack.c.bf16 %v283, %v282
        %v993 = vpack.c.bf16 %v285, %v284
        %v994 = vpack.c.bf16 %v287, %v286
        %v995 = vpack.c.bf16 %v932, %v931
        %v996 = vpack.c.bf16 %v934, %v933
        %v997 = vpack.c.bf16 %v936, %v935
        %v998 = vpack.c.bf16 %v938, %v937
        %v999 = vpack.c.bf16 %v940, %v939
        %v1000 = vpack.c.bf16 %v942, %v941
        %v1001 = vpack.c.bf16 %v944, %v943
        %v1002 = vpack.c.bf16 %v946, %v945
        %v1003 = vpack.c.bf16 %v948, %v947
        %v1004 = vpack.c.bf16 %v950, %v949
        %v1005 = vpack.c.bf16 %v952, %v951
        %v1006 = vpack.c.bf16 %v954, %v953
        %v1007 = vpack.c.bf16 %v956, %v955
        %v1008 = vpack.c.bf16 %v958, %v957
        %v1009 = vpack.c.bf16 %v960, %v959
        %v1010 = vpack.c.bf16 %v962, %v961
        %v1011 = vld [vmem:[%s1] sm:$0xf]
        %v1012 = vld [vmem:[%s1 + $0x4] sm:$0xf]
        %v1013 = vld [vmem:[%s1 + $0x8] sm:$0xf]
        %v1014 = vld [vmem:[%s1 + $0xc] sm:$0xf]
        %v1015 = vld [vmem:[%s1 + $0x10] sm:$0xf]
        %v1016 = vld [vmem:[%s1 + $0x14] sm:$0xf]
        %v1017 = vld [vmem:[%s1 + $0x18] sm:$0xf]
        %v1018 = vld [vmem:[%s1 + $0x1c] sm:$0xf]
        %v1019 = vld [vmem:[%s1 + $0x20] sm:$0xf]
        %v1020 = vld [vmem:[%s1 + $0x24] sm:$0xf]
        %v1021 = vld [vmem:[%s1 + $0x28] sm:$0xf]
        %v1022 = vld [vmem:[%s1 + $0x2c] sm:$0xf]
        %v1023 = vld [vmem:[%s1 + $0x30] sm:$0xf]
        %v1024 = vld [vmem:[%s1 + $0x34] sm:$0xf]
        %v1025 = vld [vmem:[%s1 + $0x38] sm:$0xf]
        %v1026 = vld [vmem:[%s1 + $0x3c] sm:$0xf]
        %v1027 = vld [vmem:[%s1 + $0x40] sm:$0xf]
        %v1028 = vld [vmem:[%s1 + $0x44] sm:$0xf]
        %v1029 = vld [vmem:[%s1 + $0x48] sm:$0xf]
        %v1030 = vld [vmem:[%s1 + $0x4c] sm:$0xf]
        %v1031 = vld [vmem:[%s1 + $0x50] sm:$0xf]
        %v1032 = vld [vmem:[%s1 + $0x54] sm:$0xf]
        %v1033 = vld [vmem:[%s1 + $0x58] sm:$0xf]
        %v1034 = vld [vmem:[%s1 + $0x5c] sm:$0xf]
        %v1035 = vld [vmem:[%s1 + $0x60] sm:$0xf]
        %v1036 = vld [vmem:[%s1 + $0x64] sm:$0xf]
        %v1037 = vld [vmem:[%s1 + $0x68] sm:$0xf]
        %v1038 = vld [vmem:[%s1 + $0x6c] sm:$0xf]
        %v1039 = vld [vmem:[%s1 + $0x70] sm:$0xf]
        %v1040 = vld [vmem:[%s1 + $0x74] sm:$0xf]
        %v1041 = vld [vmem:[%s1 + $0x78] sm:$0xf]
        %v1042 = vld [vmem:[%s1 + $0x7c] sm:$0xf]
        %v1043 = vld [vmem:[%s1 + $0x80] sm:$0xf]
        %v1044 = vld [vmem:[%s1 + $0x84] sm:$0xf]
        %v1045 = vld [vmem:[%s1 + $0x88] sm:$0xf]
        %v1046 = vld [vmem:[%s1 + $0x8c] sm:$0xf]
        %v1047 = vld [vmem:[%s1 + $0x90] sm:$0xf]
        %v1048 = vld [vmem:[%s1 + $0x94] sm:$0xf]
        %v1049 = vld [vmem:[%s1 + $0x98] sm:$0xf]
        %v1050 = vld [vmem:[%s1 + $0x9c] sm:$0xf]
        %v1051 = vld [vmem:[%s1 + $0xa0] sm:$0xf]
        %v1052 = vld [vmem:[%s1 + $0xa4] sm:$0xf]
        %v1053 = vld [vmem:[%s1 + $0xa8] sm:$0xf]
        %v1054 = vld [vmem:[%s1 + $0xac] sm:$0xf]
        %v1055 = vld [vmem:[%s1 + $0xb0] sm:$0xf]
        %v1056 = vld [vmem:[%s1 + $0xb4] sm:$0xf]
        %v1057 = vld [vmem:[%s1 + $0xb8] sm:$0xf]
        %v1058 = vld [vmem:[%s1 + $0xbc] sm:$0xf]
        %s1059 = scalar_lea.vmem %s1, 192
        %v1060 = vld [vmem:[%s1059] sm:$0xf]
        %v1061 = vld [vmem:[%s1059 + $0x4] sm:$0xf]
        %v1062 = vld [vmem:[%s1059 + $0x8] sm:$0xf]
        %v1063 = vld [vmem:[%s1059 + $0xc] sm:$0xf]
        %v1064 = vld [vmem:[%s1059 + $0x10] sm:$0xf]
        %v1065 = vld [vmem:[%s1059 + $0x14] sm:$0xf]
        %v1066 = vld [vmem:[%s1059 + $0x18] sm:$0xf]
        %v1067 = vld [vmem:[%s1059 + $0x1c] sm:$0xf]
        %v1068 = vld [vmem:[%s1059 + $0x20] sm:$0xf]
        %v1069 = vld [vmem:[%s1059 + $0x24] sm:$0xf]
        %v1070 = vld [vmem:[%s1059 + $0x28] sm:$0xf]
        %v1071 = vld [vmem:[%s1059 + $0x2c] sm:$0xf]
        %v1072 = vld [vmem:[%s1059 + $0x30] sm:$0xf]
        %v1073 = vld [vmem:[%s1059 + $0x34] sm:$0xf]
        %v1074 = vld [vmem:[%s1059 + $0x38] sm:$0xf]
        %v1075 = vld [vmem:[%s1059 + $0x3c] sm:$0xf]
        %v1076 = vld [vmem:[%s1059 + $0x40] sm:$0xf]
        %v1077 = vld [vmem:[%s1059 + $0x44] sm:$0xf]
        %v1078 = vld [vmem:[%s1059 + $0x48] sm:$0xf]
        %v1079 = vld [vmem:[%s1059 + $0x4c] sm:$0xf]
        %v1080 = vld [vmem:[%s1059 + $0x50] sm:$0xf]
        %v1081 = vld [vmem:[%s1059 + $0x54] sm:$0xf]
        %v1082 = vld [vmem:[%s1059 + $0x58] sm:$0xf]
        %v1083 = vld [vmem:[%s1059 + $0x5c] sm:$0xf]
        %v1084 = vld [vmem:[%s1059 + $0x60] sm:$0xf]
        %v1085 = vld [vmem:[%s1059 + $0x64] sm:$0xf]
        %v1086 = vld [vmem:[%s1059 + $0x68] sm:$0xf]
        %v1087 = vld [vmem:[%s1059 + $0x6c] sm:$0xf]
        %v1088 = vld [vmem:[%s1059 + $0x70] sm:$0xf]
        %v1089 = vld [vmem:[%s1059 + $0x74] sm:$0xf]
        %v1090 = vld [vmem:[%s1059 + $0x78] sm:$0xf]
        %v1091 = vld [vmem:[%s1059 + $0x7c] sm:$0xf]
        %v1092 = vld [vmem:[%s1059 + $0x80] sm:$0xf]
        %v1093 = vld [vmem:[%s1059 + $0x84] sm:$0xf]
        %v1094 = vld [vmem:[%s1059 + $0x88] sm:$0xf]
        %v1095 = vld [vmem:[%s1059 + $0x8c] sm:$0xf]
        %v1096 = vld [vmem:[%s1059 + $0x90] sm:$0xf]
        %v1097 = vld [vmem:[%s1059 + $0x94] sm:$0xf]
        %v1098 = vld [vmem:[%s1059 + $0x98] sm:$0xf]
        %v1099 = vld [vmem:[%s1059 + $0x9c] sm:$0xf]
        %v1100 = vld [vmem:[%s1059 + $0xa0] sm:$0xf]
        %v1101 = vld [vmem:[%s1059 + $0xa4] sm:$0xf]
        %v1102 = vld [vmem:[%s1059 + $0xa8] sm:$0xf]
        %v1103 = vld [vmem:[%s1059 + $0xac] sm:$0xf]
        %v1104 = vld [vmem:[%s1059 + $0xb0] sm:$0xf]
        %v1105 = vld [vmem:[%s1059 + $0xb4] sm:$0xf]
        %v1106 = vld [vmem:[%s1059 + $0xb8] sm:$0xf]
        %v1107 = vld [vmem:[%s1059 + $0xbc] sm:$0xf]
        %v1156 = vunpack.c.l.b16 %v1060
        %v1157 = vunpack.c.l.b16 %v1061
        %v1158 = vunpack.c.l.b16 %v1062
        %v1159 = vunpack.c.l.b16 %v1063
        %v1160 = vunpack.c.l.b16 %v1064
        %v1161 = vunpack.c.l.b16 %v1065
        %v1162 = vunpack.c.l.b16 %v1066
        %v1163 = vunpack.c.l.b16 %v1067
        %v1164 = vunpack.c.l.b16 %v1068
        %v1165 = vunpack.c.l.b16 %v1069
        %v1166 = vunpack.c.l.b16 %v1070
        %v1167 = vunpack.c.l.b16 %v1071
        %v1168 = vunpack.c.l.b16 %v1072
        %v1169 = vunpack.c.l.b16 %v1073
        %v1170 = vunpack.c.l.b16 %v1074
        %v1171 = vunpack.c.l.b16 %v1075
        %v1172 = vunpack.c.l.b16 %v1076
        %v1173 = vunpack.c.l.b16 %v1077
        %v1174 = vunpack.c.l.b16 %v1078
        %v1175 = vunpack.c.l.b16 %v1079
        %v1176 = vunpack.c.l.b16 %v1080
        %v1177 = vunpack.c.l.b16 %v1081
        %v1178 = vunpack.c.l.b16 %v1082
        %v1179 = vunpack.c.l.b16 %v1083
        %v1180 = vunpack.c.l.b16 %v1084
        %v1181 = vunpack.c.l.b16 %v1085
        %v1182 = vunpack.c.l.b16 %v1086
        %v1183 = vunpack.c.l.b16 %v1087
        %v1184 = vunpack.c.l.b16 %v1088
        %v1185 = vunpack.c.l.b16 %v1089
        %v1186 = vunpack.c.l.b16 %v1090
        %v1187 = vunpack.c.l.b16 %v1091
        %v1188 = vunpack.c.l.b16 %v1092
        %v1189 = vunpack.c.l.b16 %v1093
        %v1190 = vunpack.c.l.b16 %v1094
        %v1191 = vunpack.c.l.b16 %v1095
        %v1192 = vunpack.c.l.b16 %v1096
        %v1193 = vunpack.c.l.b16 %v1097
        %v1194 = vunpack.c.l.b16 %v1098
        %v1195 = vunpack.c.l.b16 %v1099
        %v1196 = vunpack.c.l.b16 %v1100
        %v1197 = vunpack.c.l.b16 %v1101
        %v1198 = vunpack.c.l.b16 %v1102
        %v1199 = vunpack.c.l.b16 %v1103
        %v1200 = vunpack.c.l.b16 %v1104
        %v1201 = vunpack.c.l.b16 %v1105
        %v1202 = vunpack.c.l.b16 %v1106
        %v1203 = vunpack.c.l.b16 %v1107
        %v1204 = vpack.c.b16 %v1157, %v1156
        %v1205 = vpack.c.b16 %v1159, %v1158
        %v1206 = vpack.c.b16 %v1161, %v1160
        %v1207 = vpack.c.b16 %v1163, %v1162
        %v1208 = vpack.c.b16 %v1165, %v1164
        %v1209 = vpack.c.b16 %v1167, %v1166
        %v1210 = vpack.c.b16 %v1169, %v1168
        %v1211 = vpack.c.b16 %v1171, %v1170
        %v1212 = vpack.c.b16 %v1173, %v1172
        %v1213 = vpack.c.b16 %v1175, %v1174
        %v1214 = vpack.c.b16 %v1177, %v1176
        %v1215 = vpack.c.b16 %v1179, %v1178
        %v1216 = vpack.c.b16 %v1181, %v1180
        %v1217 = vpack.c.b16 %v1183, %v1182
        %v1218 = vpack.c.b16 %v1185, %v1184
        %v1219 = vpack.c.b16 %v1187, %v1186
        %v1220 = vpack.c.b16 %v1189, %v1188
        %v1221 = vpack.c.b16 %v1191, %v1190
        %v1222 = vpack.c.b16 %v1193, %v1192
        %v1223 = vpack.c.b16 %v1195, %v1194
        %v1224 = vpack.c.b16 %v1197, %v1196
        %v1225 = vpack.c.b16 %v1199, %v1198
        %v1226 = vpack.c.b16 %v1201, %v1200
        %v1227 = vpack.c.b16 %v1203, %v1202
        %1252 = vmatprep.subr.bf16.mxu0 0
        %1253 = vmatpush1.bf16.msra.mxu0 %v1211
        %1254 = vmatprep.subr.bf16.mxu0 0
        %1255 = vmatpush1.bf16.msra.mxu0 %v1210
        %1256 = vmatprep.subr.bf16.mxu0 0
        %1257 = vmatpush1.bf16.msra.mxu0 %v1209
        %1258 = vmatprep.subr.bf16.mxu0 0
        %1259 = vmatpush1.bf16.msra.mxu0 %v1208
        %1260 = vmatprep.subr.bf16.mxu0 0
        %1261 = vmatpush1.bf16.msra.mxu0 %v1207
        %1262 = vmatprep.subr.bf16.mxu0 0
        %1263 = vmatpush1.bf16.msra.mxu0 %v1206
        %1264 = vmatprep.subr.bf16.mxu0 0
        %1265 = vmatpush1.bf16.msra.mxu0 %v1205
        %1266 = vmatprep.subr.bf16.mxu0 0
        %1267 = vmatpush1.bf16.msra.mxu0 %v1204
        %1268 = vmatprep.subr.bf16.mxu0 0
        %1269 = vmatpush2.bf16.msra.mxu0 %v1219
        %1270 = vmatprep.subr.bf16.mxu0 0
        %1271 = vmatpush2.bf16.msra.mxu0 %v1218
        %1272 = vmatprep.subr.bf16.mxu0 0
        %1273 = vmatpush2.bf16.msra.mxu0 %v1217
        %1274 = vmatprep.subr.bf16.mxu0 0
        %1275 = vmatpush2.bf16.msra.mxu0 %v1216
        %1276 = vmatprep.subr.bf16.mxu0 0
        %1277 = vmatpush2.bf16.msra.mxu0 %v1215
        %1278 = vmatprep.subr.bf16.mxu0 0
        %1279 = vmatpush2.bf16.msra.mxu0 %v1214
        %1280 = vmatprep.subr.bf16.mxu0 0
        %1281 = vmatpush2.bf16.msra.mxu0 %v1213
        %1282 = vmatprep.subr.bf16.mxu0 0
        %1283 = vmatpush2.bf16.msra.mxu0 %v1212
        %1284 = vmatprep.mubr.bf16.mxu0 %v979
        %1285 = vmatmul.mubr.bf16.gmra.mxu0 %v963
        %v1286 = vpop.f32.mrf.mxu0
        %v1287 = vadd.f32 0.0, %v1286
        %v1288 = vpop.f32.mrf.mxu0
        %v1289 = vpop.f32.mrf.mxu0
        %v1290 = vadd.f32 0.0, %v1289
        %v1291 = vpop.f32.mrf.mxu0
        %1292 = vmatprep.mubr.bf16.mxu0 %v980
        %1293 = vmatmul.mubr.bf16.gmra.mxu0 %v964
        %v1294 = vpop.f32.mrf.mxu0
        %v1295 = vadd.f32 0.0, %v1294
        %v1296 = vpop.f32.mrf.mxu0
        %v1297 = vpop.f32.mrf.mxu0
        %v1298 = vadd.f32 0.0, %v1297
        %v1299 = vpop.f32.mrf.mxu0
        %1300 = vmatprep.mubr.bf16.mxu0 %v981
        %1301 = vmatmul.mubr.bf16.gmra.mxu0 %v965
        %v1302 = vpop.f32.mrf.mxu0
        %v1303 = vadd.f32 0.0, %v1302
        %v1304 = vpop.f32.mrf.mxu0
        %v1305 = vpop.f32.mrf.mxu0
        %v1306 = vadd.f32 0.0, %v1305
        %v1307 = vpop.f32.mrf.mxu0
        %1308 = vmatprep.mubr.bf16.mxu0 %v982
        %1309 = vmatmul.mubr.bf16.gmra.mxu0 %v966
        %v1310 = vpop.f32.mrf.mxu0
        %v1311 = vadd.f32 0.0, %v1310
        %v1312 = vpop.f32.mrf.mxu0
        %v1313 = vpop.f32.mrf.mxu0
        %v1314 = vadd.f32 0.0, %v1313
        %v1315 = vpop.f32.mrf.mxu0
        %1316 = vmatprep.mubr.bf16.mxu0 %v983
        %1317 = vmatmul.mubr.bf16.gmra.mxu0 %v967
        %v1318 = vpop.f32.mrf.mxu0
        %v1319 = vadd.f32 0.0, %v1318
        %v1320 = vpop.f32.mrf.mxu0
        %v1321 = vpop.f32.mrf.mxu0
        %v1322 = vadd.f32 0.0, %v1321
        %v1323 = vpop.f32.mrf.mxu0
        %1324 = vmatprep.mubr.bf16.mxu0 %v984
        %1325 = vmatmul.mubr.bf16.gmra.mxu0 %v968
        %v1326 = vpop.f32.mrf.mxu0
        %v1327 = vadd.f32 0.0, %v1326
        %v1328 = vpop.f32.mrf.mxu0
        %v1329 = vpop.f32.mrf.mxu0
        %v1330 = vadd.f32 0.0, %v1329
        %v1331 = vpop.f32.mrf.mxu0
        %1332 = vmatprep.mubr.bf16.mxu0 %v985
        %1333 = vmatmul.mubr.bf16.gmra.mxu0 %v969
        %v1334 = vpop.f32.mrf.mxu0
        %v1335 = vadd.f32 0.0, %v1334
        %v1336 = vpop.f32.mrf.mxu0
        %v1337 = vpop.f32.mrf.mxu0
        %v1338 = vadd.f32 0.0, %v1337
        %v1339 = vpop.f32.mrf.mxu0
        %1340 = vmatprep.mubr.bf16.mxu0 %v986
        %1341 = vmatmul.mubr.bf16.gmra.mxu0 %v970
        %v1342 = vpop.f32.mrf.mxu0
        %v1343 = vadd.f32 0.0, %v1342
        %v1344 = vpop.f32.mrf.mxu0
        %v1345 = vpop.f32.mrf.mxu0
        %v1346 = vadd.f32 0.0, %v1345
        %v1347 = vpop.f32.mrf.mxu0
        %1348 = vmatprep.mubr.bf16.mxu0 %v987
        %1349 = vmatmul.mubr.bf16.gmra.mxu0 %v971
        %v1350 = vpop.f32.mrf.mxu0
        %v1351 = vadd.f32 0.0, %v1350
        %v1352 = vpop.f32.mrf.mxu0
        %v1353 = vpop.f32.mrf.mxu0
        %v1354 = vadd.f32 0.0, %v1353
        %v1355 = vpop.f32.mrf.mxu0
        %1356 = vmatprep.mubr.bf16.mxu0 %v988
        %1357 = vmatmul.mubr.bf16.gmra.mxu0 %v972
        %v1358 = vpop.f32.mrf.mxu0
        %v1359 = vadd.f32 0.0, %v1358
        %v1360 = vpop.f32.mrf.mxu0
        %v1361 = vpop.f32.mrf.mxu0
        %v1362 = vadd.f32 0.0, %v1361
        %v1363 = vpop.f32.mrf.mxu0
        %1364 = vmatprep.mubr.bf16.mxu0 %v989
        %1365 = vmatmul.mubr.bf16.gmra.mxu0 %v973
        %v1366 = vpop.f32.mrf.mxu0
        %v1367 = vadd.f32 0.0, %v1366
        %v1368 = vpop.f32.mrf.mxu0
        %v1369 = vpop.f32.mrf.mxu0
        %v1370 = vadd.f32 0.0, %v1369
        %v1371 = vpop.f32.mrf.mxu0
        %1372 = vmatprep.mubr.bf16.mxu0 %v990
        %1373 = vmatmul.mubr.bf16.gmra.mxu0 %v974
        %v1374 = vpop.f32.mrf.mxu0
        %v1375 = vadd.f32 0.0, %v1374
        %v1376 = vpop.f32.mrf.mxu0
        %v1377 = vpop.f32.mrf.mxu0
        %v1378 = vadd.f32 0.0, %v1377
        %v1379 = vpop.f32.mrf.mxu0
        %1380 = vmatprep.mubr.bf16.mxu0 %v991
        %1381 = vmatmul.mubr.bf16.gmra.mxu0 %v975
        %v1382 = vpop.f32.mrf.mxu0
        %v1383 = vadd.f32 0.0, %v1382
        %v1384 = vpop.f32.mrf.mxu0
        %v1385 = vpop.f32.mrf.mxu0
        %v1386 = vadd.f32 0.0, %v1385
        %v1387 = vpop.f32.mrf.mxu0
        %1388 = vmatprep.mubr.bf16.mxu0 %v992
        %1389 = vmatmul.mubr.bf16.gmra.mxu0 %v976
        %v1390 = vpop.f32.mrf.mxu0
        %v1391 = vadd.f32 0.0, %v1390
        %v1392 = vpop.f32.mrf.mxu0
        %v1393 = vpop.f32.mrf.mxu0
        %v1394 = vadd.f32 0.0, %v1393
        %v1395 = vpop.f32.mrf.mxu0
        %1396 = vmatprep.mubr.bf16.mxu0 %v993
        %1397 = vmatmul.mubr.bf16.gmra.mxu0 %v977
        %v1398 = vpop.f32.mrf.mxu0
        %v1399 = vadd.f32 0.0, %v1398
        %v1400 = vpop.f32.mrf.mxu0
        %v1401 = vpop.f32.mrf.mxu0
        %v1402 = vadd.f32 0.0, %v1401
        %v1403 = vpop.f32.mrf.mxu0
        %1404 = vmatprep.mubr.bf16.mxu0 %v994
        %1405 = vmatmul.mubr.bf16.gmra.mxu0 %v978
        %v1406 = vpop.f32.mrf.mxu0
        %v1407 = vadd.f32 0.0, %v1406
        %v1408 = vpop.f32.mrf.mxu0
        %v1409 = vpop.f32.mrf.mxu0
        %v1410 = vadd.f32 0.0, %v1409
        %v1411 = vpop.f32.mrf.mxu0
        %1412 = vdwg.mxu0
        %1413 = vmatprep.subr.bf16.mxu0 0
        %1414 = vmatpush1.bf16.msra.mxu0 %v1227
        %1415 = vmatprep.subr.bf16.mxu0 0
        %1416 = vmatpush1.bf16.msra.mxu0 %v1226
        %1417 = vmatprep.subr.bf16.mxu0 0
        %1418 = vmatpush1.bf16.msra.mxu0 %v1225
        %1419 = vmatprep.subr.bf16.mxu0 0
        %1420 = vmatpush1.bf16.msra.mxu0 %v1224
        %1421 = vmatprep.subr.bf16.mxu0 0
        %1422 = vmatpush1.bf16.msra.mxu0 %v1223
        %1423 = vmatprep.subr.bf16.mxu0 0
        %1424 = vmatpush1.bf16.msra.mxu0 %v1222
        %1425 = vmatprep.subr.bf16.mxu0 0
        %1426 = vmatpush1.bf16.msra.mxu0 %v1221
        %1427 = vmatprep.subr.bf16.mxu0 0
        %1428 = vmatpush1.bf16.msra.mxu0 %v1220
        %1429 = vmatprep.subr.bf16.mxu0 0
        %1430 = vmatpush2.bf16.msra.mxu0 0
        %1431 = vmatprep.subr.bf16.mxu0 0
        %1432 = vmatpush2.bf16.msra.mxu0 0
        %1433 = vmatprep.subr.bf16.mxu0 0
        %1434 = vmatpush2.bf16.msra.mxu0 0
        %1435 = vmatprep.subr.bf16.mxu0 0
        %1436 = vmatpush2.bf16.msra.mxu0 0
        %1437 = vmatprep.subr.bf16.mxu0 0
        %1438 = vmatpush2.bf16.msra.mxu0 0
        %1439 = vmatprep.subr.bf16.mxu0 0
        %1440 = vmatpush2.bf16.msra.mxu0 0
        %1441 = vmatprep.subr.bf16.mxu0 0
        %1442 = vmatpush2.bf16.msra.mxu0 0
        %1443 = vmatprep.subr.bf16.mxu0 0
        %1444 = vmatpush2.bf16.msra.mxu0 0
        %1445 = vmatprep.mubr.bf16.mxu0 0
        %1446 = vmatmul.mubr.bf16.gmra.mxu0 %v995
        %v1447 = vpop.f32.mrf.mxu0
        %v1448 = vadd.f32 %v1287, %v1447
        %v1449 = vpop.f32.mrf.mxu0
        %v1450 = vpop.f32.mrf.mxu0
        %v1451 = vadd.f32 %v1290, %v1450
        %v1452 = vpop.f32.mrf.mxu0
        %1453 = vmatprep.mubr.bf16.mxu0 0
        %1454 = vmatmul.mubr.bf16.gmra.mxu0 %v996
        %v1455 = vpop.f32.mrf.mxu0
        %v1456 = vadd.f32 %v1295, %v1455
        %v1457 = vpop.f32.mrf.mxu0
        %v1458 = vpop.f32.mrf.mxu0
        %v1459 = vadd.f32 %v1298, %v1458
        %v1460 = vpop.f32.mrf.mxu0
        %1461 = vmatprep.mubr.bf16.mxu0 0
        %1462 = vmatmul.mubr.bf16.gmra.mxu0 %v997
        %v1463 = vpop.f32.mrf.mxu0
        %v1464 = vadd.f32 %v1303, %v1463
        %v1465 = vpop.f32.mrf.mxu0
        %v1466 = vpop.f32.mrf.mxu0
        %v1467 = vadd.f32 %v1306, %v1466
        %v1468 = vpop.f32.mrf.mxu0
        %1469 = vmatprep.mubr.bf16.mxu0 0
        %1470 = vmatmul.mubr.bf16.gmra.mxu0 %v998
        %v1471 = vpop.f32.mrf.mxu0
        %v1472 = vadd.f32 %v1311, %v1471
        %v1473 = vpop.f32.mrf.mxu0
        %v1474 = vpop.f32.mrf.mxu0
        %v1475 = vadd.f32 %v1314, %v1474
        %v1476 = vpop.f32.mrf.mxu0
        %1477 = vmatprep.mubr.bf16.mxu0 0
        %1478 = vmatmul.mubr.bf16.gmra.mxu0 %v999
        %v1479 = vpop.f32.mrf.mxu0
        %v1480 = vadd.f32 %v1319, %v1479
        %v1481 = vpop.f32.mrf.mxu0
        %v1482 = vpop.f32.mrf.mxu0
        %v1483 = vadd.f32 %v1322, %v1482
        %v1484 = vpop.f32.mrf.mxu0
        %1485 = vmatprep.mubr.bf16.mxu0 0
        %1486 = vmatmul.mubr.bf16.gmra.mxu0 %v1000
        %v1487 = vpop.f32.mrf.mxu0
        %v1488 = vadd.f32 %v1327, %v1487
        %v1489 = vpop.f32.mrf.mxu0
        %v1490 = vpop.f32.mrf.mxu0
        %v1491 = vadd.f32 %v1330, %v1490
        %v1492 = vpop.f32.mrf.mxu0
        %1493 = vmatprep.mubr.bf16.mxu0 0
        %1494 = vmatmul.mubr.bf16.gmra.mxu0 %v1001
        %v1495 = vpop.f32.mrf.mxu0
        %v1496 = vadd.f32 %v1335, %v1495
        %v1497 = vpop.f32.mrf.mxu0
        %v1498 = vpop.f32.mrf.mxu0
        %v1499 = vadd.f32 %v1338, %v1498
        %v1500 = vpop.f32.mrf.mxu0
        %1501 = vmatprep.mubr.bf16.mxu0 0
        %1502 = vmatmul.mubr.bf16.gmra.mxu0 %v1002
        %v1503 = vpop.f32.mrf.mxu0
        %v1504 = vadd.f32 %v1343, %v1503
        %v1505 = vpop.f32.mrf.mxu0
        %v1506 = vpop.f32.mrf.mxu0
        %v1507 = vadd.f32 %v1346, %v1506
        %v1508 = vpop.f32.mrf.mxu0
        %1509 = vmatprep.mubr.bf16.mxu0 0
        %1510 = vmatmul.mubr.bf16.gmra.mxu0 %v1003
        %v1511 = vpop.f32.mrf.mxu0
        %v1512 = vadd.f32 %v1351, %v1511
        %v1513 = vpop.f32.mrf.mxu0
        %v1514 = vpop.f32.mrf.mxu0
        %v1515 = vadd.f32 %v1354, %v1514
        %v1516 = vpop.f32.mrf.mxu0
        %1517 = vmatprep.mubr.bf16.mxu0 0
        %1518 = vmatmul.mubr.bf16.gmra.mxu0 %v1004
        %v1519 = vpop.f32.mrf.mxu0
        %v1520 = vadd.f32 %v1359, %v1519
        %v1521 = vpop.f32.mrf.mxu0
        %v1522 = vpop.f32.mrf.mxu0
        %v1523 = vadd.f32 %v1362, %v1522
        %v1524 = vpop.f32.mrf.mxu0
        %1525 = vmatprep.mubr.bf16.mxu0 0
        %1526 = vmatmul.mubr.bf16.gmra.mxu0 %v1005
        %v1527 = vpop.f32.mrf.mxu0
        %v1528 = vadd.f32 %v1367, %v1527
        %v1529 = vpop.f32.mrf.mxu0
        %v1530 = vpop.f32.mrf.mxu0
        %v1531 = vadd.f32 %v1370, %v1530
        %v1532 = vpop.f32.mrf.mxu0
        %1533 = vmatprep.mubr.bf16.mxu0 0
        %1534 = vmatmul.mubr.bf16.gmra.mxu0 %v1006
        %v1535 = vpop.f32.mrf.mxu0
        %v1536 = vadd.f32 %v1375, %v1535
        %v1537 = vpop.f32.mrf.mxu0
        %v1538 = vpop.f32.mrf.mxu0
        %v1539 = vadd.f32 %v1378, %v1538
        %v1540 = vpop.f32.mrf.mxu0
        %1541 = vmatprep.mubr.bf16.mxu0 0
        %1542 = vmatmul.mubr.bf16.gmra.mxu0 %v1007
        %v1543 = vpop.f32.mrf.mxu0
        %v1544 = vadd.f32 %v1383, %v1543
        %v1545 = vpop.f32.mrf.mxu0
        %v1546 = vpop.f32.mrf.mxu0
        %v1547 = vadd.f32 %v1386, %v1546
        %v1548 = vpop.f32.mrf.mxu0
        %1549 = vmatprep.mubr.bf16.mxu0 0
        %1550 = vmatmul.mubr.bf16.gmra.mxu0 %v1008
        %v1551 = vpop.f32.mrf.mxu0
        %v1552 = vadd.f32 %v1391, %v1551
        %v1553 = vpop.f32.mrf.mxu0
        %v1554 = vpop.f32.mrf.mxu0
        %v1555 = vadd.f32 %v1394, %v1554
        %v1556 = vpop.f32.mrf.mxu0
        %1557 = vmatprep.mubr.bf16.mxu0 0
        %1558 = vmatmul.mubr.bf16.gmra.mxu0 %v1009
        %v1559 = vpop.f32.mrf.mxu0
        %v1560 = vadd.f32 %v1399, %v1559
        %v1561 = vpop.f32.mrf.mxu0
        %v1562 = vpop.f32.mrf.mxu0
        %v1563 = vadd.f32 %v1402, %v1562
        %v1564 = vpop.f32.mrf.mxu0
        %1565 = vmatprep.mubr.bf16.mxu0 0
        %1566 = vmatmul.mubr.bf16.gmra.mxu0 %v1010
        %v1567 = vpop.f32.mrf.mxu0
        %v1568 = vadd.f32 %v1407, %v1567
        %v1569 = vpop.f32.mrf.mxu0
        %v1570 = vpop.f32.mrf.mxu0
        %v1571 = vadd.f32 %v1410, %v1570
        %v1572 = vpop.f32.mrf.mxu0
        %1573 = vdwg.mxu0
        %v1622 = vunpack.c.l.b16 %v1011
        %v1623 = vunpack.c.l.b16 %v1012
        %v1624 = vunpack.c.l.b16 %v1013
        %v1625 = vunpack.c.l.b16 %v1014
        %v1626 = vunpack.c.l.b16 %v1015
        %v1627 = vunpack.c.l.b16 %v1016
        %v1628 = vunpack.c.l.b16 %v1017
        %v1629 = vunpack.c.l.b16 %v1018
        %v1630 = vunpack.c.l.b16 %v1019
        %v1631 = vunpack.c.l.b16 %v1020
        %v1632 = vunpack.c.l.b16 %v1021
        %v1633 = vunpack.c.l.b16 %v1022
        %v1634 = vunpack.c.l.b16 %v1023
        %v1635 = vunpack.c.l.b16 %v1024
        %v1636 = vunpack.c.l.b16 %v1025
        %v1637 = vunpack.c.l.b16 %v1026
        %v1638 = vunpack.c.l.b16 %v1027
        %v1639 = vunpack.c.l.b16 %v1028
        %v1640 = vunpack.c.l.b16 %v1029
        %v1641 = vunpack.c.l.b16 %v1030
        %v1642 = vunpack.c.l.b16 %v1031
        %v1643 = vunpack.c.l.b16 %v1032
        %v1644 = vunpack.c.l.b16 %v1033
        %v1645 = vunpack.c.l.b16 %v1034
        %v1646 = vunpack.c.l.b16 %v1035
        %v1647 = vunpack.c.l.b16 %v1036
        %v1648 = vunpack.c.l.b16 %v1037
        %v1649 = vunpack.c.l.b16 %v1038
        %v1650 = vunpack.c.l.b16 %v1039
        %v1651 = vunpack.c.l.b16 %v1040
        %v1652 = vunpack.c.l.b16 %v1041
        %v1653 = vunpack.c.l.b16 %v1042
        %v1654 = vunpack.c.l.b16 %v1043
        %v1655 = vunpack.c.l.b16 %v1044
        %v1656 = vunpack.c.l.b16 %v1045
        %v1657 = vunpack.c.l.b16 %v1046
        %v1658 = vunpack.c.l.b16 %v1047
        %v1659 = vunpack.c.l.b16 %v1048
        %v1660 = vunpack.c.l.b16 %v1049
        %v1661 = vunpack.c.l.b16 %v1050
        %v1662 = vunpack.c.l.b16 %v1051
        %v1663 = vunpack.c.l.b16 %v1052
        %v1664 = vunpack.c.l.b16 %v1053
        %v1665 = vunpack.c.l.b16 %v1054
        %v1666 = vunpack.c.l.b16 %v1055
        %v1667 = vunpack.c.l.b16 %v1056
        %v1668 = vunpack.c.l.b16 %v1057
        %v1669 = vunpack.c.l.b16 %v1058
        %v1670 = vpack.c.b16 %v1623, %v1622
        %v1671 = vpack.c.b16 %v1625, %v1624
        %v1672 = vpack.c.b16 %v1627, %v1626
        %v1673 = vpack.c.b16 %v1629, %v1628
        %v1674 = vpack.c.b16 %v1631, %v1630
        %v1675 = vpack.c.b16 %v1633, %v1632
        %v1676 = vpack.c.b16 %v1635, %v1634
        %v1677 = vpack.c.b16 %v1637, %v1636
        %v1678 = vpack.c.b16 %v1639, %v1638
        %v1679 = vpack.c.b16 %v1641, %v1640
        %v1680 = vpack.c.b16 %v1643, %v1642
        %v1681 = vpack.c.b16 %v1645, %v1644
        %v1682 = vpack.c.b16 %v1647, %v1646
        %v1683 = vpack.c.b16 %v1649, %v1648
        %v1684 = vpack.c.b16 %v1651, %v1650
        %v1685 = vpack.c.b16 %v1653, %v1652
        %v1686 = vpack.c.b16 %v1655, %v1654
        %v1687 = vpack.c.b16 %v1657, %v1656
        %v1688 = vpack.c.b16 %v1659, %v1658
        %v1689 = vpack.c.b16 %v1661, %v1660
        %v1690 = vpack.c.b16 %v1663, %v1662
        %v1691 = vpack.c.b16 %v1665, %v1664
        %v1692 = vpack.c.b16 %v1667, %v1666
        %v1693 = vpack.c.b16 %v1669, %v1668
        %1718 = vmatprep.subr.bf16.mxu0 0
        %1719 = vmatpush1.bf16.msra.mxu0 %v1677
        %1720 = vmatprep.subr.bf16.mxu0 0
        %1721 = vmatpush1.bf16.msra.mxu0 %v1676
        %1722 = vmatprep.subr.bf16.mxu0 0
        %1723 = vmatpush1.bf16.msra.mxu0 %v1675
        %1724 = vmatprep.subr.bf16.mxu0 0
        %1725 = vmatpush1.bf16.msra.mxu0 %v1674
        %1726 = vmatprep.subr.bf16.mxu0 0
        %1727 = vmatpush1.bf16.msra.mxu0 %v1673
        %1728 = vmatprep.subr.bf16.mxu0 0
        %1729 = vmatpush1.bf16.msra.mxu0 %v1672
        %1730 = vmatprep.subr.bf16.mxu0 0
        %1731 = vmatpush1.bf16.msra.mxu0 %v1671
        %1732 = vmatprep.subr.bf16.mxu0 0
        %1733 = vmatpush1.bf16.msra.mxu0 %v1670
        %1734 = vmatprep.subr.bf16.mxu0 0
        %1735 = vmatpush2.bf16.msra.mxu0 %v1685
        %1736 = vmatprep.subr.bf16.mxu0 0
        %1737 = vmatpush2.bf16.msra.mxu0 %v1684
        %1738 = vmatprep.subr.bf16.mxu0 0
        %1739 = vmatpush2.bf16.msra.mxu0 %v1683
        %1740 = vmatprep.subr.bf16.mxu0 0
        %1741 = vmatpush2.bf16.msra.mxu0 %v1682
        %1742 = vmatprep.subr.bf16.mxu0 0
        %1743 = vmatpush2.bf16.msra.mxu0 %v1681
        %1744 = vmatprep.subr.bf16.mxu0 0
        %1745 = vmatpush2.bf16.msra.mxu0 %v1680
        %1746 = vmatprep.subr.bf16.mxu0 0
        %1747 = vmatpush2.bf16.msra.mxu0 %v1679
        %1748 = vmatprep.subr.bf16.mxu0 0
        %1749 = vmatpush2.bf16.msra.mxu0 %v1678
        %1750 = vmatprep.mubr.bf16.mxu0 0
        %1751 = vmatmul.mubr.bf16.gmra.mxu0 0
        %v1752 = vpop.f32.mrf.mxu0
        %v1753 = vadd.f32 %v1448, %v1752
        %v1754 = vpop.f32.mrf.mxu0
        %v1755 = vpop.f32.mrf.mxu0
        %v1756 = vadd.f32 %v1451, %v1755
        %v1757 = vpop.f32.mrf.mxu0
        %1758 = vmatprep.mubr.bf16.mxu0 %v979
        %1759 = vmatmul.mubr.bf16.gmra.mxu0 %v963
        %v1760 = vpop.f32.mrf.mxu0
        %v1761 = vadd.f32 %v1456, %v1760
        %v1762 = vpop.f32.mrf.mxu0
        %v1763 = vpop.f32.mrf.mxu0
        %v1764 = vadd.f32 %v1459, %v1763
        %v1765 = vpop.f32.mrf.mxu0
        %1766 = vmatprep.mubr.bf16.mxu0 %v980
        %1767 = vmatmul.mubr.bf16.gmra.mxu0 %v964
        %v1768 = vpop.f32.mrf.mxu0
        %v1769 = vadd.f32 %v1464, %v1768
        %v1770 = vpop.f32.mrf.mxu0
        %v1771 = vpop.f32.mrf.mxu0
        %v1772 = vadd.f32 %v1467, %v1771
        %v1773 = vpop.f32.mrf.mxu0
        %1774 = vmatprep.mubr.bf16.mxu0 %v981
        %1775 = vmatmul.mubr.bf16.gmra.mxu0 %v965
        %v1776 = vpop.f32.mrf.mxu0
        %v1777 = vadd.f32 %v1472, %v1776
        %v1778 = vpop.f32.mrf.mxu0
        %v1779 = vpop.f32.mrf.mxu0
        %v1780 = vadd.f32 %v1475, %v1779
        %v1781 = vpop.f32.mrf.mxu0
        %1782 = vmatprep.mubr.bf16.mxu0 %v982
        %1783 = vmatmul.mubr.bf16.gmra.mxu0 %v966
        %v1784 = vpop.f32.mrf.mxu0
        %v1785 = vadd.f32 %v1480, %v1784
        %v1786 = vpop.f32.mrf.mxu0
        %v1787 = vpop.f32.mrf.mxu0
        %v1788 = vadd.f32 %v1483, %v1787
        %v1789 = vpop.f32.mrf.mxu0
        %1790 = vmatprep.mubr.bf16.mxu0 %v983
        %1791 = vmatmul.mubr.bf16.gmra.mxu0 %v967
        %v1792 = vpop.f32.mrf.mxu0
        %v1793 = vadd.f32 %v1488, %v1792
        %v1794 = vpop.f32.mrf.mxu0
        %v1795 = vpop.f32.mrf.mxu0
        %v1796 = vadd.f32 %v1491, %v1795
        %v1797 = vpop.f32.mrf.mxu0
        %1798 = vmatprep.mubr.bf16.mxu0 %v984
        %1799 = vmatmul.mubr.bf16.gmra.mxu0 %v968
        %v1800 = vpop.f32.mrf.mxu0
        %v1801 = vadd.f32 %v1496, %v1800
        %v1802 = vpop.f32.mrf.mxu0
        %v1803 = vpop.f32.mrf.mxu0
        %v1804 = vadd.f32 %v1499, %v1803
        %v1805 = vpop.f32.mrf.mxu0
        %1806 = vmatprep.mubr.bf16.mxu0 %v985
        %1807 = vmatmul.mubr.bf16.gmra.mxu0 %v969
        %v1808 = vpop.f32.mrf.mxu0
        %v1809 = vadd.f32 %v1504, %v1808
        %v1810 = vpop.f32.mrf.mxu0
        %v1811 = vpop.f32.mrf.mxu0
        %v1812 = vadd.f32 %v1507, %v1811
        %v1813 = vpop.f32.mrf.mxu0
        %1814 = vmatprep.mubr.bf16.mxu0 %v986
        %1815 = vmatmul.mubr.bf16.gmra.mxu0 %v970
        %v1816 = vpop.f32.mrf.mxu0
        %v1817 = vadd.f32 %v1512, %v1816
        %v1818 = vpop.f32.mrf.mxu0
        %v1819 = vpop.f32.mrf.mxu0
        %v1820 = vadd.f32 %v1515, %v1819
        %v1821 = vpop.f32.mrf.mxu0
        %1822 = vmatprep.mubr.bf16.mxu0 %v987
        %1823 = vmatmul.mubr.bf16.gmra.mxu0 %v971
        %v1824 = vpop.f32.mrf.mxu0
        %v1825 = vadd.f32 %v1520, %v1824
        %v1826 = vpop.f32.mrf.mxu0
        %v1827 = vpop.f32.mrf.mxu0
        %v1828 = vadd.f32 %v1523, %v1827
        %v1829 = vpop.f32.mrf.mxu0
        %1830 = vmatprep.mubr.bf16.mxu0 %v988
        %1831 = vmatmul.mubr.bf16.gmra.mxu0 %v972
        %v1832 = vpop.f32.mrf.mxu0
        %v1833 = vadd.f32 %v1528, %v1832
        %v1834 = vpop.f32.mrf.mxu0
        %v1835 = vpop.f32.mrf.mxu0
        %v1836 = vadd.f32 %v1531, %v1835
        %v1837 = vpop.f32.mrf.mxu0
        %1838 = vmatprep.mubr.bf16.mxu0 %v989
        %1839 = vmatmul.mubr.bf16.gmra.mxu0 %v973
        %v1840 = vpop.f32.mrf.mxu0
        %v1841 = vadd.f32 %v1536, %v1840
        %v1842 = vpop.f32.mrf.mxu0
        %v1843 = vpop.f32.mrf.mxu0
        %v1844 = vadd.f32 %v1539, %v1843
        %v1845 = vpop.f32.mrf.mxu0
        %1846 = vmatprep.mubr.bf16.mxu0 %v990
        %1847 = vmatmul.mubr.bf16.gmra.mxu0 %v974
        %v1848 = vpop.f32.mrf.mxu0
        %v1849 = vadd.f32 %v1544, %v1848
        %v1850 = vpop.f32.mrf.mxu0
        %v1851 = vpop.f32.mrf.mxu0
        %v1852 = vadd.f32 %v1547, %v1851
        %v1853 = vpop.f32.mrf.mxu0
        %1854 = vmatprep.mubr.bf16.mxu0 %v991
        %1855 = vmatmul.mubr.bf16.gmra.mxu0 %v975
        %v1856 = vpop.f32.mrf.mxu0
        %v1857 = vadd.f32 %v1552, %v1856
        %v1858 = vpop.f32.mrf.mxu0
        %v1859 = vpop.f32.mrf.mxu0
        %v1860 = vadd.f32 %v1555, %v1859
        %v1861 = vpop.f32.mrf.mxu0
        %1862 = vmatprep.mubr.bf16.mxu0 %v992
        %1863 = vmatmul.mubr.bf16.gmra.mxu0 %v976
        %v1864 = vpop.f32.mrf.mxu0
        %v1865 = vadd.f32 %v1560, %v1864
        %v1866 = vpop.f32.mrf.mxu0
        %v1867 = vpop.f32.mrf.mxu0
        %v1868 = vadd.f32 %v1563, %v1867
        %v1869 = vpop.f32.mrf.mxu0
        %1870 = vmatprep.mubr.bf16.mxu0 %v993
        %1871 = vmatmul.mubr.bf16.gmra.mxu0 %v977
        %v1872 = vpop.f32.mrf.mxu0
        %v1873 = vadd.f32 %v1568, %v1872
        %v1874 = vpop.f32.mrf.mxu0
        %v1875 = vpop.f32.mrf.mxu0
        %v1876 = vadd.f32 %v1571, %v1875
        %v1877 = vpop.f32.mrf.mxu0
        %1878 = vdwg.mxu0
        %1879 = vmatprep.subr.bf16.mxu0 0
        %1880 = vmatpush1.bf16.msra.mxu0 %v1693
        %1881 = vmatprep.subr.bf16.mxu0 0
        %1882 = vmatpush1.bf16.msra.mxu0 %v1692
        %1883 = vmatprep.subr.bf16.mxu0 0
        %1884 = vmatpush1.bf16.msra.mxu0 %v1691
        %1885 = vmatprep.subr.bf16.mxu0 0
        %1886 = vmatpush1.bf16.msra.mxu0 %v1690
        %1887 = vmatprep.subr.bf16.mxu0 0
        %1888 = vmatpush1.bf16.msra.mxu0 %v1689
        %1889 = vmatprep.subr.bf16.mxu0 0
        %1890 = vmatpush1.bf16.msra.mxu0 %v1688
        %1891 = vmatprep.subr.bf16.mxu0 0
        %1892 = vmatpush1.bf16.msra.mxu0 %v1687
        %1893 = vmatprep.subr.bf16.mxu0 0
        %1894 = vmatpush1.bf16.msra.mxu0 %v1686
        %1895 = vmatprep.subr.bf16.mxu0 0
        %1896 = vmatpush2.bf16.msra.mxu0 0
        %1897 = vmatprep.subr.bf16.mxu0 0
        %1898 = vmatpush2.bf16.msra.mxu0 0
        %1899 = vmatprep.subr.bf16.mxu0 0
        %1900 = vmatpush2.bf16.msra.mxu0 0
        %1901 = vmatprep.subr.bf16.mxu0 0
        %1902 = vmatpush2.bf16.msra.mxu0 0
        %1903 = vmatprep.subr.bf16.mxu0 0
        %1904 = vmatpush2.bf16.msra.mxu0 0
        %1905 = vmatprep.subr.bf16.mxu0 0
        %1906 = vmatpush2.bf16.msra.mxu0 0
        %1907 = vmatprep.subr.bf16.mxu0 0
        %1908 = vmatpush2.bf16.msra.mxu0 0
        %1909 = vmatprep.subr.bf16.mxu0 0
        %1910 = vmatpush2.bf16.msra.mxu0 0
        %1911 = vmatprep.mubr.bf16.mxu0 0
        %1912 = vmatmul.mubr.bf16.gmra.mxu0 0
        %v1913 = vpop.f32.mrf.mxu0
        %v1914 = vadd.f32 %v1753, %v1913
        %v1915 = vpop.f32.mrf.mxu0
        %v1916 = vpop.f32.mrf.mxu0
        %v1917 = vadd.f32 %v1756, %v1916
        %v1918 = vpop.f32.mrf.mxu0
        %1919 = vmatprep.mubr.bf16.mxu0 0
        %1920 = vmatmul.mubr.bf16.gmra.mxu0 %v995
        %v1921 = vpop.f32.mrf.mxu0
        %v1922 = vadd.f32 %v1761, %v1921
        %v1923 = vpop.f32.mrf.mxu0
        %v1924 = vpop.f32.mrf.mxu0
        %v1925 = vadd.f32 %v1764, %v1924
        %v1926 = vpop.f32.mrf.mxu0
        %1927 = vmatprep.mubr.bf16.mxu0 0
        %1928 = vmatmul.mubr.bf16.gmra.mxu0 %v996
        %v1929 = vpop.f32.mrf.mxu0
        %v1930 = vadd.f32 %v1769, %v1929
        %v1931 = vpop.f32.mrf.mxu0
        %v1932 = vpop.f32.mrf.mxu0
        %v1933 = vadd.f32 %v1772, %v1932
        %v1934 = vpop.f32.mrf.mxu0
        %1935 = vmatprep.mubr.bf16.mxu0 0
        %1936 = vmatmul.mubr.bf16.gmra.mxu0 %v997
        %v1937 = vpop.f32.mrf.mxu0
        %v1938 = vadd.f32 %v1777, %v1937
        %v1939 = vpop.f32.mrf.mxu0
        %v1940 = vpop.f32.mrf.mxu0
        %v1941 = vadd.f32 %v1780, %v1940
        %v1942 = vpop.f32.mrf.mxu0
        %1943 = vmatprep.mubr.bf16.mxu0 0
        %1944 = vmatmul.mubr.bf16.gmra.mxu0 %v998
        %v1945 = vpop.f32.mrf.mxu0
        %v1946 = vadd.f32 %v1785, %v1945
        %v1947 = vpop.f32.mrf.mxu0
        %v1948 = vpop.f32.mrf.mxu0
        %v1949 = vadd.f32 %v1788, %v1948
        %v1950 = vpop.f32.mrf.mxu0
        %1951 = vmatprep.mubr.bf16.mxu0 0
        %1952 = vmatmul.mubr.bf16.gmra.mxu0 %v999
        %v1953 = vpop.f32.mrf.mxu0
        %v1954 = vadd.f32 %v1793, %v1953
        %v1955 = vpop.f32.mrf.mxu0
        %v1956 = vpop.f32.mrf.mxu0
        %v1957 = vadd.f32 %v1796, %v1956
        %v1958 = vpop.f32.mrf.mxu0
        %1959 = vmatprep.mubr.bf16.mxu0 0
        %1960 = vmatmul.mubr.bf16.gmra.mxu0 %v1000
        %v1961 = vpop.f32.mrf.mxu0
        %v1962 = vadd.f32 %v1801, %v1961
        %v1963 = vpop.f32.mrf.mxu0
        %v1964 = vpop.f32.mrf.mxu0
        %v1965 = vadd.f32 %v1804, %v1964
        %v1966 = vpop.f32.mrf.mxu0
        %1967 = vmatprep.mubr.bf16.mxu0 0
        %1968 = vmatmul.mubr.bf16.gmra.mxu0 %v1001
        %v1969 = vpop.f32.mrf.mxu0
        %v1970 = vadd.f32 %v1809, %v1969
        %v1971 = vpop.f32.mrf.mxu0
        %v1972 = vpop.f32.mrf.mxu0
        %v1973 = vadd.f32 %v1812, %v1972
        %v1974 = vpop.f32.mrf.mxu0
        %1975 = vmatprep.mubr.bf16.mxu0 0
        %1976 = vmatmul.mubr.bf16.gmra.mxu0 %v1002
        %v1977 = vpop.f32.mrf.mxu0
        %v1978 = vadd.f32 %v1817, %v1977
        %v1979 = vpop.f32.mrf.mxu0
        %v1980 = vpop.f32.mrf.mxu0
        %v1981 = vadd.f32 %v1820, %v1980
        %v1982 = vpop.f32.mrf.mxu0
        %1983 = vmatprep.mubr.bf16.mxu0 0
        %1984 = vmatmul.mubr.bf16.gmra.mxu0 %v1003
        %v1985 = vpop.f32.mrf.mxu0
        %v1986 = vadd.f32 %v1825, %v1985
        %v1987 = vpop.f32.mrf.mxu0
        %v1988 = vpop.f32.mrf.mxu0
        %v1989 = vadd.f32 %v1828, %v1988
        %v1990 = vpop.f32.mrf.mxu0
        %1991 = vmatprep.mubr.bf16.mxu0 0
        %1992 = vmatmul.mubr.bf16.gmra.mxu0 %v1004
        %v1993 = vpop.f32.mrf.mxu0
        %v1994 = vadd.f32 %v1833, %v1993
        %v1995 = vpop.f32.mrf.mxu0
        %v1996 = vpop.f32.mrf.mxu0
        %v1997 = vadd.f32 %v1836, %v1996
        %v1998 = vpop.f32.mrf.mxu0
        %1999 = vmatprep.mubr.bf16.mxu0 0
        %2000 = vmatmul.mubr.bf16.gmra.mxu0 %v1005
        %v2001 = vpop.f32.mrf.mxu0
        %v2002 = vadd.f32 %v1841, %v2001
        %v2003 = vpop.f32.mrf.mxu0
        %v2004 = vpop.f32.mrf.mxu0
        %v2005 = vadd.f32 %v1844, %v2004
        %v2006 = vpop.f32.mrf.mxu0
        %2007 = vmatprep.mubr.bf16.mxu0 0
        %2008 = vmatmul.mubr.bf16.gmra.mxu0 %v1006
        %v2009 = vpop.f32.mrf.mxu0
        %v2010 = vadd.f32 %v1849, %v2009
        %v2011 = vpop.f32.mrf.mxu0
        %v2012 = vpop.f32.mrf.mxu0
        %v2013 = vadd.f32 %v1852, %v2012
        %v2014 = vpop.f32.mrf.mxu0
        %2015 = vmatprep.mubr.bf16.mxu0 0
        %2016 = vmatmul.mubr.bf16.gmra.mxu0 %v1007
        %v2017 = vpop.f32.mrf.mxu0
        %v2018 = vadd.f32 %v1857, %v2017
        %v2019 = vpop.f32.mrf.mxu0
        %v2020 = vpop.f32.mrf.mxu0
        %v2021 = vadd.f32 %v1860, %v2020
        %v2022 = vpop.f32.mrf.mxu0
        %2023 = vmatprep.mubr.bf16.mxu0 0
        %2024 = vmatmul.mubr.bf16.gmra.mxu0 %v1008
        %v2025 = vpop.f32.mrf.mxu0
        %v2026 = vadd.f32 %v1865, %v2025
        %v2027 = vpop.f32.mrf.mxu0
        %v2028 = vpop.f32.mrf.mxu0
        %v2029 = vadd.f32 %v1868, %v2028
        %v2030 = vpop.f32.mrf.mxu0
        %2031 = vmatprep.mubr.bf16.mxu0 0
        %2032 = vmatmul.mubr.bf16.gmra.mxu0 %v1009
        %v2033 = vpop.f32.mrf.mxu0
        %v2034 = vadd.f32 %v1873, %v2033
        %v2035 = vpop.f32.mrf.mxu0
        %v2036 = vpop.f32.mrf.mxu0
        %v2037 = vadd.f32 %v1876, %v2036
        %v2038 = vpop.f32.mrf.mxu0
        %2039 = vdwg.mxu0
        %s2040 = scalar_lea.vmem %s1, 384
        %v2041 = vld [vmem:[%s2040] sm:$0xf]
        %v2042 = vld [vmem:[%s2040 + $0x4] sm:$0xf]
        %v2043 = vld [vmem:[%s2040 + $0x8] sm:$0xf]
        %v2044 = vld [vmem:[%s2040 + $0xc] sm:$0xf]
        %v2045 = vld [vmem:[%s2040 + $0x10] sm:$0xf]
        %v2046 = vld [vmem:[%s2040 + $0x14] sm:$0xf]
        %v2047 = vld [vmem:[%s2040 + $0x18] sm:$0xf]
        %v2048 = vld [vmem:[%s2040 + $0x1c] sm:$0xf]
        %v2049 = vld [vmem:[%s2040 + $0x20] sm:$0xf]
        %v2050 = vld [vmem:[%s2040 + $0x24] sm:$0xf]
        %v2051 = vld [vmem:[%s2040 + $0x28] sm:$0xf]
        %v2052 = vld [vmem:[%s2040 + $0x2c] sm:$0xf]
        %v2053 = vld [vmem:[%s2040 + $0x30] sm:$0xf]
        %v2054 = vld [vmem:[%s2040 + $0x34] sm:$0xf]
        %v2055 = vld [vmem:[%s2040 + $0x38] sm:$0xf]
        %v2056 = vld [vmem:[%s2040 + $0x3c] sm:$0xf]
        %v2057 = vld [vmem:[%s2040 + $0x40] sm:$0xf]
        %v2058 = vld [vmem:[%s2040 + $0x44] sm:$0xf]
        %v2059 = vld [vmem:[%s2040 + $0x48] sm:$0xf]
        %v2060 = vld [vmem:[%s2040 + $0x4c] sm:$0xf]
        %v2061 = vld [vmem:[%s2040 + $0x50] sm:$0xf]
        %v2062 = vld [vmem:[%s2040 + $0x54] sm:$0xf]
        %v2063 = vld [vmem:[%s2040 + $0x58] sm:$0xf]
        %v2064 = vld [vmem:[%s2040 + $0x5c] sm:$0xf]
        %v2065 = vld [vmem:[%s2040 + $0x60] sm:$0xf]
        %v2066 = vld [vmem:[%s2040 + $0x64] sm:$0xf]
        %v2067 = vld [vmem:[%s2040 + $0x68] sm:$0xf]
        %v2068 = vld [vmem:[%s2040 + $0x6c] sm:$0xf]
        %v2069 = vld [vmem:[%s2040 + $0x70] sm:$0xf]
        %v2070 = vld [vmem:[%s2040 + $0x74] sm:$0xf]
        %v2071 = vld [vmem:[%s2040 + $0x78] sm:$0xf]
        %v2072 = vld [vmem:[%s2040 + $0x7c] sm:$0xf]
        %v2073 = vld [vmem:[%s2040 + $0x80] sm:$0xf]
        %v2074 = vld [vmem:[%s2040 + $0x84] sm:$0xf]
        %v2075 = vld [vmem:[%s2040 + $0x88] sm:$0xf]
        %v2076 = vld [vmem:[%s2040 + $0x8c] sm:$0xf]
        %v2077 = vld [vmem:[%s2040 + $0x90] sm:$0xf]
        %v2078 = vld [vmem:[%s2040 + $0x94] sm:$0xf]
        %v2079 = vld [vmem:[%s2040 + $0x98] sm:$0xf]
        %v2080 = vld [vmem:[%s2040 + $0x9c] sm:$0xf]
        %v2081 = vld [vmem:[%s2040 + $0xa0] sm:$0xf]
        %v2082 = vld [vmem:[%s2040 + $0xa4] sm:$0xf]
        %v2083 = vld [vmem:[%s2040 + $0xa8] sm:$0xf]
        %v2084 = vld [vmem:[%s2040 + $0xac] sm:$0xf]
        %v2085 = vld [vmem:[%s2040 + $0xb0] sm:$0xf]
        %v2086 = vld [vmem:[%s2040 + $0xb4] sm:$0xf]
        %v2087 = vld [vmem:[%s2040 + $0xb8] sm:$0xf]
        %v2088 = vld [vmem:[%s2040 + $0xbc] sm:$0xf]
        %v2137 = vunpack.c.l.b16 %v2041
        %v2138 = vunpack.c.l.b16 %v2042
        %v2139 = vunpack.c.l.b16 %v2043
        %v2140 = vunpack.c.l.b16 %v2044
        %v2141 = vunpack.c.l.b16 %v2045
        %v2142 = vunpack.c.l.b16 %v2046
        %v2143 = vunpack.c.l.b16 %v2047
        %v2144 = vunpack.c.l.b16 %v2048
        %v2145 = vunpack.c.l.b16 %v2049
        %v2146 = vunpack.c.l.b16 %v2050
        %v2147 = vunpack.c.l.b16 %v2051
        %v2148 = vunpack.c.l.b16 %v2052
        %v2149 = vunpack.c.l.b16 %v2053
        %v2150 = vunpack.c.l.b16 %v2054
        %v2151 = vunpack.c.l.b16 %v2055
        %v2152 = vunpack.c.l.b16 %v2056
        %v2153 = vunpack.c.l.b16 %v2057
        %v2154 = vunpack.c.l.b16 %v2058
        %v2155 = vunpack.c.l.b16 %v2059
        %v2156 = vunpack.c.l.b16 %v2060
        %v2157 = vunpack.c.l.b16 %v2061
        %v2158 = vunpack.c.l.b16 %v2062
        %v2159 = vunpack.c.l.b16 %v2063
        %v2160 = vunpack.c.l.b16 %v2064
        %v2161 = vunpack.c.l.b16 %v2065
        %v2162 = vunpack.c.l.b16 %v2066
        %v2163 = vunpack.c.l.b16 %v2067
        %v2164 = vunpack.c.l.b16 %v2068
        %v2165 = vunpack.c.l.b16 %v2069
        %v2166 = vunpack.c.l.b16 %v2070
        %v2167 = vunpack.c.l.b16 %v2071
        %v2168 = vunpack.c.l.b16 %v2072
        %v2169 = vunpack.c.l.b16 %v2073
        %v2170 = vunpack.c.l.b16 %v2074
        %v2171 = vunpack.c.l.b16 %v2075
        %v2172 = vunpack.c.l.b16 %v2076
        %v2173 = vunpack.c.l.b16 %v2077
        %v2174 = vunpack.c.l.b16 %v2078
        %v2175 = vunpack.c.l.b16 %v2079
        %v2176 = vunpack.c.l.b16 %v2080
        %v2177 = vunpack.c.l.b16 %v2081
        %v2178 = vunpack.c.l.b16 %v2082
        %v2179 = vunpack.c.l.b16 %v2083
        %v2180 = vunpack.c.l.b16 %v2084
        %v2181 = vunpack.c.l.b16 %v2085
        %v2182 = vunpack.c.l.b16 %v2086
        %v2183 = vunpack.c.l.b16 %v2087
        %v2184 = vunpack.c.l.b16 %v2088
        %v2185 = vpack.c.b16 %v2138, %v2137
        %v2186 = vpack.c.b16 %v2140, %v2139
        %v2187 = vpack.c.b16 %v2142, %v2141
        %v2188 = vpack.c.b16 %v2144, %v2143
        %v2189 = vpack.c.b16 %v2146, %v2145
        %v2190 = vpack.c.b16 %v2148, %v2147
        %v2191 = vpack.c.b16 %v2150, %v2149
        %v2192 = vpack.c.b16 %v2152, %v2151
        %v2193 = vpack.c.b16 %v2154, %v2153
        %v2194 = vpack.c.b16 %v2156, %v2155
        %v2195 = vpack.c.b16 %v2158, %v2157
        %v2196 = vpack.c.b16 %v2160, %v2159
        %v2197 = vpack.c.b16 %v2162, %v2161
        %v2198 = vpack.c.b16 %v2164, %v2163
        %v2199 = vpack.c.b16 %v2166, %v2165
        %v2200 = vpack.c.b16 %v2168, %v2167
        %v2201 = vpack.c.b16 %v2170, %v2169
        %v2202 = vpack.c.b16 %v2172, %v2171
        %v2203 = vpack.c.b16 %v2174, %v2173
        %v2204 = vpack.c.b16 %v2176, %v2175
        %v2205 = vpack.c.b16 %v2178, %v2177
        %v2206 = vpack.c.b16 %v2180, %v2179
        %v2207 = vpack.c.b16 %v2182, %v2181
        %v2208 = vpack.c.b16 %v2184, %v2183
        %2233 = vmatprep.subr.bf16.mxu0 0
        %2234 = vmatpush1.bf16.msra.mxu0 %v2192
        %2235 = vmatprep.subr.bf16.mxu0 0
        %2236 = vmatpush1.bf16.msra.mxu0 %v2191
        %2237 = vmatprep.subr.bf16.mxu0 0
        %2238 = vmatpush1.bf16.msra.mxu0 %v2190
        %2239 = vmatprep.subr.bf16.mxu0 0
        %2240 = vmatpush1.bf16.msra.mxu0 %v2189
        %2241 = vmatprep.subr.bf16.mxu0 0
        %2242 = vmatpush1.bf16.msra.mxu0 %v2188
        %2243 = vmatprep.subr.bf16.mxu0 0
        %2244 = vmatpush1.bf16.msra.mxu0 %v2187
        %2245 = vmatprep.subr.bf16.mxu0 0
        %2246 = vmatpush1.bf16.msra.mxu0 %v2186
        %2247 = vmatprep.subr.bf16.mxu0 0
        %2248 = vmatpush1.bf16.msra.mxu0 %v2185
        %2249 = vmatprep.subr.bf16.mxu0 0
        %2250 = vmatpush2.bf16.msra.mxu0 %v2200
        %2251 = vmatprep.subr.bf16.mxu0 0
        %2252 = vmatpush2.bf16.msra.mxu0 %v2199
        %2253 = vmatprep.subr.bf16.mxu0 0
        %2254 = vmatpush2.bf16.msra.mxu0 %v2198
        %2255 = vmatprep.subr.bf16.mxu0 0
        %2256 = vmatpush2.bf16.msra.mxu0 %v2197
        %2257 = vmatprep.subr.bf16.mxu0 0
        %2258 = vmatpush2.bf16.msra.mxu0 %v2196
        %2259 = vmatprep.subr.bf16.mxu0 0
        %2260 = vmatpush2.bf16.msra.mxu0 %v2195
        %2261 = vmatprep.subr.bf16.mxu0 0
        %2262 = vmatpush2.bf16.msra.mxu0 %v2194
        %2263 = vmatprep.subr.bf16.mxu0 0
        %2264 = vmatpush2.bf16.msra.mxu0 %v2193
        %2265 = vmatprep.mubr.bf16.mxu0 %v980
        %2266 = vmatmul.mubr.bf16.gmra.mxu0 %v964
        %v2267 = vpop.f32.mrf.mxu0
        %v2268 = vadd.f32 0.0, %v2267
        %v2269 = vpop.f32.mrf.mxu0
        %v2270 = vpop.f32.mrf.mxu0
        %v2271 = vadd.f32 0.0, %v2270
        %v2272 = vpop.f32.mrf.mxu0
        %2273 = vmatprep.mubr.bf16.mxu0 %v981
        %2274 = vmatmul.mubr.bf16.gmra.mxu0 %v965
        %v2275 = vpop.f32.mrf.mxu0
        %v2276 = vadd.f32 0.0, %v2275
        %v2277 = vpop.f32.mrf.mxu0
        %v2278 = vpop.f32.mrf.mxu0
        %v2279 = vadd.f32 0.0, %v2278
        %v2280 = vpop.f32.mrf.mxu0
        %2281 = vmatprep.mubr.bf16.mxu0 %v982
        %2282 = vmatmul.mubr.bf16.gmra.mxu0 %v966
        %v2283 = vpop.f32.mrf.mxu0
        %v2284 = vadd.f32 0.0, %v2283
        %v2285 = vpop.f32.mrf.mxu0
        %v2286 = vpop.f32.mrf.mxu0
        %v2287 = vadd.f32 0.0, %v2286
        %v2288 = vpop.f32.mrf.mxu0
        %2289 = vmatprep.mubr.bf16.mxu0 %v983
        %2290 = vmatmul.mubr.bf16.gmra.mxu0 %v967
        %v2291 = vpop.f32.mrf.mxu0
        %v2292 = vadd.f32 0.0, %v2291
        %v2293 = vpop.f32.mrf.mxu0
        %v2294 = vpop.f32.mrf.mxu0
        %v2295 = vadd.f32 0.0, %v2294
        %v2296 = vpop.f32.mrf.mxu0
        %2297 = vmatprep.mubr.bf16.mxu0 %v984
        %2298 = vmatmul.mubr.bf16.gmra.mxu0 %v968
        %v2299 = vpop.f32.mrf.mxu0
        %v2300 = vadd.f32 0.0, %v2299
        %v2301 = vpop.f32.mrf.mxu0
        %v2302 = vpop.f32.mrf.mxu0
        %v2303 = vadd.f32 0.0, %v2302
        %v2304 = vpop.f32.mrf.mxu0
        %2305 = vmatprep.mubr.bf16.mxu0 %v985
        %2306 = vmatmul.mubr.bf16.gmra.mxu0 %v969
        %v2307 = vpop.f32.mrf.mxu0
        %v2308 = vadd.f32 0.0, %v2307
        %v2309 = vpop.f32.mrf.mxu0
        %v2310 = vpop.f32.mrf.mxu0
        %v2311 = vadd.f32 0.0, %v2310
        %v2312 = vpop.f32.mrf.mxu0
        %2313 = vmatprep.mubr.bf16.mxu0 %v986
        %2314 = vmatmul.mubr.bf16.gmra.mxu0 %v970
        %v2315 = vpop.f32.mrf.mxu0
        %v2316 = vadd.f32 0.0, %v2315
        %v2317 = vpop.f32.mrf.mxu0
        %v2318 = vpop.f32.mrf.mxu0
        %v2319 = vadd.f32 0.0, %v2318
        %v2320 = vpop.f32.mrf.mxu0
        %2321 = vmatprep.mubr.bf16.mxu0 %v987
        %2322 = vmatmul.mubr.bf16.gmra.mxu0 %v971
        %v2323 = vpop.f32.mrf.mxu0
        %v2324 = vadd.f32 0.0, %v2323
        %v2325 = vpop.f32.mrf.mxu0
        %v2326 = vpop.f32.mrf.mxu0
        %v2327 = vadd.f32 0.0, %v2326
        %v2328 = vpop.f32.mrf.mxu0
        %2329 = vmatprep.mubr.bf16.mxu0 %v988
        %2330 = vmatmul.mubr.bf16.gmra.mxu0 %v972
        %v2331 = vpop.f32.mrf.mxu0
        %v2332 = vadd.f32 0.0, %v2331
        %v2333 = vpop.f32.mrf.mxu0
        %v2334 = vpop.f32.mrf.mxu0
        %v2335 = vadd.f32 0.0, %v2334
        %v2336 = vpop.f32.mrf.mxu0
        %2337 = vmatprep.mubr.bf16.mxu0 %v989
        %2338 = vmatmul.mubr.bf16.gmra.mxu0 %v973
        %v2339 = vpop.f32.mrf.mxu0
        %v2340 = vadd.f32 0.0, %v2339
        %v2341 = vpop.f32.mrf.mxu0
        %v2342 = vpop.f32.mrf.mxu0
        %v2343 = vadd.f32 0.0, %v2342
        %v2344 = vpop.f32.mrf.mxu0
        %2345 = vmatprep.mubr.bf16.mxu0 %v990
        %2346 = vmatmul.mubr.bf16.gmra.mxu0 %v974
        %v2347 = vpop.f32.mrf.mxu0
        %v2348 = vadd.f32 0.0, %v2347
        %v2349 = vpop.f32.mrf.mxu0
        %v2350 = vpop.f32.mrf.mxu0
        %v2351 = vadd.f32 0.0, %v2350
        %v2352 = vpop.f32.mrf.mxu0
        %2353 = vmatprep.mubr.bf16.mxu0 %v991
        %2354 = vmatmul.mubr.bf16.gmra.mxu0 %v975
        %v2355 = vpop.f32.mrf.mxu0
        %v2356 = vadd.f32 0.0, %v2355
        %v2357 = vpop.f32.mrf.mxu0
        %v2358 = vpop.f32.mrf.mxu0
        %v2359 = vadd.f32 0.0, %v2358
        %v2360 = vpop.f32.mrf.mxu0
        %2361 = vmatprep.mubr.bf16.mxu0 %v992
        %2362 = vmatmul.mubr.bf16.gmra.mxu0 %v976
        %v2363 = vpop.f32.mrf.mxu0
        %v2364 = vadd.f32 0.0, %v2363
        %v2365 = vpop.f32.mrf.mxu0
        %v2366 = vpop.f32.mrf.mxu0
        %v2367 = vadd.f32 0.0, %v2366
        %v2368 = vpop.f32.mrf.mxu0
        %2369 = vmatprep.mubr.bf16.mxu0 %v993
        %2370 = vmatmul.mubr.bf16.gmra.mxu0 %v977
        %v2371 = vpop.f32.mrf.mxu0
        %v2372 = vadd.f32 0.0, %v2371
        %v2373 = vpop.f32.mrf.mxu0
        %v2374 = vpop.f32.mrf.mxu0
        %v2375 = vadd.f32 0.0, %v2374
        %v2376 = vpop.f32.mrf.mxu0
        %2377 = vmatprep.mubr.bf16.mxu0 %v994
        %2378 = vmatmul.mubr.bf16.gmra.mxu0 %v978
        %v2379 = vpop.f32.mrf.mxu0
        %v2380 = vadd.f32 0.0, %v2379
        %v2381 = vpop.f32.mrf.mxu0
        %v2382 = vpop.f32.mrf.mxu0
        %v2383 = vadd.f32 0.0, %v2382
        %v2384 = vpop.f32.mrf.mxu0
        %2385 = vmatprep.mubr.bf16.mxu0 0
        %2386 = vmatmul.mubr.bf16.gmra.mxu0 0
        %v2387 = vpop.f32.mrf.mxu0
        %v2388 = vadd.f32 0.0, %v2387
        %v2389 = vpop.f32.mrf.mxu0
        %v2390 = vpop.f32.mrf.mxu0
        %v2391 = vadd.f32 0.0, %v2390
        %v2392 = vpop.f32.mrf.mxu0
        %2393 = vdwg.mxu0
        %2394 = vmatprep.subr.bf16.mxu0 0
        %2395 = vmatpush1.bf16.msra.mxu0 %v2208
        %2396 = vmatprep.subr.bf16.mxu0 0
        %2397 = vmatpush1.bf16.msra.mxu0 %v2207
        %2398 = vmatprep.subr.bf16.mxu0 0
        %2399 = vmatpush1.bf16.msra.mxu0 %v2206
        %2400 = vmatprep.subr.bf16.mxu0 0
        %2401 = vmatpush1.bf16.msra.mxu0 %v2205
        %2402 = vmatprep.subr.bf16.mxu0 0
        %2403 = vmatpush1.bf16.msra.mxu0 %v2204
        %2404 = vmatprep.subr.bf16.mxu0 0
        %2405 = vmatpush1.bf16.msra.mxu0 %v2203
        %2406 = vmatprep.subr.bf16.mxu0 0
        %2407 = vmatpush1.bf16.msra.mxu0 %v2202
        %2408 = vmatprep.subr.bf16.mxu0 0
        %2409 = vmatpush1.bf16.msra.mxu0 %v2201
        %2410 = vmatprep.subr.bf16.mxu0 0
        %2411 = vmatpush2.bf16.msra.mxu0 0
        %2412 = vmatprep.subr.bf16.mxu0 0
        %2413 = vmatpush2.bf16.msra.mxu0 0
        %2414 = vmatprep.subr.bf16.mxu0 0
        %2415 = vmatpush2.bf16.msra.mxu0 0
        %2416 = vmatprep.subr.bf16.mxu0 0
        %2417 = vmatpush2.bf16.msra.mxu0 0
        %2418 = vmatprep.subr.bf16.mxu0 0
        %2419 = vmatpush2.bf16.msra.mxu0 0
        %2420 = vmatprep.subr.bf16.mxu0 0
        %2421 = vmatpush2.bf16.msra.mxu0 0
        %2422 = vmatprep.subr.bf16.mxu0 0
        %2423 = vmatpush2.bf16.msra.mxu0 0
        %2424 = vmatprep.subr.bf16.mxu0 0
        %2425 = vmatpush2.bf16.msra.mxu0 0
        %2426 = vmatprep.mubr.bf16.mxu0 0
        %2427 = vmatmul.mubr.bf16.gmra.mxu0 %v996
        %v2428 = vpop.f32.mrf.mxu0
        %v2429 = vadd.f32 %v2268, %v2428
        %v2430 = vpop.f32.mrf.mxu0
        %v2431 = vpop.f32.mrf.mxu0
        %v2432 = vadd.f32 %v2271, %v2431
        %v2433 = vpop.f32.mrf.mxu0
        %2434 = vmatprep.mubr.bf16.mxu0 0
        %2435 = vmatmul.mubr.bf16.gmra.mxu0 %v997
        %v2436 = vpop.f32.mrf.mxu0
        %v2437 = vadd.f32 %v2276, %v2436
        %v2438 = vpop.f32.mrf.mxu0
        %v2439 = vpop.f32.mrf.mxu0
        %v2440 = vadd.f32 %v2279, %v2439
        %v2441 = vpop.f32.mrf.mxu0
        %2442 = vmatprep.mubr.bf16.mxu0 0
        %2443 = vmatmul.mubr.bf16.gmra.mxu0 %v998
        %v2444 = vpop.f32.mrf.mxu0
        %v2445 = vadd.f32 %v2284, %v2444
        %v2446 = vpop.f32.mrf.mxu0
        %v2447 = vpop.f32.mrf.mxu0
        %v2448 = vadd.f32 %v2287, %v2447
        %v2449 = vpop.f32.mrf.mxu0
        %2450 = vmatprep.mubr.bf16.mxu0 0
        %2451 = vmatmul.mubr.bf16.gmra.mxu0 %v999
        %v2452 = vpop.f32.mrf.mxu0
        %v2453 = vadd.f32 %v2292, %v2452
        %v2454 = vpop.f32.mrf.mxu0
        %v2455 = vpop.f32.mrf.mxu0
        %v2456 = vadd.f32 %v2295, %v2455
        %v2457 = vpop.f32.mrf.mxu0
        %2458 = vmatprep.mubr.bf16.mxu0 0
        %2459 = vmatmul.mubr.bf16.gmra.mxu0 %v1000
        %v2460 = vpop.f32.mrf.mxu0
        %v2461 = vadd.f32 %v2300, %v2460
        %v2462 = vpop.f32.mrf.mxu0
        %v2463 = vpop.f32.mrf.mxu0
        %v2464 = vadd.f32 %v2303, %v2463
        %v2465 = vpop.f32.mrf.mxu0
        %2466 = vmatprep.mubr.bf16.mxu0 0
        %2467 = vmatmul.mubr.bf16.gmra.mxu0 %v1001
        %v2468 = vpop.f32.mrf.mxu0
        %v2469 = vadd.f32 %v2308, %v2468
        %v2470 = vpop.f32.mrf.mxu0
        %v2471 = vpop.f32.mrf.mxu0
        %v2472 = vadd.f32 %v2311, %v2471
        %v2473 = vpop.f32.mrf.mxu0
        %2474 = vmatprep.mubr.bf16.mxu0 0
        %2475 = vmatmul.mubr.bf16.gmra.mxu0 %v1002
        %v2476 = vpop.f32.mrf.mxu0
        %v2477 = vadd.f32 %v2316, %v2476
        %v2478 = vpop.f32.mrf.mxu0
        %v2479 = vpop.f32.mrf.mxu0
        %v2480 = vadd.f32 %v2319, %v2479
        %v2481 = vpop.f32.mrf.mxu0
        %2482 = vmatprep.mubr.bf16.mxu0 0
        %2483 = vmatmul.mubr.bf16.gmra.mxu0 %v1003
        %v2484 = vpop.f32.mrf.mxu0
        %v2485 = vadd.f32 %v2324, %v2484
        %v2486 = vpop.f32.mrf.mxu0
        %v2487 = vpop.f32.mrf.mxu0
        %v2488 = vadd.f32 %v2327, %v2487
        %v2489 = vpop.f32.mrf.mxu0
        %2490 = vmatprep.mubr.bf16.mxu0 0
        %2491 = vmatmul.mubr.bf16.gmra.mxu0 %v1004
        %v2492 = vpop.f32.mrf.mxu0
        %v2493 = vadd.f32 %v2332, %v2492
        %v2494 = vpop.f32.mrf.mxu0
        %v2495 = vpop.f32.mrf.mxu0
        %v2496 = vadd.f32 %v2335, %v2495
        %v2497 = vpop.f32.mrf.mxu0
        %2498 = vmatprep.mubr.bf16.mxu0 0
        %2499 = vmatmul.mubr.bf16.gmra.mxu0 %v1005
        %v2500 = vpop.f32.mrf.mxu0
        %v2501 = vadd.f32 %v2340, %v2500
        %v2502 = vpop.f32.mrf.mxu0
        %v2503 = vpop.f32.mrf.mxu0
        %v2504 = vadd.f32 %v2343, %v2503
        %v2505 = vpop.f32.mrf.mxu0
        %2506 = vmatprep.mubr.bf16.mxu0 0
        %2507 = vmatmul.mubr.bf16.gmra.mxu0 %v1006
        %v2508 = vpop.f32.mrf.mxu0
        %v2509 = vadd.f32 %v2348, %v2508
        %v2510 = vpop.f32.mrf.mxu0
        %v2511 = vpop.f32.mrf.mxu0
        %v2512 = vadd.f32 %v2351, %v2511
        %v2513 = vpop.f32.mrf.mxu0
        %2514 = vmatprep.mubr.bf16.mxu0 0
        %2515 = vmatmul.mubr.bf16.gmra.mxu0 %v1007
        %v2516 = vpop.f32.mrf.mxu0
        %v2517 = vadd.f32 %v2356, %v2516
        %v2518 = vpop.f32.mrf.mxu0
        %v2519 = vpop.f32.mrf.mxu0
        %v2520 = vadd.f32 %v2359, %v2519
        %v2521 = vpop.f32.mrf.mxu0
        %2522 = vmatprep.mubr.bf16.mxu0 0
        %2523 = vmatmul.mubr.bf16.gmra.mxu0 %v1008
        %v2524 = vpop.f32.mrf.mxu0
        %v2525 = vadd.f32 %v2364, %v2524
        %v2526 = vpop.f32.mrf.mxu0
        %v2527 = vpop.f32.mrf.mxu0
        %v2528 = vadd.f32 %v2367, %v2527
        %v2529 = vpop.f32.mrf.mxu0
        %2530 = vmatprep.mubr.bf16.mxu0 0
        %2531 = vmatmul.mubr.bf16.gmra.mxu0 %v1009
        %v2532 = vpop.f32.mrf.mxu0
        %v2533 = vadd.f32 %v2372, %v2532
        %v2534 = vpop.f32.mrf.mxu0
        %v2535 = vpop.f32.mrf.mxu0
        %v2536 = vadd.f32 %v2375, %v2535
        %v2537 = vpop.f32.mrf.mxu0
        %2538 = vmatprep.mubr.bf16.mxu0 0
        %2539 = vmatmul.mubr.bf16.gmra.mxu0 %v1010
        %v2540 = vpop.f32.mrf.mxu0
        %v2541 = vadd.f32 %v2380, %v2540
        %v2542 = vpop.f32.mrf.mxu0
        %v2543 = vpop.f32.mrf.mxu0
        %v2544 = vadd.f32 %v2383, %v2543
        %v2545 = vpop.f32.mrf.mxu0
        %2546 = vmatprep.mubr.bf16.mxu0 0
        %2547 = vmatmul.mubr.bf16.gmra.mxu0 0
        %v2548 = vpop.f32.mrf.mxu0
        %v2549 = vadd.f32 %v2388, %v2548
        %v2550 = vpop.f32.mrf.mxu0
        %v2551 = vpop.f32.mrf.mxu0
        %v2552 = vadd.f32 %v2391, %v2551
        %v2553 = vpop.f32.mrf.mxu0
        %2554 = vdwg.mxu0
        %v2555 = vadd.f32 %v1914, %v2429
        %v2556 = vadd.f32 %v1917, %v2432
        %v2557 = vadd.f32 %v1922, %v2437
        %v2558 = vadd.f32 %v1925, %v2440
        %v2559 = vadd.f32 %v1930, %v2445
        %v2560 = vadd.f32 %v1933, %v2448
        %v2561 = vadd.f32 %v1938, %v2453
        %v2562 = vadd.f32 %v1941, %v2456
        %v2563 = vadd.f32 %v1946, %v2461
        %v2564 = vadd.f32 %v1949, %v2464
        %v2565 = vadd.f32 %v1954, %v2469
        %v2566 = vadd.f32 %v1957, %v2472
        %v2567 = vadd.f32 %v1962, %v2477
        %v2568 = vadd.f32 %v1965, %v2480
        %v2569 = vadd.f32 %v1970, %v2485
        %v2570 = vadd.f32 %v1973, %v2488
        %v2571 = vadd.f32 %v1978, %v2493
        %v2572 = vadd.f32 %v1981, %v2496
        %v2573 = vadd.f32 %v1986, %v2501
        %v2574 = vadd.f32 %v1989, %v2504
        %v2575 = vadd.f32 %v1994, %v2509
        %v2576 = vadd.f32 %v1997, %v2512
        %v2577 = vadd.f32 %v2002, %v2517
        %v2578 = vadd.f32 %v2005, %v2520
        %v2579 = vadd.f32 %v2010, %v2525
        %v2580 = vadd.f32 %v2013, %v2528
        %v2581 = vadd.f32 %v2018, %v2533
        %v2582 = vadd.f32 %v2021, %v2536
        %v2583 = vadd.f32 %v2026, %v2541
        %v2584 = vadd.f32 %v2029, %v2544
        %v2585 = vadd.f32 %v2034, %v2549
        %v2586 = vadd.f32 %v2037, %v2552
        %v2587 = vld [vmem:[%s2] sm:$0x1]
        %v2589 = vlaneseq
        %v2590 = vshrl.u32 %v2589, 7
        %v2591 = vsub.s32 0, %v2590
        %v2592 = vrot.slane %v2587, %v2591
        %v2594 = vadd.f32 %v2555, %v2592
        %v2595 = vadd.f32 %v2556, %v2592
        %v2596 = vadd.f32 %v2557, %v2592
        %v2597 = vadd.f32 %v2558, %v2592
        %v2598 = vadd.f32 %v2559, %v2592
        %v2599 = vadd.f32 %v2560, %v2592
        %v2600 = vadd.f32 %v2561, %v2592
        %v2601 = vadd.f32 %v2562, %v2592
        %v2602 = vadd.f32 %v2563, %v2592
        %v2603 = vadd.f32 %v2564, %v2592
        %v2604 = vadd.f32 %v2565, %v2592
        %v2605 = vadd.f32 %v2566, %v2592
        %v2606 = vadd.f32 %v2567, %v2592
        %v2607 = vadd.f32 %v2568, %v2592
        %v2608 = vadd.f32 %v2569, %v2592
        %v2609 = vadd.f32 %v2570, %v2592
        %v2610 = vadd.f32 %v2571, %v2592
        %v2611 = vadd.f32 %v2572, %v2592
        %v2612 = vadd.f32 %v2573, %v2592
        %v2613 = vadd.f32 %v2574, %v2592
        %v2614 = vadd.f32 %v2575, %v2592
        %v2615 = vadd.f32 %v2576, %v2592
        %v2616 = vadd.f32 %v2577, %v2592
        %v2617 = vadd.f32 %v2578, %v2592
        %v2618 = vadd.f32 %v2579, %v2592
        %v2619 = vadd.f32 %v2580, %v2592
        %v2620 = vadd.f32 %v2581, %v2592
        %v2621 = vadd.f32 %v2582, %v2592
        %v2622 = vadd.f32 %v2583, %v2592
        %v2623 = vadd.f32 %v2584, %v2592
        %v2624 = vadd.f32 %v2585, %v2592
        %v2625 = vadd.f32 %v2586, %v2592
        %v2626 = vmax.f32 %v2594, 0.0
        %v2627 = vmax.f32 %v2595, 0.0
        %v2628 = vmax.f32 %v2596, 0.0
        %v2629 = vmax.f32 %v2597, 0.0
        %v2630 = vmax.f32 %v2598, 0.0
        %v2631 = vmax.f32 %v2599, 0.0
        %v2632 = vmax.f32 %v2600, 0.0
        %v2633 = vmax.f32 %v2601, 0.0
        %v2634 = vmax.f32 %v2602, 0.0
        %v2635 = vmax.f32 %v2603, 0.0
        %v2636 = vmax.f32 %v2604, 0.0
        %v2637 = vmax.f32 %v2605, 0.0
        %v2638 = vmax.f32 %v2606, 0.0
        %v2639 = vmax.f32 %v2607, 0.0
        %v2640 = vmax.f32 %v2608, 0.0
        %v2641 = vmax.f32 %v2609, 0.0
        %v2642 = vmax.f32 %v2610, 0.0
        %v2643 = vmax.f32 %v2611, 0.0
        %v2644 = vmax.f32 %v2612, 0.0
        %v2645 = vmax.f32 %v2613, 0.0
        %v2646 = vmax.f32 %v2614, 0.0
        %v2647 = vmax.f32 %v2615, 0.0
        %v2648 = vmax.f32 %v2616, 0.0
        %v2649 = vmax.f32 %v2617, 0.0
        %v2650 = vmax.f32 %v2618, 0.0
        %v2651 = vmax.f32 %v2619, 0.0
        %v2652 = vmax.f32 %v2620, 0.0
        %v2653 = vmax.f32 %v2621, 0.0
        %v2654 = vmax.f32 %v2622, 0.0
        %v2655 = vmax.f32 %v2623, 0.0
        %v2656 = vmax.f32 %v2624, 0.0
        %v2657 = vmax.f32 %v2625, 0.0
        %v2658 = vrot.slane %v2626, 7
        %v2659 = vrot.slane %v2627, 7
        %v2660 = vrot.slane %v2628, 7
        %v2661 = vrot.slane %v2629, 7
        %v2662 = vrot.slane %v2630, 7
        %v2663 = vrot.slane %v2631, 7
        %v2664 = vrot.slane %v2632, 7
        %v2665 = vrot.slane %v2633, 7
        %v2666 = vrot.slane %v2634, 7
        %v2667 = vrot.slane %v2635, 7
        %v2668 = vrot.slane %v2636, 7
        %v2669 = vrot.slane %v2637, 7
        %v2670 = vrot.slane %v2638, 7
        %v2671 = vrot.slane %v2639, 7
        %v2672 = vrot.slane %v2640, 7
        %v2673 = vrot.slane %v2641, 7
        %v2674 = vrot.slane %v2642, 7
        %v2675 = vrot.slane %v2643, 7
        %v2676 = vrot.slane %v2644, 7
        %v2677 = vrot.slane %v2645, 7
        %v2678 = vrot.slane %v2646, 7
        %v2679 = vrot.slane %v2647, 7
        %v2680 = vrot.slane %v2648, 7
        %v2681 = vrot.slane %v2649, 7
        %v2682 = vrot.slane %v2650, 7
        %v2683 = vrot.slane %v2651, 7
        %v2684 = vrot.slane %v2652, 7
        %v2685 = vrot.slane %v2653, 7
        %v2686 = vrot.slane %v2654, 7
        %v2687 = vrot.slane %v2655, 7
        %v2688 = vrot.slane %v2656, 7
        %v2689 = vrot.slane %v2657, 7
        %v2690 = vsel %vm769, %v2688, %v2689
        %v2691 = vsel %vm769, %v2687, %v2688
        %v2692 = vsel %vm769, %v2686, %v2687
        %v2693 = vsel %vm769, %v2685, %v2686
        %v2694 = vsel %vm769, %v2684, %v2685
        %v2695 = vsel %vm769, %v2683, %v2684
        %v2696 = vsel %vm769, %v2682, %v2683
        %v2697 = vsel %vm769, %v2681, %v2682
        %v2698 = vsel %vm769, %v2680, %v2681
        %v2699 = vsel %vm769, %v2679, %v2680
        %v2700 = vsel %vm769, %v2678, %v2679
        %v2701 = vsel %vm769, %v2677, %v2678
        %v2702 = vsel %vm769, %v2676, %v2677
        %v2703 = vsel %vm769, %v2675, %v2676
        %v2704 = vsel %vm769, %v2674, %v2675
        %v2705 = vsel %vm769, %v2673, %v2674
        %v2706 = vsel %vm769, %v2672, %v2673
        %v2707 = vsel %vm769, %v2671, %v2672
        %v2708 = vsel %vm769, %v2670, %v2671
        %v2709 = vsel %vm769, %v2669, %v2670
        %v2710 = vsel %vm769, %v2668, %v2669
        %v2711 = vsel %vm769, %v2667, %v2668
        %v2712 = vsel %vm769, %v2666, %v2667
        %v2713 = vsel %vm769, %v2665, %v2666
        %v2714 = vsel %vm769, %v2664, %v2665
        %v2715 = vsel %vm769, %v2663, %v2664
        %v2716 = vsel %vm769, %v2662, %v2663
        %v2717 = vsel %vm769, %v2661, %v2662
        %v2718 = vsel %vm769, %v2660, %v2661
        %v2719 = vsel %vm769, %v2659, %v2660
        %v2720 = vsel %vm769, %v2658, %v2659
        %v2721 = vsel %vm769, %v2689, %v2658
        %v2722 = vsel %vm705, 0.0, %v2721
        %v2723 = vsel %vm706, 0.0, %v2720
        %v2724 = vsel %vm707, 0.0, %v2719
        %v2725 = vsel %vm708, 0.0, %v2718
        %v2726 = vsel %vm709, 0.0, %v2717
        %v2727 = vsel %vm710, 0.0, %v2716
        %v2728 = vsel %vm711, 0.0, %v2715
        %v2729 = vsel %vm712, 0.0, %v2714
        %v2730 = vsel %vm713, 0.0, %v2713
        %v2731 = vsel %vm714, 0.0, %v2712
        %v2732 = vsel %vm715, 0.0, %v2711
        %v2733 = vsel %vm716, 0.0, %v2710
        %v2734 = vsel %vm717, 0.0, %v2709
        %v2735 = vsel %vm718, 0.0, %v2708
        %v2736 = vsel %vm719, 0.0, %v2707
        %v2737 = vsel %vm720, 0.0, %v2706
        %v2738 = vsel %vm721, 0.0, %v2705
        %v2739 = vsel %vm722, 0.0, %v2704
        %v2740 = vsel %vm723, 0.0, %v2703
        %v2741 = vsel %vm724, 0.0, %v2702
        %v2742 = vsel %vm725, 0.0, %v2701
        %v2743 = vsel %vm726, 0.0, %v2700
        %v2744 = vsel %vm727, 0.0, %v2699
        %v2745 = vsel %vm728, 0.0, %v2698
        %v2746 = vsel %vm729, 0.0, %v2697
        %v2747 = vsel %vm730, 0.0, %v2696
        %v2748 = vsel %vm731, 0.0, %v2695
        %v2749 = vsel %vm732, 0.0, %v2694
        %v2750 = vsel %vm733, 0.0, %v2693
        %v2751 = vsel %vm734, 0.0, %v2692
        %v2752 = vsel %vm735, 0.0, %v2691
        %v2753 = vsel %vm736, 0.0, %v2690
        %v2754 = vrot.slane %v2626, 1
        %v2755 = vrot.slane %v2627, 1
        %v2756 = vrot.slane %v2628, 1
        %v2757 = vrot.slane %v2629, 1
        %v2758 = vrot.slane %v2630, 1
        %v2759 = vrot.slane %v2631, 1
        %v2760 = vrot.slane %v2632, 1
        %v2761 = vrot.slane %v2633, 1
        %v2762 = vrot.slane %v2634, 1
        %v2763 = vrot.slane %v2635, 1
        %v2764 = vrot.slane %v2636, 1
        %v2765 = vrot.slane %v2637, 1
        %v2766 = vrot.slane %v2638, 1
        %v2767 = vrot.slane %v2639, 1
        %v2768 = vrot.slane %v2640, 1
        %v2769 = vrot.slane %v2641, 1
        %v2770 = vrot.slane %v2642, 1
        %v2771 = vrot.slane %v2643, 1
        %v2772 = vrot.slane %v2644, 1
        %v2773 = vrot.slane %v2645, 1
        %v2774 = vrot.slane %v2646, 1
        %v2775 = vrot.slane %v2647, 1
        %v2776 = vrot.slane %v2648, 1
        %v2777 = vrot.slane %v2649, 1
        %v2778 = vrot.slane %v2650, 1
        %v2779 = vrot.slane %v2651, 1
        %v2780 = vrot.slane %v2652, 1
        %v2781 = vrot.slane %v2653, 1
        %v2782 = vrot.slane %v2654, 1
        %v2783 = vrot.slane %v2655, 1
        %v2784 = vrot.slane %v2656, 1
        %v2785 = vrot.slane %v2657, 1
        %v2786 = vsel %vm898, %v2784, %v2785
        %v2787 = vsel %vm898, %v2783, %v2784
        %v2788 = vsel %vm898, %v2782, %v2783
        %v2789 = vsel %vm898, %v2781, %v2782
        %v2790 = vsel %vm898, %v2780, %v2781
        %v2791 = vsel %vm898, %v2779, %v2780
        %v2792 = vsel %vm898, %v2778, %v2779
        %v2793 = vsel %vm898, %v2777, %v2778
        %v2794 = vsel %vm898, %v2776, %v2777
        %v2795 = vsel %vm898, %v2775, %v2776
        %v2796 = vsel %vm898, %v2774, %v2775
        %v2797 = vsel %vm898, %v2773, %v2774
        %v2798 = vsel %vm898, %v2772, %v2773
        %v2799 = vsel %vm898, %v2771, %v2772
        %v2800 = vsel %vm898, %v2770, %v2771
        %v2801 = vsel %vm898, %v2769, %v2770
        %v2802 = vsel %vm898, %v2768, %v2769
        %v2803 = vsel %vm898, %v2767, %v2768
        %v2804 = vsel %vm898, %v2766, %v2767
        %v2805 = vsel %vm898, %v2765, %v2766
        %v2806 = vsel %vm898, %v2764, %v2765
        %v2807 = vsel %vm898, %v2763, %v2764
        %v2808 = vsel %vm898, %v2762, %v2763
        %v2809 = vsel %vm898, %v2761, %v2762
        %v2810 = vsel %vm898, %v2760, %v2761
        %v2811 = vsel %vm898, %v2759, %v2760
        %v2812 = vsel %vm898, %v2758, %v2759
        %v2813 = vsel %vm898, %v2757, %v2758
        %v2814 = vsel %vm898, %v2756, %v2757
        %v2815 = vsel %vm898, %v2755, %v2756
        %v2816 = vsel %vm898, %v2754, %v2755
        %v2817 = vsel %vm898, %v2785, %v2754
        %v2818 = vsel %vm834, 0.0, %v2816
        %v2819 = vsel %vm835, 0.0, %v2815
        %v2820 = vsel %vm836, 0.0, %v2814
        %v2821 = vsel %vm837, 0.0, %v2813
        %v2822 = vsel %vm838, 0.0, %v2812
        %v2823 = vsel %vm839, 0.0, %v2811
        %v2824 = vsel %vm840, 0.0, %v2810
        %v2825 = vsel %vm841, 0.0, %v2809
        %v2826 = vsel %vm842, 0.0, %v2808
        %v2827 = vsel %vm843, 0.0, %v2807
        %v2828 = vsel %vm844, 0.0, %v2806
        %v2829 = vsel %vm845, 0.0, %v2805
        %v2830 = vsel %vm846, 0.0, %v2804
        %v2831 = vsel %vm847, 0.0, %v2803
        %v2832 = vsel %vm848, 0.0, %v2802
        %v2833 = vsel %vm849, 0.0, %v2801
        %v2834 = vsel %vm850, 0.0, %v2800
        %v2835 = vsel %vm851, 0.0, %v2799
        %v2836 = vsel %vm852, 0.0, %v2798
        %v2837 = vsel %vm853, 0.0, %v2797
        %v2838 = vsel %vm854, 0.0, %v2796
        %v2839 = vsel %vm855, 0.0, %v2795
        %v2840 = vsel %vm856, 0.0, %v2794
        %v2841 = vsel %vm857, 0.0, %v2793
        %v2842 = vsel %vm858, 0.0, %v2792
        %v2843 = vsel %vm859, 0.0, %v2791
        %v2844 = vsel %vm860, 0.0, %v2790
        %v2845 = vsel %vm861, 0.0, %v2789
        %v2846 = vsel %vm862, 0.0, %v2788
        %v2847 = vsel %vm863, 0.0, %v2787
        %v2848 = vsel %vm864, 0.0, %v2786
        %v2849 = vsel %vm865, 0.0, %v2817
        %v2850 = vpack.c.bf16 %v2723, %v2722
        %v2851 = vpack.c.bf16 %v2725, %v2724
        %v2852 = vpack.c.bf16 %v2727, %v2726
        %v2853 = vpack.c.bf16 %v2729, %v2728
        %v2854 = vpack.c.bf16 %v2731, %v2730
        %v2855 = vpack.c.bf16 %v2733, %v2732
        %v2856 = vpack.c.bf16 %v2735, %v2734
        %v2857 = vpack.c.bf16 %v2737, %v2736
        %v2858 = vpack.c.bf16 %v2739, %v2738
        %v2859 = vpack.c.bf16 %v2741, %v2740
        %v2860 = vpack.c.bf16 %v2743, %v2742
        %v2861 = vpack.c.bf16 %v2745, %v2744
        %v2862 = vpack.c.bf16 %v2747, %v2746
        %v2863 = vpack.c.bf16 %v2749, %v2748
        %v2864 = vpack.c.bf16 %v2751, %v2750
        %v2865 = vpack.c.bf16 %v2753, %v2752
        %v2866 = vpack.c.bf16 %v2627, %v2626
        %v2867 = vpack.c.bf16 %v2629, %v2628
        %v2868 = vpack.c.bf16 %v2631, %v2630
        %v2869 = vpack.c.bf16 %v2633, %v2632
        %v2870 = vpack.c.bf16 %v2635, %v2634
        %v2871 = vpack.c.bf16 %v2637, %v2636
        %v2872 = vpack.c.bf16 %v2639, %v2638
        %v2873 = vpack.c.bf16 %v2641, %v2640
        %v2874 = vpack.c.bf16 %v2643, %v2642
        %v2875 = vpack.c.bf16 %v2645, %v2644
        %v2876 = vpack.c.bf16 %v2647, %v2646
        %v2877 = vpack.c.bf16 %v2649, %v2648
        %v2878 = vpack.c.bf16 %v2651, %v2650
        %v2879 = vpack.c.bf16 %v2653, %v2652
        %v2880 = vpack.c.bf16 %v2655, %v2654
        %v2881 = vpack.c.bf16 %v2657, %v2656
        %v2882 = vpack.c.bf16 %v2819, %v2818
        %v2883 = vpack.c.bf16 %v2821, %v2820
        %v2884 = vpack.c.bf16 %v2823, %v2822
        %v2885 = vpack.c.bf16 %v2825, %v2824
        %v2886 = vpack.c.bf16 %v2827, %v2826
        %v2887 = vpack.c.bf16 %v2829, %v2828
        %v2888 = vpack.c.bf16 %v2831, %v2830
        %v2889 = vpack.c.bf16 %v2833, %v2832
        %v2890 = vpack.c.bf16 %v2835, %v2834
        %v2891 = vpack.c.bf16 %v2837, %v2836
        %v2892 = vpack.c.bf16 %v2839, %v2838
        %v2893 = vpack.c.bf16 %v2841, %v2840
        %v2894 = vpack.c.bf16 %v2843, %v2842
        %v2895 = vpack.c.bf16 %v2845, %v2844
        %v2896 = vpack.c.bf16 %v2847, %v2846
        %v2897 = vpack.c.bf16 %v2849, %v2848
        %v2898 = vld [vmem:[%s3] sm:$0xf]
        %v2899 = vld [vmem:[%s3 + $0x4] sm:$0xf]
        %v2900 = vld [vmem:[%s3 + $0x8] sm:$0xf]
        %v2901 = vld [vmem:[%s3 + $0xc] sm:$0xf]
        %v2902 = vld [vmem:[%s3 + $0x10] sm:$0xf]
        %v2903 = vld [vmem:[%s3 + $0x14] sm:$0xf]
        %v2904 = vld [vmem:[%s3 + $0x18] sm:$0xf]
        %v2905 = vld [vmem:[%s3 + $0x1c] sm:$0xf]
        %v2906 = vld [vmem:[%s3 + $0x20] sm:$0xf]
        %v2907 = vld [vmem:[%s3 + $0x24] sm:$0xf]
        %v2908 = vld [vmem:[%s3 + $0x28] sm:$0xf]
        %v2909 = vld [vmem:[%s3 + $0x2c] sm:$0xf]
        %v2910 = vld [vmem:[%s3 + $0x30] sm:$0xf]
        %v2911 = vld [vmem:[%s3 + $0x34] sm:$0xf]
        %v2912 = vld [vmem:[%s3 + $0x38] sm:$0xf]
        %v2913 = vld [vmem:[%s3 + $0x3c] sm:$0xf]
        %v2914 = vld [vmem:[%s3 + $0x40] sm:$0xf]
        %v2915 = vld [vmem:[%s3 + $0x44] sm:$0xf]
        %v2916 = vld [vmem:[%s3 + $0x48] sm:$0xf]
        %v2917 = vld [vmem:[%s3 + $0x4c] sm:$0xf]
        %v2918 = vld [vmem:[%s3 + $0x50] sm:$0xf]
        %v2919 = vld [vmem:[%s3 + $0x54] sm:$0xf]
        %v2920 = vld [vmem:[%s3 + $0x58] sm:$0xf]
        %v2921 = vld [vmem:[%s3 + $0x5c] sm:$0xf]
        %v2922 = vld [vmem:[%s3 + $0x60] sm:$0xf]
        %v2923 = vld [vmem:[%s3 + $0x64] sm:$0xf]
        %v2924 = vld [vmem:[%s3 + $0x68] sm:$0xf]
        %v2925 = vld [vmem:[%s3 + $0x6c] sm:$0xf]
        %v2926 = vld [vmem:[%s3 + $0x70] sm:$0xf]
        %v2927 = vld [vmem:[%s3 + $0x74] sm:$0xf]
        %v2928 = vld [vmem:[%s3 + $0x78] sm:$0xf]
        %v2929 = vld [vmem:[%s3 + $0x7c] sm:$0xf]
        %v2930 = vld [vmem:[%s3 + $0x80] sm:$0xf]
        %v2931 = vld [vmem:[%s3 + $0x84] sm:$0xf]
        %v2932 = vld [vmem:[%s3 + $0x88] sm:$0xf]
        %v2933 = vld [vmem:[%s3 + $0x8c] sm:$0xf]
        %v2934 = vld [vmem:[%s3 + $0x90] sm:$0xf]
        %v2935 = vld [vmem:[%s3 + $0x94] sm:$0xf]
        %v2936 = vld [vmem:[%s3 + $0x98] sm:$0xf]
        %v2937 = vld [vmem:[%s3 + $0x9c] sm:$0xf]
        %v2938 = vld [vmem:[%s3 + $0xa0] sm:$0xf]
        %v2939 = vld [vmem:[%s3 + $0xa4] sm:$0xf]
        %v2940 = vld [vmem:[%s3 + $0xa8] sm:$0xf]
        %v2941 = vld [vmem:[%s3 + $0xac] sm:$0xf]
        %v2942 = vld [vmem:[%s3 + $0xb0] sm:$0xf]
        %v2943 = vld [vmem:[%s3 + $0xb4] sm:$0xf]
        %v2944 = vld [vmem:[%s3 + $0xb8] sm:$0xf]
        %v2945 = vld [vmem:[%s3 + $0xbc] sm:$0xf]
        %s2946 = scalar_lea.vmem %s3, 192
        %v2947 = vld [vmem:[%s2946] sm:$0xf]
        %v2948 = vld [vmem:[%s2946 + $0x4] sm:$0xf]
        %v2949 = vld [vmem:[%s2946 + $0x8] sm:$0xf]
        %v2950 = vld [vmem:[%s2946 + $0xc] sm:$0xf]
        %v2951 = vld [vmem:[%s2946 + $0x10] sm:$0xf]
        %v2952 = vld [vmem:[%s2946 + $0x14] sm:$0xf]
        %v2953 = vld [vmem:[%s2946 + $0x18] sm:$0xf]
        %v2954 = vld [vmem:[%s2946 + $0x1c] sm:$0xf]
        %v2955 = vld [vmem:[%s2946 + $0x20] sm:$0xf]
        %v2956 = vld [vmem:[%s2946 + $0x24] sm:$0xf]
        %v2957 = vld [vmem:[%s2946 + $0x28] sm:$0xf]
        %v2958 = vld [vmem:[%s2946 + $0x2c] sm:$0xf]
        %v2959 = vld [vmem:[%s2946 + $0x30] sm:$0xf]
        %v2960 = vld [vmem:[%s2946 + $0x34] sm:$0xf]
        %v2961 = vld [vmem:[%s2946 + $0x38] sm:$0xf]
        %v2962 = vld [vmem:[%s2946 + $0x3c] sm:$0xf]
        %v2963 = vld [vmem:[%s2946 + $0x40] sm:$0xf]
        %v2964 = vld [vmem:[%s2946 + $0x44] sm:$0xf]
        %v2965 = vld [vmem:[%s2946 + $0x48] sm:$0xf]
        %v2966 = vld [vmem:[%s2946 + $0x4c] sm:$0xf]
        %v2967 = vld [vmem:[%s2946 + $0x50] sm:$0xf]
        %v2968 = vld [vmem:[%s2946 + $0x54] sm:$0xf]
        %v2969 = vld [vmem:[%s2946 + $0x58] sm:$0xf]
        %v2970 = vld [vmem:[%s2946 + $0x5c] sm:$0xf]
        %v2971 = vld [vmem:[%s2946 + $0x60] sm:$0xf]
        %v2972 = vld [vmem:[%s2946 + $0x64] sm:$0xf]
        %v2973 = vld [vmem:[%s2946 + $0x68] sm:$0xf]
        %v2974 = vld [vmem:[%s2946 + $0x6c] sm:$0xf]
        %v2975 = vld [vmem:[%s2946 + $0x70] sm:$0xf]
        %v2976 = vld [vmem:[%s2946 + $0x74] sm:$0xf]
        %v2977 = vld [vmem:[%s2946 + $0x78] sm:$0xf]
        %v2978 = vld [vmem:[%s2946 + $0x7c] sm:$0xf]
        %v2979 = vld [vmem:[%s2946 + $0x80] sm:$0xf]
        %v2980 = vld [vmem:[%s2946 + $0x84] sm:$0xf]
        %v2981 = vld [vmem:[%s2946 + $0x88] sm:$0xf]
        %v2982 = vld [vmem:[%s2946 + $0x8c] sm:$0xf]
        %v2983 = vld [vmem:[%s2946 + $0x90] sm:$0xf]
        %v2984 = vld [vmem:[%s2946 + $0x94] sm:$0xf]
        %v2985 = vld [vmem:[%s2946 + $0x98] sm:$0xf]
        %v2986 = vld [vmem:[%s2946 + $0x9c] sm:$0xf]
        %v2987 = vld [vmem:[%s2946 + $0xa0] sm:$0xf]
        %v2988 = vld [vmem:[%s2946 + $0xa4] sm:$0xf]
        %v2989 = vld [vmem:[%s2946 + $0xa8] sm:$0xf]
        %v2990 = vld [vmem:[%s2946 + $0xac] sm:$0xf]
        %v2991 = vld [vmem:[%s2946 + $0xb0] sm:$0xf]
        %v2992 = vld [vmem:[%s2946 + $0xb4] sm:$0xf]
        %v2993 = vld [vmem:[%s2946 + $0xb8] sm:$0xf]
        %v2994 = vld [vmem:[%s2946 + $0xbc] sm:$0xf]
        %v3043 = vunpack.c.l.b16 %v2947
        %v3044 = vunpack.c.l.b16 %v2948
        %v3045 = vunpack.c.l.b16 %v2949
        %v3046 = vunpack.c.l.b16 %v2950
        %v3047 = vunpack.c.l.b16 %v2951
        %v3048 = vunpack.c.l.b16 %v2952
        %v3049 = vunpack.c.l.b16 %v2953
        %v3050 = vunpack.c.l.b16 %v2954
        %v3051 = vunpack.c.l.b16 %v2955
        %v3052 = vunpack.c.l.b16 %v2956
        %v3053 = vunpack.c.l.b16 %v2957
        %v3054 = vunpack.c.l.b16 %v2958
        %v3055 = vunpack.c.l.b16 %v2959
        %v3056 = vunpack.c.l.b16 %v2960
        %v3057 = vunpack.c.l.b16 %v2961
        %v3058 = vunpack.c.l.b16 %v2962
        %v3059 = vunpack.c.l.b16 %v2963
        %v3060 = vunpack.c.l.b16 %v2964
        %v3061 = vunpack.c.l.b16 %v2965
        %v3062 = vunpack.c.l.b16 %v2966
        %v3063 = vunpack.c.l.b16 %v2967
        %v3064 = vunpack.c.l.b16 %v2968
        %v3065 = vunpack.c.l.b16 %v2969
        %v3066 = vunpack.c.l.b16 %v2970
        %v3067 = vunpack.c.l.b16 %v2971
        %v3068 = vunpack.c.l.b16 %v2972
        %v3069 = vunpack.c.l.b16 %v2973
        %v3070 = vunpack.c.l.b16 %v2974
        %v3071 = vunpack.c.l.b16 %v2975
        %v3072 = vunpack.c.l.b16 %v2976
        %v3073 = vunpack.c.l.b16 %v2977
        %v3074 = vunpack.c.l.b16 %v2978
        %v3075 = vunpack.c.l.b16 %v2979
        %v3076 = vunpack.c.l.b16 %v2980
        %v3077 = vunpack.c.l.b16 %v2981
        %v3078 = vunpack.c.l.b16 %v2982
        %v3079 = vunpack.c.l.b16 %v2983
        %v3080 = vunpack.c.l.b16 %v2984
        %v3081 = vunpack.c.l.b16 %v2985
        %v3082 = vunpack.c.l.b16 %v2986
        %v3083 = vunpack.c.l.b16 %v2987
        %v3084 = vunpack.c.l.b16 %v2988
        %v3085 = vunpack.c.l.b16 %v2989
        %v3086 = vunpack.c.l.b16 %v2990
        %v3087 = vunpack.c.l.b16 %v2991
        %v3088 = vunpack.c.l.b16 %v2992
        %v3089 = vunpack.c.l.b16 %v2993
        %v3090 = vunpack.c.l.b16 %v2994
        %v3091 = vpack.c.b16 %v3044, %v3043
        %v3092 = vpack.c.b16 %v3046, %v3045
        %v3093 = vpack.c.b16 %v3048, %v3047
        %v3094 = vpack.c.b16 %v3050, %v3049
        %v3095 = vpack.c.b16 %v3052, %v3051
        %v3096 = vpack.c.b16 %v3054, %v3053
        %v3097 = vpack.c.b16 %v3056, %v3055
        %v3098 = vpack.c.b16 %v3058, %v3057
        %v3099 = vpack.c.b16 %v3060, %v3059
        %v3100 = vpack.c.b16 %v3062, %v3061
        %v3101 = vpack.c.b16 %v3064, %v3063
        %v3102 = vpack.c.b16 %v3066, %v3065
        %v3103 = vpack.c.b16 %v3068, %v3067
        %v3104 = vpack.c.b16 %v3070, %v3069
        %v3105 = vpack.c.b16 %v3072, %v3071
        %v3106 = vpack.c.b16 %v3074, %v3073
        %v3107 = vpack.c.b16 %v3076, %v3075
        %v3108 = vpack.c.b16 %v3078, %v3077
        %v3109 = vpack.c.b16 %v3080, %v3079
        %v3110 = vpack.c.b16 %v3082, %v3081
        %v3111 = vpack.c.b16 %v3084, %v3083
        %v3112 = vpack.c.b16 %v3086, %v3085
        %v3113 = vpack.c.b16 %v3088, %v3087
        %v3114 = vpack.c.b16 %v3090, %v3089
        %3139 = vmatprep.subr.bf16.mxu0 0
        %3140 = vmatpush1.bf16.msra.mxu0 %v3098
        %3141 = vmatprep.subr.bf16.mxu0 0
        %3142 = vmatpush1.bf16.msra.mxu0 %v3097
        %3143 = vmatprep.subr.bf16.mxu0 0
        %3144 = vmatpush1.bf16.msra.mxu0 %v3096
        %3145 = vmatprep.subr.bf16.mxu0 0
        %3146 = vmatpush1.bf16.msra.mxu0 %v3095
        %3147 = vmatprep.subr.bf16.mxu0 0
        %3148 = vmatpush1.bf16.msra.mxu0 %v3094
        %3149 = vmatprep.subr.bf16.mxu0 0
        %3150 = vmatpush1.bf16.msra.mxu0 %v3093
        %3151 = vmatprep.subr.bf16.mxu0 0
        %3152 = vmatpush1.bf16.msra.mxu0 %v3092
        %3153 = vmatprep.subr.bf16.mxu0 0
        %3154 = vmatpush1.bf16.msra.mxu0 %v3091
        %3155 = vmatprep.subr.bf16.mxu0 0
        %3156 = vmatpush2.bf16.msra.mxu0 %v3106
        %3157 = vmatprep.subr.bf16.mxu0 0
        %3158 = vmatpush2.bf16.msra.mxu0 %v3105
        %3159 = vmatprep.subr.bf16.mxu0 0
        %3160 = vmatpush2.bf16.msra.mxu0 %v3104
        %3161 = vmatprep.subr.bf16.mxu0 0
        %3162 = vmatpush2.bf16.msra.mxu0 %v3103
        %3163 = vmatprep.subr.bf16.mxu0 0
        %3164 = vmatpush2.bf16.msra.mxu0 %v3102
        %3165 = vmatprep.subr.bf16.mxu0 0
        %3166 = vmatpush2.bf16.msra.mxu0 %v3101
        %3167 = vmatprep.subr.bf16.mxu0 0
        %3168 = vmatpush2.bf16.msra.mxu0 %v3100
        %3169 = vmatprep.subr.bf16.mxu0 0
        %3170 = vmatpush2.bf16.msra.mxu0 %v3099
        %3171 = vmatprep.mubr.bf16.mxu0 %v2866
        %3172 = vmatmul.mubr.bf16.gmra.mxu0 %v2850
        %v3173 = vpop.f32.mrf.mxu0
        %v3174 = vadd.f32 0.0, %v3173
        %v3175 = vpop.f32.mrf.mxu0
        %v3176 = vpop.f32.mrf.mxu0
        %v3177 = vadd.f32 0.0, %v3176
        %v3178 = vpop.f32.mrf.mxu0
        %3179 = vmatprep.mubr.bf16.mxu0 %v2867
        %3180 = vmatmul.mubr.bf16.gmra.mxu0 %v2851
        %v3181 = vpop.f32.mrf.mxu0
        %v3182 = vadd.f32 0.0, %v3181
        %v3183 = vpop.f32.mrf.mxu0
        %v3184 = vpop.f32.mrf.mxu0
        %v3185 = vadd.f32 0.0, %v3184
        %v3186 = vpop.f32.mrf.mxu0
        %3187 = vmatprep.mubr.bf16.mxu0 %v2868
        %3188 = vmatmul.mubr.bf16.gmra.mxu0 %v2852
        %v3189 = vpop.f32.mrf.mxu0
        %v3190 = vadd.f32 0.0, %v3189
        %v3191 = vpop.f32.mrf.mxu0
        %v3192 = vpop.f32.mrf.mxu0
        %v3193 = vadd.f32 0.0, %v3192
        %v3194 = vpop.f32.mrf.mxu0
        %3195 = vmatprep.mubr.bf16.mxu0 %v2869
        %3196 = vmatmul.mubr.bf16.gmra.mxu0 %v2853
        %v3197 = vpop.f32.mrf.mxu0
        %v3198 = vadd.f32 0.0, %v3197
        %v3199 = vpop.f32.mrf.mxu0
        %v3200 = vpop.f32.mrf.mxu0
        %v3201 = vadd.f32 0.0, %v3200
        %v3202 = vpop.f32.mrf.mxu0
        %3203 = vmatprep.mubr.bf16.mxu0 %v2870
        %3204 = vmatmul.mubr.bf16.gmra.mxu0 %v2854
        %v3205 = vpop.f32.mrf.mxu0
        %v3206 = vadd.f32 0.0, %v3205
        %v3207 = vpop.f32.mrf.mxu0
        %v3208 = vpop.f32.mrf.mxu0
        %v3209 = vadd.f32 0.0, %v3208
        %v3210 = vpop.f32.mrf.mxu0
        %3211 = vmatprep.mubr.bf16.mxu0 %v2871
        %3212 = vmatmul.mubr.bf16.gmra.mxu0 %v2855
        %v3213 = vpop.f32.mrf.mxu0
        %v3214 = vadd.f32 0.0, %v3213
        %v3215 = vpop.f32.mrf.mxu0
        %v3216 = vpop.f32.mrf.mxu0
        %v3217 = vadd.f32 0.0, %v3216
        %v3218 = vpop.f32.mrf.mxu0
        %3219 = vmatprep.mubr.bf16.mxu0 %v2872
        %3220 = vmatmul.mubr.bf16.gmra.mxu0 %v2856
        %v3221 = vpop.f32.mrf.mxu0
        %v3222 = vadd.f32 0.0, %v3221
        %v3223 = vpop.f32.mrf.mxu0
        %v3224 = vpop.f32.mrf.mxu0
        %v3225 = vadd.f32 0.0, %v3224
        %v3226 = vpop.f32.mrf.mxu0
        %3227 = vmatprep.mubr.bf16.mxu0 %v2873
        %3228 = vmatmul.mubr.bf16.gmra.mxu0 %v2857
        %v3229 = vpop.f32.mrf.mxu0
        %v3230 = vadd.f32 0.0, %v3229
        %v3231 = vpop.f32.mrf.mxu0
        %v3232 = vpop.f32.mrf.mxu0
        %v3233 = vadd.f32 0.0, %v3232
        %v3234 = vpop.f32.mrf.mxu0
        %3235 = vmatprep.mubr.bf16.mxu0 %v2874
        %3236 = vmatmul.mubr.bf16.gmra.mxu0 %v2858
        %v3237 = vpop.f32.mrf.mxu0
        %v3238 = vadd.f32 0.0, %v3237
        %v3239 = vpop.f32.mrf.mxu0
        %v3240 = vpop.f32.mrf.mxu0
        %v3241 = vadd.f32 0.0, %v3240
        %v3242 = vpop.f32.mrf.mxu0
        %3243 = vmatprep.mubr.bf16.mxu0 %v2875
        %3244 = vmatmul.mubr.bf16.gmra.mxu0 %v2859
        %v3245 = vpop.f32.mrf.mxu0
        %v3246 = vadd.f32 0.0, %v3245
        %v3247 = vpop.f32.mrf.mxu0
        %v3248 = vpop.f32.mrf.mxu0
        %v3249 = vadd.f32 0.0, %v3248
        %v3250 = vpop.f32.mrf.mxu0
        %3251 = vmatprep.mubr.bf16.mxu0 %v2876
        %3252 = vmatmul.mubr.bf16.gmra.mxu0 %v2860
        %v3253 = vpop.f32.mrf.mxu0
        %v3254 = vadd.f32 0.0, %v3253
        %v3255 = vpop.f32.mrf.mxu0
        %v3256 = vpop.f32.mrf.mxu0
        %v3257 = vadd.f32 0.0, %v3256
        %v3258 = vpop.f32.mrf.mxu0
        %3259 = vmatprep.mubr.bf16.mxu0 %v2877
        %3260 = vmatmul.mubr.bf16.gmra.mxu0 %v2861
        %v3261 = vpop.f32.mrf.mxu0
        %v3262 = vadd.f32 0.0, %v3261
        %v3263 = vpop.f32.mrf.mxu0
        %v3264 = vpop.f32.mrf.mxu0
        %v3265 = vadd.f32 0.0, %v3264
        %v3266 = vpop.f32.mrf.mxu0
        %3267 = vmatprep.mubr.bf16.mxu0 %v2878
        %3268 = vmatmul.mubr.bf16.gmra.mxu0 %v2862
        %v3269 = vpop.f32.mrf.mxu0
        %v3270 = vadd.f32 0.0, %v3269
        %v3271 = vpop.f32.mrf.mxu0
        %v3272 = vpop.f32.mrf.mxu0
        %v3273 = vadd.f32 0.0, %v3272
        %v3274 = vpop.f32.mrf.mxu0
        %3275 = vmatprep.mubr.bf16.mxu0 %v2879
        %3276 = vmatmul.mubr.bf16.gmra.mxu0 %v2863
        %v3277 = vpop.f32.mrf.mxu0
        %v3278 = vadd.f32 0.0, %v3277
        %v3279 = vpop.f32.mrf.mxu0
        %v3280 = vpop.f32.mrf.mxu0
        %v3281 = vadd.f32 0.0, %v3280
        %v3282 = vpop.f32.mrf.mxu0
        %3283 = vmatprep.mubr.bf16.mxu0 %v2880
        %3284 = vmatmul.mubr.bf16.gmra.mxu0 %v2864
        %v3285 = vpop.f32.mrf.mxu0
        %v3286 = vadd.f32 0.0, %v3285
        %v3287 = vpop.f32.mrf.mxu0
        %v3288 = vpop.f32.mrf.mxu0
        %v3289 = vadd.f32 0.0, %v3288
        %v3290 = vpop.f32.mrf.mxu0
        %3291 = vmatprep.mubr.bf16.mxu0 %v2881
        %3292 = vmatmul.mubr.bf16.gmra.mxu0 %v2865
        %v3293 = vpop.f32.mrf.mxu0
        %v3294 = vadd.f32 0.0, %v3293
        %v3295 = vpop.f32.mrf.mxu0
        %v3296 = vpop.f32.mrf.mxu0
        %v3297 = vadd.f32 0.0, %v3296
        %v3298 = vpop.f32.mrf.mxu0
        %3299 = vdwg.mxu0
        %3300 = vmatprep.subr.bf16.mxu0 0
        %3301 = vmatpush1.bf16.msra.mxu0 %v3114
        %3302 = vmatprep.subr.bf16.mxu0 0
        %3303 = vmatpush1.bf16.msra.mxu0 %v3113
        %3304 = vmatprep.subr.bf16.mxu0 0
        %3305 = vmatpush1.bf16.msra.mxu0 %v3112
        %3306 = vmatprep.subr.bf16.mxu0 0
        %3307 = vmatpush1.bf16.msra.mxu0 %v3111
        %3308 = vmatprep.subr.bf16.mxu0 0
        %3309 = vmatpush1.bf16.msra.mxu0 %v3110
        %3310 = vmatprep.subr.bf16.mxu0 0
        %3311 = vmatpush1.bf16.msra.mxu0 %v3109
        %3312 = vmatprep.subr.bf16.mxu0 0
        %3313 = vmatpush1.bf16.msra.mxu0 %v3108
        %3314 = vmatprep.subr.bf16.mxu0 0
        %3315 = vmatpush1.bf16.msra.mxu0 %v3107
        %3316 = vmatprep.subr.bf16.mxu0 0
        %3317 = vmatpush2.bf16.msra.mxu0 0
        %3318 = vmatprep.subr.bf16.mxu0 0
        %3319 = vmatpush2.bf16.msra.mxu0 0
        %3320 = vmatprep.subr.bf16.mxu0 0
        %3321 = vmatpush2.bf16.msra.mxu0 0
        %3322 = vmatprep.subr.bf16.mxu0 0
        %3323 = vmatpush2.bf16.msra.mxu0 0
        %3324 = vmatprep.subr.bf16.mxu0 0
        %3325 = vmatpush2.bf16.msra.mxu0 0
        %3326 = vmatprep.subr.bf16.mxu0 0
        %3327 = vmatpush2.bf16.msra.mxu0 0
        %3328 = vmatprep.subr.bf16.mxu0 0
        %3329 = vmatpush2.bf16.msra.mxu0 0
        %3330 = vmatprep.subr.bf16.mxu0 0
        %3331 = vmatpush2.bf16.msra.mxu0 0
        %3332 = vmatprep.mubr.bf16.mxu0 0
        %3333 = vmatmul.mubr.bf16.gmra.mxu0 %v2882
        %v3334 = vpop.f32.mrf.mxu0
        %v3335 = vadd.f32 %v3174, %v3334
        %v3336 = vpop.f32.mrf.mxu0
        %v3337 = vpop.f32.mrf.mxu0
        %v3338 = vadd.f32 %v3177, %v3337
        %v3339 = vpop.f32.mrf.mxu0
        %3340 = vmatprep.mubr.bf16.mxu0 0
        %3341 = vmatmul.mubr.bf16.gmra.mxu0 %v2883
        %v3342 = vpop.f32.mrf.mxu0
        %v3343 = vadd.f32 %v3182, %v3342
        %v3344 = vpop.f32.mrf.mxu0
        %v3345 = vpop.f32.mrf.mxu0
        %v3346 = vadd.f32 %v3185, %v3345
        %v3347 = vpop.f32.mrf.mxu0
        %3348 = vmatprep.mubr.bf16.mxu0 0
        %3349 = vmatmul.mubr.bf16.gmra.mxu0 %v2884
        %v3350 = vpop.f32.mrf.mxu0
        %v3351 = vadd.f32 %v3190, %v3350
        %v3352 = vpop.f32.mrf.mxu0
        %v3353 = vpop.f32.mrf.mxu0
        %v3354 = vadd.f32 %v3193, %v3353
        %v3355 = vpop.f32.mrf.mxu0
        %3356 = vmatprep.mubr.bf16.mxu0 0
        %3357 = vmatmul.mubr.bf16.gmra.mxu0 %v2885
        %v3358 = vpop.f32.mrf.mxu0
        %v3359 = vadd.f32 %v3198, %v3358
        %v3360 = vpop.f32.mrf.mxu0
        %v3361 = vpop.f32.mrf.mxu0
        %v3362 = vadd.f32 %v3201, %v3361
        %v3363 = vpop.f32.mrf.mxu0
        %3364 = vmatprep.mubr.bf16.mxu0 0
        %3365 = vmatmul.mubr.bf16.gmra.mxu0 %v2886
        %v3366 = vpop.f32.mrf.mxu0
        %v3367 = vadd.f32 %v3206, %v3366
        %v3368 = vpop.f32.mrf.mxu0
        %v3369 = vpop.f32.mrf.mxu0
        %v3370 = vadd.f32 %v3209, %v3369
        %v3371 = vpop.f32.mrf.mxu0
        %3372 = vmatprep.mubr.bf16.mxu0 0
        %3373 = vmatmul.mubr.bf16.gmra.mxu0 %v2887
        %v3374 = vpop.f32.mrf.mxu0
        %v3375 = vadd.f32 %v3214, %v3374
        %v3376 = vpop.f32.mrf.mxu0
        %v3377 = vpop.f32.mrf.mxu0
        %v3378 = vadd.f32 %v3217, %v3377
        %v3379 = vpop.f32.mrf.mxu0
        %3380 = vmatprep.mubr.bf16.mxu0 0
        %3381 = vmatmul.mubr.bf16.gmra.mxu0 %v2888
        %v3382 = vpop.f32.mrf.mxu0
        %v3383 = vadd.f32 %v3222, %v3382
        %v3384 = vpop.f32.mrf.mxu0
        %v3385 = vpop.f32.mrf.mxu0
        %v3386 = vadd.f32 %v3225, %v3385
        %v3387 = vpop.f32.mrf.mxu0
        %3388 = vmatprep.mubr.bf16.mxu0 0
        %3389 = vmatmul.mubr.bf16.gmra.mxu0 %v2889
        %v3390 = vpop.f32.mrf.mxu0
        %v3391 = vadd.f32 %v3230, %v3390
        %v3392 = vpop.f32.mrf.mxu0
        %v3393 = vpop.f32.mrf.mxu0
        %v3394 = vadd.f32 %v3233, %v3393
        %v3395 = vpop.f32.mrf.mxu0
        %3396 = vmatprep.mubr.bf16.mxu0 0
        %3397 = vmatmul.mubr.bf16.gmra.mxu0 %v2890
        %v3398 = vpop.f32.mrf.mxu0
        %v3399 = vadd.f32 %v3238, %v3398
        %v3400 = vpop.f32.mrf.mxu0
        %v3401 = vpop.f32.mrf.mxu0
        %v3402 = vadd.f32 %v3241, %v3401
        %v3403 = vpop.f32.mrf.mxu0
        %3404 = vmatprep.mubr.bf16.mxu0 0
        %3405 = vmatmul.mubr.bf16.gmra.mxu0 %v2891
        %v3406 = vpop.f32.mrf.mxu0
        %v3407 = vadd.f32 %v3246, %v3406
        %v3408 = vpop.f32.mrf.mxu0
        %v3409 = vpop.f32.mrf.mxu0
        %v3410 = vadd.f32 %v3249, %v3409
        %v3411 = vpop.f32.mrf.mxu0
        %3412 = vmatprep.mubr.bf16.mxu0 0
        %3413 = vmatmul.mubr.bf16.gmra.mxu0 %v2892
        %v3414 = vpop.f32.mrf.mxu0
        %v3415 = vadd.f32 %v3254, %v3414
        %v3416 = vpop.f32.mrf.mxu0
        %v3417 = vpop.f32.mrf.mxu0
        %v3418 = vadd.f32 %v3257, %v3417
        %v3419 = vpop.f32.mrf.mxu0
        %3420 = vmatprep.mubr.bf16.mxu0 0
        %3421 = vmatmul.mubr.bf16.gmra.mxu0 %v2893
        %v3422 = vpop.f32.mrf.mxu0
        %v3423 = vadd.f32 %v3262, %v3422
        %v3424 = vpop.f32.mrf.mxu0
        %v3425 = vpop.f32.mrf.mxu0
        %v3426 = vadd.f32 %v3265, %v3425
        %v3427 = vpop.f32.mrf.mxu0
        %3428 = vmatprep.mubr.bf16.mxu0 0
        %3429 = vmatmul.mubr.bf16.gmra.mxu0 %v2894
        %v3430 = vpop.f32.mrf.mxu0
        %v3431 = vadd.f32 %v3270, %v3430
        %v3432 = vpop.f32.mrf.mxu0
        %v3433 = vpop.f32.mrf.mxu0
        %v3434 = vadd.f32 %v3273, %v3433
        %v3435 = vpop.f32.mrf.mxu0
        %3436 = vmatprep.mubr.bf16.mxu0 0
        %3437 = vmatmul.mubr.bf16.gmra.mxu0 %v2895
        %v3438 = vpop.f32.mrf.mxu0
        %v3439 = vadd.f32 %v3278, %v3438
        %v3440 = vpop.f32.mrf.mxu0
        %v3441 = vpop.f32.mrf.mxu0
        %v3442 = vadd.f32 %v3281, %v3441
        %v3443 = vpop.f32.mrf.mxu0
        %3444 = vmatprep.mubr.bf16.mxu0 0
        %3445 = vmatmul.mubr.bf16.gmra.mxu0 %v2896
        %v3446 = vpop.f32.mrf.mxu0
        %v3447 = vadd.f32 %v3286, %v3446
        %v3448 = vpop.f32.mrf.mxu0
        %v3449 = vpop.f32.mrf.mxu0
        %v3450 = vadd.f32 %v3289, %v3449
        %v3451 = vpop.f32.mrf.mxu0
        %3452 = vmatprep.mubr.bf16.mxu0 0
        %3453 = vmatmul.mubr.bf16.gmra.mxu0 %v2897
        %v3454 = vpop.f32.mrf.mxu0
        %v3455 = vadd.f32 %v3294, %v3454
        %v3456 = vpop.f32.mrf.mxu0
        %v3457 = vpop.f32.mrf.mxu0
        %v3458 = vadd.f32 %v3297, %v3457
        %v3459 = vpop.f32.mrf.mxu0
        %3460 = vdwg.mxu0
        %v3509 = vunpack.c.l.b16 %v2898
        %v3510 = vunpack.c.l.b16 %v2899
        %v3511 = vunpack.c.l.b16 %v2900
        %v3512 = vunpack.c.l.b16 %v2901
        %v3513 = vunpack.c.l.b16 %v2902
        %v3514 = vunpack.c.l.b16 %v2903
        %v3515 = vunpack.c.l.b16 %v2904
        %v3516 = vunpack.c.l.b16 %v2905
        %v3517 = vunpack.c.l.b16 %v2906
        %v3518 = vunpack.c.l.b16 %v2907
        %v3519 = vunpack.c.l.b16 %v2908
        %v3520 = vunpack.c.l.b16 %v2909
        %v3521 = vunpack.c.l.b16 %v2910
        %v3522 = vunpack.c.l.b16 %v2911
        %v3523 = vunpack.c.l.b16 %v2912
        %v3524 = vunpack.c.l.b16 %v2913
        %v3525 = vunpack.c.l.b16 %v2914
        %v3526 = vunpack.c.l.b16 %v2915
        %v3527 = vunpack.c.l.b16 %v2916
        %v3528 = vunpack.c.l.b16 %v2917
        %v3529 = vunpack.c.l.b16 %v2918
        %v3530 = vunpack.c.l.b16 %v2919
        %v3531 = vunpack.c.l.b16 %v2920
        %v3532 = vunpack.c.l.b16 %v2921
        %v3533 = vunpack.c.l.b16 %v2922
        %v3534 = vunpack.c.l.b16 %v2923
        %v3535 = vunpack.c.l.b16 %v2924
        %v3536 = vunpack.c.l.b16 %v2925
        %v3537 = vunpack.c.l.b16 %v2926
        %v3538 = vunpack.c.l.b16 %v2927
        %v3539 = vunpack.c.l.b16 %v2928
        %v3540 = vunpack.c.l.b16 %v2929
        %v3541 = vunpack.c.l.b16 %v2930
        %v3542 = vunpack.c.l.b16 %v2931
        %v3543 = vunpack.c.l.b16 %v2932
        %v3544 = vunpack.c.l.b16 %v2933
        %v3545 = vunpack.c.l.b16 %v2934
        %v3546 = vunpack.c.l.b16 %v2935
        %v3547 = vunpack.c.l.b16 %v2936
        %v3548 = vunpack.c.l.b16 %v2937
        %v3549 = vunpack.c.l.b16 %v2938
        %v3550 = vunpack.c.l.b16 %v2939
        %v3551 = vunpack.c.l.b16 %v2940
        %v3552 = vunpack.c.l.b16 %v2941
        %v3553 = vunpack.c.l.b16 %v2942
        %v3554 = vunpack.c.l.b16 %v2943
        %v3555 = vunpack.c.l.b16 %v2944
        %v3556 = vunpack.c.l.b16 %v2945
        %v3557 = vpack.c.b16 %v3510, %v3509
        %v3558 = vpack.c.b16 %v3512, %v3511
        %v3559 = vpack.c.b16 %v3514, %v3513
        %v3560 = vpack.c.b16 %v3516, %v3515
        %v3561 = vpack.c.b16 %v3518, %v3517
        %v3562 = vpack.c.b16 %v3520, %v3519
        %v3563 = vpack.c.b16 %v3522, %v3521
        %v3564 = vpack.c.b16 %v3524, %v3523
        %v3565 = vpack.c.b16 %v3526, %v3525
        %v3566 = vpack.c.b16 %v3528, %v3527
        %v3567 = vpack.c.b16 %v3530, %v3529
        %v3568 = vpack.c.b16 %v3532, %v3531
        %v3569 = vpack.c.b16 %v3534, %v3533
        %v3570 = vpack.c.b16 %v3536, %v3535
        %v3571 = vpack.c.b16 %v3538, %v3537
        %v3572 = vpack.c.b16 %v3540, %v3539
        %v3573 = vpack.c.b16 %v3542, %v3541
        %v3574 = vpack.c.b16 %v3544, %v3543
        %v3575 = vpack.c.b16 %v3546, %v3545
        %v3576 = vpack.c.b16 %v3548, %v3547
        %v3577 = vpack.c.b16 %v3550, %v3549
        %v3578 = vpack.c.b16 %v3552, %v3551
        %v3579 = vpack.c.b16 %v3554, %v3553
        %v3580 = vpack.c.b16 %v3556, %v3555
        %3605 = vmatprep.subr.bf16.mxu0 0
        %3606 = vmatpush1.bf16.msra.mxu0 %v3564
        %3607 = vmatprep.subr.bf16.mxu0 0
        %3608 = vmatpush1.bf16.msra.mxu0 %v3563
        %3609 = vmatprep.subr.bf16.mxu0 0
        %3610 = vmatpush1.bf16.msra.mxu0 %v3562
        %3611 = vmatprep.subr.bf16.mxu0 0
        %3612 = vmatpush1.bf16.msra.mxu0 %v3561
        %3613 = vmatprep.subr.bf16.mxu0 0
        %3614 = vmatpush1.bf16.msra.mxu0 %v3560
        %3615 = vmatprep.subr.bf16.mxu0 0
        %3616 = vmatpush1.bf16.msra.mxu0 %v3559
        %3617 = vmatprep.subr.bf16.mxu0 0
        %3618 = vmatpush1.bf16.msra.mxu0 %v3558
        %3619 = vmatprep.subr.bf16.mxu0 0
        %3620 = vmatpush1.bf16.msra.mxu0 %v3557
        %3621 = vmatprep.subr.bf16.mxu0 0
        %3622 = vmatpush2.bf16.msra.mxu0 %v3572
        %3623 = vmatprep.subr.bf16.mxu0 0
        %3624 = vmatpush2.bf16.msra.mxu0 %v3571
        %3625 = vmatprep.subr.bf16.mxu0 0
        %3626 = vmatpush2.bf16.msra.mxu0 %v3570
        %3627 = vmatprep.subr.bf16.mxu0 0
        %3628 = vmatpush2.bf16.msra.mxu0 %v3569
        %3629 = vmatprep.subr.bf16.mxu0 0
        %3630 = vmatpush2.bf16.msra.mxu0 %v3568
        %3631 = vmatprep.subr.bf16.mxu0 0
        %3632 = vmatpush2.bf16.msra.mxu0 %v3567
        %3633 = vmatprep.subr.bf16.mxu0 0
        %3634 = vmatpush2.bf16.msra.mxu0 %v3566
        %3635 = vmatprep.subr.bf16.mxu0 0
        %3636 = vmatpush2.bf16.msra.mxu0 %v3565
        %3637 = vmatprep.mubr.bf16.mxu0 0
        %3638 = vmatmul.mubr.bf16.gmra.mxu0 0
        %v3639 = vpop.f32.mrf.mxu0
        %v3640 = vadd.f32 %v3335, %v3639
        %v3641 = vpop.f32.mrf.mxu0
        %v3642 = vpop.f32.mrf.mxu0
        %v3643 = vadd.f32 %v3338, %v3642
        %v3644 = vpop.f32.mrf.mxu0
        %3645 = vmatprep.mubr.bf16.mxu0 %v2866
        %3646 = vmatmul.mubr.bf16.gmra.mxu0 %v2850
        %v3647 = vpop.f32.mrf.mxu0
        %v3648 = vadd.f32 %v3343, %v3647
        %v3649 = vpop.f32.mrf.mxu0
        %v3650 = vpop.f32.mrf.mxu0
        %v3651 = vadd.f32 %v3346, %v3650
        %v3652 = vpop.f32.mrf.mxu0
        %3653 = vmatprep.mubr.bf16.mxu0 %v2867
        %3654 = vmatmul.mubr.bf16.gmra.mxu0 %v2851
        %v3655 = vpop.f32.mrf.mxu0
        %v3656 = vadd.f32 %v3351, %v3655
        %v3657 = vpop.f32.mrf.mxu0
        %v3658 = vpop.f32.mrf.mxu0
        %v3659 = vadd.f32 %v3354, %v3658
        %v3660 = vpop.f32.mrf.mxu0
        %3661 = vmatprep.mubr.bf16.mxu0 %v2868
        %3662 = vmatmul.mubr.bf16.gmra.mxu0 %v2852
        %v3663 = vpop.f32.mrf.mxu0
        %v3664 = vadd.f32 %v3359, %v3663
        %v3665 = vpop.f32.mrf.mxu0
        %v3666 = vpop.f32.mrf.mxu0
        %v3667 = vadd.f32 %v3362, %v3666
        %v3668 = vpop.f32.mrf.mxu0
        %3669 = vmatprep.mubr.bf16.mxu0 %v2869
        %3670 = vmatmul.mubr.bf16.gmra.mxu0 %v2853
        %v3671 = vpop.f32.mrf.mxu0
        %v3672 = vadd.f32 %v3367, %v3671
        %v3673 = vpop.f32.mrf.mxu0
        %v3674 = vpop.f32.mrf.mxu0
        %v3675 = vadd.f32 %v3370, %v3674
        %v3676 = vpop.f32.mrf.mxu0
        %3677 = vmatprep.mubr.bf16.mxu0 %v2870
        %3678 = vmatmul.mubr.bf16.gmra.mxu0 %v2854
        %v3679 = vpop.f32.mrf.mxu0
        %v3680 = vadd.f32 %v3375, %v3679
        %v3681 = vpop.f32.mrf.mxu0
        %v3682 = vpop.f32.mrf.mxu0
        %v3683 = vadd.f32 %v3378, %v3682
        %v3684 = vpop.f32.mrf.mxu0
        %3685 = vmatprep.mubr.bf16.mxu0 %v2871
        %3686 = vmatmul.mubr.bf16.gmra.mxu0 %v2855
        %v3687 = vpop.f32.mrf.mxu0
        %v3688 = vadd.f32 %v3383, %v3687
        %v3689 = vpop.f32.mrf.mxu0
        %v3690 = vpop.f32.mrf.mxu0
        %v3691 = vadd.f32 %v3386, %v3690
        %v3692 = vpop.f32.mrf.mxu0
        %3693 = vmatprep.mubr.bf16.mxu0 %v2872
        %3694 = vmatmul.mubr.bf16.gmra.mxu0 %v2856
        %v3695 = vpop.f32.mrf.mxu0
        %v3696 = vadd.f32 %v3391, %v3695
        %v3697 = vpop.f32.mrf.mxu0
        %v3698 = vpop.f32.mrf.mxu0
        %v3699 = vadd.f32 %v3394, %v3698
        %v3700 = vpop.f32.mrf.mxu0
        %3701 = vmatprep.mubr.bf16.mxu0 %v2873
        %3702 = vmatmul.mubr.bf16.gmra.mxu0 %v2857
        %v3703 = vpop.f32.mrf.mxu0
        %v3704 = vadd.f32 %v3399, %v3703
        %v3705 = vpop.f32.mrf.mxu0
        %v3706 = vpop.f32.mrf.mxu0
        %v3707 = vadd.f32 %v3402, %v3706
        %v3708 = vpop.f32.mrf.mxu0
        %3709 = vmatprep.mubr.bf16.mxu0 %v2874
        %3710 = vmatmul.mubr.bf16.gmra.mxu0 %v2858
        %v3711 = vpop.f32.mrf.mxu0
        %v3712 = vadd.f32 %v3407, %v3711
        %v3713 = vpop.f32.mrf.mxu0
        %v3714 = vpop.f32.mrf.mxu0
        %v3715 = vadd.f32 %v3410, %v3714
        %v3716 = vpop.f32.mrf.mxu0
        %3717 = vmatprep.mubr.bf16.mxu0 %v2875
        %3718 = vmatmul.mubr.bf16.gmra.mxu0 %v2859
        %v3719 = vpop.f32.mrf.mxu0
        %v3720 = vadd.f32 %v3415, %v3719
        %v3721 = vpop.f32.mrf.mxu0
        %v3722 = vpop.f32.mrf.mxu0
        %v3723 = vadd.f32 %v3418, %v3722
        %v3724 = vpop.f32.mrf.mxu0
        %3725 = vmatprep.mubr.bf16.mxu0 %v2876
        %3726 = vmatmul.mubr.bf16.gmra.mxu0 %v2860
        %v3727 = vpop.f32.mrf.mxu0
        %v3728 = vadd.f32 %v3423, %v3727
        %v3729 = vpop.f32.mrf.mxu0
        %v3730 = vpop.f32.mrf.mxu0
        %v3731 = vadd.f32 %v3426, %v3730
        %v3732 = vpop.f32.mrf.mxu0
        %3733 = vmatprep.mubr.bf16.mxu0 %v2877
        %3734 = vmatmul.mubr.bf16.gmra.mxu0 %v2861
        %v3735 = vpop.f32.mrf.mxu0
        %v3736 = vadd.f32 %v3431, %v3735
        %v3737 = vpop.f32.mrf.mxu0
        %v3738 = vpop.f32.mrf.mxu0
        %v3739 = vadd.f32 %v3434, %v3738
        %v3740 = vpop.f32.mrf.mxu0
        %3741 = vmatprep.mubr.bf16.mxu0 %v2878
        %3742 = vmatmul.mubr.bf16.gmra.mxu0 %v2862
        %v3743 = vpop.f32.mrf.mxu0
        %v3744 = vadd.f32 %v3439, %v3743
        %v3745 = vpop.f32.mrf.mxu0
        %v3746 = vpop.f32.mrf.mxu0
        %v3747 = vadd.f32 %v3442, %v3746
        %v3748 = vpop.f32.mrf.mxu0
        %3749 = vmatprep.mubr.bf16.mxu0 %v2879
        %3750 = vmatmul.mubr.bf16.gmra.mxu0 %v2863
        %v3751 = vpop.f32.mrf.mxu0
        %v3752 = vadd.f32 %v3447, %v3751
        %v3753 = vpop.f32.mrf.mxu0
        %v3754 = vpop.f32.mrf.mxu0
        %v3755 = vadd.f32 %v3450, %v3754
        %v3756 = vpop.f32.mrf.mxu0
        %3757 = vmatprep.mubr.bf16.mxu0 %v2880
        %3758 = vmatmul.mubr.bf16.gmra.mxu0 %v2864
        %v3759 = vpop.f32.mrf.mxu0
        %v3760 = vadd.f32 %v3455, %v3759
        %v3761 = vpop.f32.mrf.mxu0
        %v3762 = vpop.f32.mrf.mxu0
        %v3763 = vadd.f32 %v3458, %v3762
        %v3764 = vpop.f32.mrf.mxu0
        %3765 = vdwg.mxu0
        %3766 = vmatprep.subr.bf16.mxu0 0
        %3767 = vmatpush1.bf16.msra.mxu0 %v3580
        %3768 = vmatprep.subr.bf16.mxu0 0
        %3769 = vmatpush1.bf16.msra.mxu0 %v3579
        %3770 = vmatprep.subr.bf16.mxu0 0
        %3771 = vmatpush1.bf16.msra.mxu0 %v3578
        %3772 = vmatprep.subr.bf16.mxu0 0
        %3773 = vmatpush1.bf16.msra.mxu0 %v3577
        %3774 = vmatprep.subr.bf16.mxu0 0
        %3775 = vmatpush1.bf16.msra.mxu0 %v3576
        %3776 = vmatprep.subr.bf16.mxu0 0
        %3777 = vmatpush1.bf16.msra.mxu0 %v3575
        %3778 = vmatprep.subr.bf16.mxu0 0
        %3779 = vmatpush1.bf16.msra.mxu0 %v3574
        %3780 = vmatprep.subr.bf16.mxu0 0
        %3781 = vmatpush1.bf16.msra.mxu0 %v3573
        %3782 = vmatprep.subr.bf16.mxu0 0
        %3783 = vmatpush2.bf16.msra.mxu0 0
        %3784 = vmatprep.subr.bf16.mxu0 0
        %3785 = vmatpush2.bf16.msra.mxu0 0
        %3786 = vmatprep.subr.bf16.mxu0 0
        %3787 = vmatpush2.bf16.msra.mxu0 0
        %3788 = vmatprep.subr.bf16.mxu0 0
        %3789 = vmatpush2.bf16.msra.mxu0 0
        %3790 = vmatprep.subr.bf16.mxu0 0
        %3791 = vmatpush2.bf16.msra.mxu0 0
        %3792 = vmatprep.subr.bf16.mxu0 0
        %3793 = vmatpush2.bf16.msra.mxu0 0
        %3794 = vmatprep.subr.bf16.mxu0 0
        %3795 = vmatpush2.bf16.msra.mxu0 0
        %3796 = vmatprep.subr.bf16.mxu0 0
        %3797 = vmatpush2.bf16.msra.mxu0 0
        %3798 = vmatprep.mubr.bf16.mxu0 0
        %3799 = vmatmul.mubr.bf16.gmra.mxu0 0
        %v3800 = vpop.f32.mrf.mxu0
        %v3801 = vadd.f32 %v3640, %v3800
        %v3802 = vpop.f32.mrf.mxu0
        %v3803 = vpop.f32.mrf.mxu0
        %v3804 = vadd.f32 %v3643, %v3803
        %v3805 = vpop.f32.mrf.mxu0
        %3806 = vmatprep.mubr.bf16.mxu0 0
        %3807 = vmatmul.mubr.bf16.gmra.mxu0 %v2882
        %v3808 = vpop.f32.mrf.mxu0
        %v3809 = vadd.f32 %v3648, %v3808
        %v3810 = vpop.f32.mrf.mxu0
        %v3811 = vpop.f32.mrf.mxu0
        %v3812 = vadd.f32 %v3651, %v3811
        %v3813 = vpop.f32.mrf.mxu0
        %3814 = vmatprep.mubr.bf16.mxu0 0
        %3815 = vmatmul.mubr.bf16.gmra.mxu0 %v2883
        %v3816 = vpop.f32.mrf.mxu0
        %v3817 = vadd.f32 %v3656, %v3816
        %v3818 = vpop.f32.mrf.mxu0
        %v3819 = vpop.f32.mrf.mxu0
        %v3820 = vadd.f32 %v3659, %v3819
        %v3821 = vpop.f32.mrf.mxu0
        %3822 = vmatprep.mubr.bf16.mxu0 0
        %3823 = vmatmul.mubr.bf16.gmra.mxu0 %v2884
        %v3824 = vpop.f32.mrf.mxu0
        %v3825 = vadd.f32 %v3664, %v3824
        %v3826 = vpop.f32.mrf.mxu0
        %v3827 = vpop.f32.mrf.mxu0
        %v3828 = vadd.f32 %v3667, %v3827
        %v3829 = vpop.f32.mrf.mxu0
        %3830 = vmatprep.mubr.bf16.mxu0 0
        %3831 = vmatmul.mubr.bf16.gmra.mxu0 %v2885
        %v3832 = vpop.f32.mrf.mxu0
        %v3833 = vadd.f32 %v3672, %v3832
        %v3834 = vpop.f32.mrf.mxu0
        %v3835 = vpop.f32.mrf.mxu0
        %v3836 = vadd.f32 %v3675, %v3835
        %v3837 = vpop.f32.mrf.mxu0
        %3838 = vmatprep.mubr.bf16.mxu0 0
        %3839 = vmatmul.mubr.bf16.gmra.mxu0 %v2886
        %v3840 = vpop.f32.mrf.mxu0
        %v3841 = vadd.f32 %v3680, %v3840
        %v3842 = vpop.f32.mrf.mxu0
        %v3843 = vpop.f32.mrf.mxu0
        %v3844 = vadd.f32 %v3683, %v3843
        %v3845 = vpop.f32.mrf.mxu0
        %3846 = vmatprep.mubr.bf16.mxu0 0
        %3847 = vmatmul.mubr.bf16.gmra.mxu0 %v2887
        %v3848 = vpop.f32.mrf.mxu0
        %v3849 = vadd.f32 %v3688, %v3848
        %v3850 = vpop.f32.mrf.mxu0
        %v3851 = vpop.f32.mrf.mxu0
        %v3852 = vadd.f32 %v3691, %v3851
        %v3853 = vpop.f32.mrf.mxu0
        %3854 = vmatprep.mubr.bf16.mxu0 0
        %3855 = vmatmul.mubr.bf16.gmra.mxu0 %v2888
        %v3856 = vpop.f32.mrf.mxu0
        %v3857 = vadd.f32 %v3696, %v3856
        %v3858 = vpop.f32.mrf.mxu0
        %v3859 = vpop.f32.mrf.mxu0
        %v3860 = vadd.f32 %v3699, %v3859
        %v3861 = vpop.f32.mrf.mxu0
        %3862 = vmatprep.mubr.bf16.mxu0 0
        %3863 = vmatmul.mubr.bf16.gmra.mxu0 %v2889
        %v3864 = vpop.f32.mrf.mxu0
        %v3865 = vadd.f32 %v3704, %v3864
        %v3866 = vpop.f32.mrf.mxu0
        %v3867 = vpop.f32.mrf.mxu0
        %v3868 = vadd.f32 %v3707, %v3867
        %v3869 = vpop.f32.mrf.mxu0
        %3870 = vmatprep.mubr.bf16.mxu0 0
        %3871 = vmatmul.mubr.bf16.gmra.mxu0 %v2890
        %v3872 = vpop.f32.mrf.mxu0
        %v3873 = vadd.f32 %v3712, %v3872
        %v3874 = vpop.f32.mrf.mxu0
        %v3875 = vpop.f32.mrf.mxu0
        %v3876 = vadd.f32 %v3715, %v3875
        %v3877 = vpop.f32.mrf.mxu0
        %3878 = vmatprep.mubr.bf16.mxu0 0
        %3879 = vmatmul.mubr.bf16.gmra.mxu0 %v2891
        %v3880 = vpop.f32.mrf.mxu0
        %v3881 = vadd.f32 %v3720, %v3880
        %v3882 = vpop.f32.mrf.mxu0
        %v3883 = vpop.f32.mrf.mxu0
        %v3884 = vadd.f32 %v3723, %v3883
        %v3885 = vpop.f32.mrf.mxu0
        %3886 = vmatprep.mubr.bf16.mxu0 0
        %3887 = vmatmul.mubr.bf16.gmra.mxu0 %v2892
        %v3888 = vpop.f32.mrf.mxu0
        %v3889 = vadd.f32 %v3728, %v3888
        %v3890 = vpop.f32.mrf.mxu0
        %v3891 = vpop.f32.mrf.mxu0
        %v3892 = vadd.f32 %v3731, %v3891
        %v3893 = vpop.f32.mrf.mxu0
        %3894 = vmatprep.mubr.bf16.mxu0 0
        %3895 = vmatmul.mubr.bf16.gmra.mxu0 %v2893
        %v3896 = vpop.f32.mrf.mxu0
        %v3897 = vadd.f32 %v3736, %v3896
        %v3898 = vpop.f32.mrf.mxu0
        %v3899 = vpop.f32.mrf.mxu0
        %v3900 = vadd.f32 %v3739, %v3899
        %v3901 = vpop.f32.mrf.mxu0
        %3902 = vmatprep.mubr.bf16.mxu0 0
        %3903 = vmatmul.mubr.bf16.gmra.mxu0 %v2894
        %v3904 = vpop.f32.mrf.mxu0
        %v3905 = vadd.f32 %v3744, %v3904
        %v3906 = vpop.f32.mrf.mxu0
        %v3907 = vpop.f32.mrf.mxu0
        %v3908 = vadd.f32 %v3747, %v3907
        %v3909 = vpop.f32.mrf.mxu0
        %3910 = vmatprep.mubr.bf16.mxu0 0
        %3911 = vmatmul.mubr.bf16.gmra.mxu0 %v2895
        %v3912 = vpop.f32.mrf.mxu0
        %v3913 = vadd.f32 %v3752, %v3912
        %v3914 = vpop.f32.mrf.mxu0
        %v3915 = vpop.f32.mrf.mxu0
        %v3916 = vadd.f32 %v3755, %v3915
        %v3917 = vpop.f32.mrf.mxu0
        %3918 = vmatprep.mubr.bf16.mxu0 0
        %3919 = vmatmul.mubr.bf16.gmra.mxu0 %v2896
        %v3920 = vpop.f32.mrf.mxu0
        %v3921 = vadd.f32 %v3760, %v3920
        %v3922 = vpop.f32.mrf.mxu0
        %v3923 = vpop.f32.mrf.mxu0
        %v3924 = vadd.f32 %v3763, %v3923
        %v3925 = vpop.f32.mrf.mxu0
        %3926 = vdwg.mxu0
        %s3927 = scalar_lea.vmem %s3, 384
        %v3928 = vld [vmem:[%s3927] sm:$0xf]
        %v3929 = vld [vmem:[%s3927 + $0x4] sm:$0xf]
        %v3930 = vld [vmem:[%s3927 + $0x8] sm:$0xf]
        %v3931 = vld [vmem:[%s3927 + $0xc] sm:$0xf]
        %v3932 = vld [vmem:[%s3927 + $0x10] sm:$0xf]
        %v3933 = vld [vmem:[%s3927 + $0x14] sm:$0xf]
        %v3934 = vld [vmem:[%s3927 + $0x18] sm:$0xf]
        %v3935 = vld [vmem:[%s3927 + $0x1c] sm:$0xf]
        %v3936 = vld [vmem:[%s3927 + $0x20] sm:$0xf]
        %v3937 = vld [vmem:[%s3927 + $0x24] sm:$0xf]
        %v3938 = vld [vmem:[%s3927 + $0x28] sm:$0xf]
        %v3939 = vld [vmem:[%s3927 + $0x2c] sm:$0xf]
        %v3940 = vld [vmem:[%s3927 + $0x30] sm:$0xf]
        %v3941 = vld [vmem:[%s3927 + $0x34] sm:$0xf]
        %v3942 = vld [vmem:[%s3927 + $0x38] sm:$0xf]
        %v3943 = vld [vmem:[%s3927 + $0x3c] sm:$0xf]
        %v3944 = vld [vmem:[%s3927 + $0x40] sm:$0xf]
        %v3945 = vld [vmem:[%s3927 + $0x44] sm:$0xf]
        %v3946 = vld [vmem:[%s3927 + $0x48] sm:$0xf]
        %v3947 = vld [vmem:[%s3927 + $0x4c] sm:$0xf]
        %v3948 = vld [vmem:[%s3927 + $0x50] sm:$0xf]
        %v3949 = vld [vmem:[%s3927 + $0x54] sm:$0xf]
        %v3950 = vld [vmem:[%s3927 + $0x58] sm:$0xf]
        %v3951 = vld [vmem:[%s3927 + $0x5c] sm:$0xf]
        %v3952 = vld [vmem:[%s3927 + $0x60] sm:$0xf]
        %v3953 = vld [vmem:[%s3927 + $0x64] sm:$0xf]
        %v3954 = vld [vmem:[%s3927 + $0x68] sm:$0xf]
        %v3955 = vld [vmem:[%s3927 + $0x6c] sm:$0xf]
        %v3956 = vld [vmem:[%s3927 + $0x70] sm:$0xf]
        %v3957 = vld [vmem:[%s3927 + $0x74] sm:$0xf]
        %v3958 = vld [vmem:[%s3927 + $0x78] sm:$0xf]
        %v3959 = vld [vmem:[%s3927 + $0x7c] sm:$0xf]
        %v3960 = vld [vmem:[%s3927 + $0x80] sm:$0xf]
        %v3961 = vld [vmem:[%s3927 + $0x84] sm:$0xf]
        %v3962 = vld [vmem:[%s3927 + $0x88] sm:$0xf]
        %v3963 = vld [vmem:[%s3927 + $0x8c] sm:$0xf]
        %v3964 = vld [vmem:[%s3927 + $0x90] sm:$0xf]
        %v3965 = vld [vmem:[%s3927 + $0x94] sm:$0xf]
        %v3966 = vld [vmem:[%s3927 + $0x98] sm:$0xf]
        %v3967 = vld [vmem:[%s3927 + $0x9c] sm:$0xf]
        %v3968 = vld [vmem:[%s3927 + $0xa0] sm:$0xf]
        %v3969 = vld [vmem:[%s3927 + $0xa4] sm:$0xf]
        %v3970 = vld [vmem:[%s3927 + $0xa8] sm:$0xf]
        %v3971 = vld [vmem:[%s3927 + $0xac] sm:$0xf]
        %v3972 = vld [vmem:[%s3927 + $0xb0] sm:$0xf]
        %v3973 = vld [vmem:[%s3927 + $0xb4] sm:$0xf]
        %v3974 = vld [vmem:[%s3927 + $0xb8] sm:$0xf]
        %v3975 = vld [vmem:[%s3927 + $0xbc] sm:$0xf]
        %v4024 = vunpack.c.l.b16 %v3928
        %v4025 = vunpack.c.l.b16 %v3929
        %v4026 = vunpack.c.l.b16 %v3930
        %v4027 = vunpack.c.l.b16 %v3931
        %v4028 = vunpack.c.l.b16 %v3932
        %v4029 = vunpack.c.l.b16 %v3933
        %v4030 = vunpack.c.l.b16 %v3934
        %v4031 = vunpack.c.l.b16 %v3935
        %v4032 = vunpack.c.l.b16 %v3936
        %v4033 = vunpack.c.l.b16 %v3937
        %v4034 = vunpack.c.l.b16 %v3938
        %v4035 = vunpack.c.l.b16 %v3939
        %v4036 = vunpack.c.l.b16 %v3940
        %v4037 = vunpack.c.l.b16 %v3941
        %v4038 = vunpack.c.l.b16 %v3942
        %v4039 = vunpack.c.l.b16 %v3943
        %v4040 = vunpack.c.l.b16 %v3944
        %v4041 = vunpack.c.l.b16 %v3945
        %v4042 = vunpack.c.l.b16 %v3946
        %v4043 = vunpack.c.l.b16 %v3947
        %v4044 = vunpack.c.l.b16 %v3948
        %v4045 = vunpack.c.l.b16 %v3949
        %v4046 = vunpack.c.l.b16 %v3950
        %v4047 = vunpack.c.l.b16 %v3951
        %v4048 = vunpack.c.l.b16 %v3952
        %v4049 = vunpack.c.l.b16 %v3953
        %v4050 = vunpack.c.l.b16 %v3954
        %v4051 = vunpack.c.l.b16 %v3955
        %v4052 = vunpack.c.l.b16 %v3956
        %v4053 = vunpack.c.l.b16 %v3957
        %v4054 = vunpack.c.l.b16 %v3958
        %v4055 = vunpack.c.l.b16 %v3959
        %v4056 = vunpack.c.l.b16 %v3960
        %v4057 = vunpack.c.l.b16 %v3961
        %v4058 = vunpack.c.l.b16 %v3962
        %v4059 = vunpack.c.l.b16 %v3963
        %v4060 = vunpack.c.l.b16 %v3964
        %v4061 = vunpack.c.l.b16 %v3965
        %v4062 = vunpack.c.l.b16 %v3966
        %v4063 = vunpack.c.l.b16 %v3967
        %v4064 = vunpack.c.l.b16 %v3968
        %v4065 = vunpack.c.l.b16 %v3969
        %v4066 = vunpack.c.l.b16 %v3970
        %v4067 = vunpack.c.l.b16 %v3971
        %v4068 = vunpack.c.l.b16 %v3972
        %v4069 = vunpack.c.l.b16 %v3973
        %v4070 = vunpack.c.l.b16 %v3974
        %v4071 = vunpack.c.l.b16 %v3975
        %v4072 = vpack.c.b16 %v4025, %v4024
        %v4073 = vpack.c.b16 %v4027, %v4026
        %v4074 = vpack.c.b16 %v4029, %v4028
        %v4075 = vpack.c.b16 %v4031, %v4030
        %v4076 = vpack.c.b16 %v4033, %v4032
        %v4077 = vpack.c.b16 %v4035, %v4034
        %v4078 = vpack.c.b16 %v4037, %v4036
        %v4079 = vpack.c.b16 %v4039, %v4038
        %v4080 = vpack.c.b16 %v4041, %v4040
        %v4081 = vpack.c.b16 %v4043, %v4042
        %v4082 = vpack.c.b16 %v4045, %v4044
        %v4083 = vpack.c.b16 %v4047, %v4046
        %v4084 = vpack.c.b16 %v4049, %v4048
        %v4085 = vpack.c.b16 %v4051, %v4050
        %v4086 = vpack.c.b16 %v4053, %v4052
        %v4087 = vpack.c.b16 %v4055, %v4054
        %v4088 = vpack.c.b16 %v4057, %v4056
        %v4089 = vpack.c.b16 %v4059, %v4058
        %v4090 = vpack.c.b16 %v4061, %v4060
        %v4091 = vpack.c.b16 %v4063, %v4062
        %v4092 = vpack.c.b16 %v4065, %v4064
        %v4093 = vpack.c.b16 %v4067, %v4066
        %v4094 = vpack.c.b16 %v4069, %v4068
        %v4095 = vpack.c.b16 %v4071, %v4070
        %4120 = vmatprep.subr.bf16.mxu0 0
        %4121 = vmatpush1.bf16.msra.mxu0 %v4079
        %4122 = vmatprep.subr.bf16.mxu0 0
        %4123 = vmatpush1.bf16.msra.mxu0 %v4078
        %4124 = vmatprep.subr.bf16.mxu0 0
        %4125 = vmatpush1.bf16.msra.mxu0 %v4077
        %4126 = vmatprep.subr.bf16.mxu0 0
        %4127 = vmatpush1.bf16.msra.mxu0 %v4076
        %4128 = vmatprep.subr.bf16.mxu0 0
        %4129 = vmatpush1.bf16.msra.mxu0 %v4075
        %4130 = vmatprep.subr.bf16.mxu0 0
        %4131 = vmatpush1.bf16.msra.mxu0 %v4074
        %4132 = vmatprep.subr.bf16.mxu0 0
        %4133 = vmatpush1.bf16.msra.mxu0 %v4073
        %4134 = vmatprep.subr.bf16.mxu0 0
        %4135 = vmatpush1.bf16.msra.mxu0 %v4072
        %4136 = vmatprep.subr.bf16.mxu0 0
        %4137 = vmatpush2.bf16.msra.mxu0 %v4087
        %4138 = vmatprep.subr.bf16.mxu0 0
        %4139 = vmatpush2.bf16.msra.mxu0 %v4086
        %4140 = vmatprep.subr.bf16.mxu0 0
        %4141 = vmatpush2.bf16.msra.mxu0 %v4085
        %4142 = vmatprep.subr.bf16.mxu0 0
        %4143 = vmatpush2.bf16.msra.mxu0 %v4084
        %4144 = vmatprep.subr.bf16.mxu0 0
        %4145 = vmatpush2.bf16.msra.mxu0 %v4083
        %4146 = vmatprep.subr.bf16.mxu0 0
        %4147 = vmatpush2.bf16.msra.mxu0 %v4082
        %4148 = vmatprep.subr.bf16.mxu0 0
        %4149 = vmatpush2.bf16.msra.mxu0 %v4081
        %4150 = vmatprep.subr.bf16.mxu0 0
        %4151 = vmatpush2.bf16.msra.mxu0 %v4080
        %4152 = vmatprep.mubr.bf16.mxu0 %v2867
        %4153 = vmatmul.mubr.bf16.gmra.mxu0 %v2851
        %v4154 = vpop.f32.mrf.mxu0
        %v4155 = vadd.f32 0.0, %v4154
        %v4156 = vpop.f32.mrf.mxu0
        %v4157 = vpop.f32.mrf.mxu0
        %v4158 = vadd.f32 0.0, %v4157
        %v4159 = vpop.f32.mrf.mxu0
        %4160 = vmatprep.mubr.bf16.mxu0 %v2868
        %4161 = vmatmul.mubr.bf16.gmra.mxu0 %v2852
        %v4162 = vpop.f32.mrf.mxu0
        %v4163 = vadd.f32 0.0, %v4162
        %v4164 = vpop.f32.mrf.mxu0
        %v4165 = vpop.f32.mrf.mxu0
        %v4166 = vadd.f32 0.0, %v4165
        %v4167 = vpop.f32.mrf.mxu0
        %4168 = vmatprep.mubr.bf16.mxu0 %v2869
        %4169 = vmatmul.mubr.bf16.gmra.mxu0 %v2853
        %v4170 = vpop.f32.mrf.mxu0
        %v4171 = vadd.f32 0.0, %v4170
        %v4172 = vpop.f32.mrf.mxu0
        %v4173 = vpop.f32.mrf.mxu0
        %v4174 = vadd.f32 0.0, %v4173
        %v4175 = vpop.f32.mrf.mxu0
        %4176 = vmatprep.mubr.bf16.mxu0 %v2870
        %4177 = vmatmul.mubr.bf16.gmra.mxu0 %v2854
        %v4178 = vpop.f32.mrf.mxu0
        %v4179 = vadd.f32 0.0, %v4178
        %v4180 = vpop.f32.mrf.mxu0
        %v4181 = vpop.f32.mrf.mxu0
        %v4182 = vadd.f32 0.0, %v4181
        %v4183 = vpop.f32.mrf.mxu0
        %4184 = vmatprep.mubr.bf16.mxu0 %v2871
        %4185 = vmatmul.mubr.bf16.gmra.mxu0 %v2855
        %v4186 = vpop.f32.mrf.mxu0
        %v4187 = vadd.f32 0.0, %v4186
        %v4188 = vpop.f32.mrf.mxu0
        %v4189 = vpop.f32.mrf.mxu0
        %v4190 = vadd.f32 0.0, %v4189
        %v4191 = vpop.f32.mrf.mxu0
        %4192 = vmatprep.mubr.bf16.mxu0 %v2872
        %4193 = vmatmul.mubr.bf16.gmra.mxu0 %v2856
        %v4194 = vpop.f32.mrf.mxu0
        %v4195 = vadd.f32 0.0, %v4194
        %v4196 = vpop.f32.mrf.mxu0
        %v4197 = vpop.f32.mrf.mxu0
        %v4198 = vadd.f32 0.0, %v4197
        %v4199 = vpop.f32.mrf.mxu0
        %4200 = vmatprep.mubr.bf16.mxu0 %v2873
        %4201 = vmatmul.mubr.bf16.gmra.mxu0 %v2857
        %v4202 = vpop.f32.mrf.mxu0
        %v4203 = vadd.f32 0.0, %v4202
        %v4204 = vpop.f32.mrf.mxu0
        %v4205 = vpop.f32.mrf.mxu0
        %v4206 = vadd.f32 0.0, %v4205
        %v4207 = vpop.f32.mrf.mxu0
        %4208 = vmatprep.mubr.bf16.mxu0 %v2874
        %4209 = vmatmul.mubr.bf16.gmra.mxu0 %v2858
        %v4210 = vpop.f32.mrf.mxu0
        %v4211 = vadd.f32 0.0, %v4210
        %v4212 = vpop.f32.mrf.mxu0
        %v4213 = vpop.f32.mrf.mxu0
        %v4214 = vadd.f32 0.0, %v4213
        %v4215 = vpop.f32.mrf.mxu0
        %4216 = vmatprep.mubr.bf16.mxu0 %v2875
        %4217 = vmatmul.mubr.bf16.gmra.mxu0 %v2859
        %v4218 = vpop.f32.mrf.mxu0
        %v4219 = vadd.f32 0.0, %v4218
        %v4220 = vpop.f32.mrf.mxu0
        %v4221 = vpop.f32.mrf.mxu0
        %v4222 = vadd.f32 0.0, %v4221
        %v4223 = vpop.f32.mrf.mxu0
        %4224 = vmatprep.mubr.bf16.mxu0 %v2876
        %4225 = vmatmul.mubr.bf16.gmra.mxu0 %v2860
        %v4226 = vpop.f32.mrf.mxu0
        %v4227 = vadd.f32 0.0, %v4226
        %v4228 = vpop.f32.mrf.mxu0
        %v4229 = vpop.f32.mrf.mxu0
        %v4230 = vadd.f32 0.0, %v4229
        %v4231 = vpop.f32.mrf.mxu0
        %4232 = vmatprep.mubr.bf16.mxu0 %v2877
        %4233 = vmatmul.mubr.bf16.gmra.mxu0 %v2861
        %v4234 = vpop.f32.mrf.mxu0
        %v4235 = vadd.f32 0.0, %v4234
        %v4236 = vpop.f32.mrf.mxu0
        %v4237 = vpop.f32.mrf.mxu0
        %v4238 = vadd.f32 0.0, %v4237
        %v4239 = vpop.f32.mrf.mxu0
        %4240 = vmatprep.mubr.bf16.mxu0 %v2878
        %4241 = vmatmul.mubr.bf16.gmra.mxu0 %v2862
        %v4242 = vpop.f32.mrf.mxu0
        %v4243 = vadd.f32 0.0, %v4242
        %v4244 = vpop.f32.mrf.mxu0
        %v4245 = vpop.f32.mrf.mxu0
        %v4246 = vadd.f32 0.0, %v4245
        %v4247 = vpop.f32.mrf.mxu0
        %4248 = vmatprep.mubr.bf16.mxu0 %v2879
        %4249 = vmatmul.mubr.bf16.gmra.mxu0 %v2863
        %v4250 = vpop.f32.mrf.mxu0
        %v4251 = vadd.f32 0.0, %v4250
        %v4252 = vpop.f32.mrf.mxu0
        %v4253 = vpop.f32.mrf.mxu0
        %v4254 = vadd.f32 0.0, %v4253
        %v4255 = vpop.f32.mrf.mxu0
        %4256 = vmatprep.mubr.bf16.mxu0 %v2880
        %4257 = vmatmul.mubr.bf16.gmra.mxu0 %v2864
        %v4258 = vpop.f32.mrf.mxu0
        %v4259 = vadd.f32 0.0, %v4258
        %v4260 = vpop.f32.mrf.mxu0
        %v4261 = vpop.f32.mrf.mxu0
        %v4262 = vadd.f32 0.0, %v4261
        %v4263 = vpop.f32.mrf.mxu0
        %4264 = vmatprep.mubr.bf16.mxu0 %v2881
        %4265 = vmatmul.mubr.bf16.gmra.mxu0 %v2865
        %v4266 = vpop.f32.mrf.mxu0
        %v4267 = vadd.f32 0.0, %v4266
        %v4268 = vpop.f32.mrf.mxu0
        %v4269 = vpop.f32.mrf.mxu0
        %v4270 = vadd.f32 0.0, %v4269
        %v4271 = vpop.f32.mrf.mxu0
        %4272 = vmatprep.mubr.bf16.mxu0 0
        %4273 = vmatmul.mubr.bf16.gmra.mxu0 0
        %v4274 = vpop.f32.mrf.mxu0
        %v4275 = vadd.f32 0.0, %v4274
        %v4276 = vpop.f32.mrf.mxu0
        %v4277 = vpop.f32.mrf.mxu0
        %v4278 = vadd.f32 0.0, %v4277
        %v4279 = vpop.f32.mrf.mxu0
        %4280 = vdwg.mxu0
        %4281 = vmatprep.subr.bf16.mxu0 0
        %4282 = vmatpush1.bf16.msra.mxu0 %v4095
        %4283 = vmatprep.subr.bf16.mxu0 0
        %4284 = vmatpush1.bf16.msra.mxu0 %v4094
        %4285 = vmatprep.subr.bf16.mxu0 0
        %4286 = vmatpush1.bf16.msra.mxu0 %v4093
        %4287 = vmatprep.subr.bf16.mxu0 0
        %4288 = vmatpush1.bf16.msra.mxu0 %v4092
        %4289 = vmatprep.subr.bf16.mxu0 0
        %4290 = vmatpush1.bf16.msra.mxu0 %v4091
        %4291 = vmatprep.subr.bf16.mxu0 0
        %4292 = vmatpush1.bf16.msra.mxu0 %v4090
        %4293 = vmatprep.subr.bf16.mxu0 0
        %4294 = vmatpush1.bf16.msra.mxu0 %v4089
        %4295 = vmatprep.subr.bf16.mxu0 0
        %4296 = vmatpush1.bf16.msra.mxu0 %v4088
        %4297 = vmatprep.subr.bf16.mxu0 0
        %4298 = vmatpush2.bf16.msra.mxu0 0
        %4299 = vmatprep.subr.bf16.mxu0 0
        %4300 = vmatpush2.bf16.msra.mxu0 0
        %4301 = vmatprep.subr.bf16.mxu0 0
        %4302 = vmatpush2.bf16.msra.mxu0 0
        %4303 = vmatprep.subr.bf16.mxu0 0
        %4304 = vmatpush2.bf16.msra.mxu0 0
        %4305 = vmatprep.subr.bf16.mxu0 0
        %4306 = vmatpush2.bf16.msra.mxu0 0
        %4307 = vmatprep.subr.bf16.mxu0 0
        %4308 = vmatpush2.bf16.msra.mxu0 0
        %4309 = vmatprep.subr.bf16.mxu0 0
        %4310 = vmatpush2.bf16.msra.mxu0 0
        %4311 = vmatprep.subr.bf16.mxu0 0
        %4312 = vmatpush2.bf16.msra.mxu0 0
        %4313 = vmatprep.mubr.bf16.mxu0 0
        %4314 = vmatmul.mubr.bf16.gmra.mxu0 %v2883
        %v4315 = vpop.f32.mrf.mxu0
        %v4316 = vadd.f32 %v4155, %v4315
        %v4317 = vpop.f32.mrf.mxu0
        %v4318 = vpop.f32.mrf.mxu0
        %v4319 = vadd.f32 %v4158, %v4318
        %v4320 = vpop.f32.mrf.mxu0
        %4321 = vmatprep.mubr.bf16.mxu0 0
        %4322 = vmatmul.mubr.bf16.gmra.mxu0 %v2884
        %v4323 = vpop.f32.mrf.mxu0
        %v4324 = vadd.f32 %v4163, %v4323
        %v4325 = vpop.f32.mrf.mxu0
        %v4326 = vpop.f32.mrf.mxu0
        %v4327 = vadd.f32 %v4166, %v4326
        %v4328 = vpop.f32.mrf.mxu0
        %4329 = vmatprep.mubr.bf16.mxu0 0
        %4330 = vmatmul.mubr.bf16.gmra.mxu0 %v2885
        %v4331 = vpop.f32.mrf.mxu0
        %v4332 = vadd.f32 %v4171, %v4331
        %v4333 = vpop.f32.mrf.mxu0
        %v4334 = vpop.f32.mrf.mxu0
        %v4335 = vadd.f32 %v4174, %v4334
        %v4336 = vpop.f32.mrf.mxu0
        %4337 = vmatprep.mubr.bf16.mxu0 0
        %4338 = vmatmul.mubr.bf16.gmra.mxu0 %v2886
        %v4339 = vpop.f32.mrf.mxu0
        %v4340 = vadd.f32 %v4179, %v4339
        %v4341 = vpop.f32.mrf.mxu0
        %v4342 = vpop.f32.mrf.mxu0
        %v4343 = vadd.f32 %v4182, %v4342
        %v4344 = vpop.f32.mrf.mxu0
        %4345 = vmatprep.mubr.bf16.mxu0 0
        %4346 = vmatmul.mubr.bf16.gmra.mxu0 %v2887
        %v4347 = vpop.f32.mrf.mxu0
        %v4348 = vadd.f32 %v4187, %v4347
        %v4349 = vpop.f32.mrf.mxu0
        %v4350 = vpop.f32.mrf.mxu0
        %v4351 = vadd.f32 %v4190, %v4350
        %v4352 = vpop.f32.mrf.mxu0
        %4353 = vmatprep.mubr.bf16.mxu0 0
        %4354 = vmatmul.mubr.bf16.gmra.mxu0 %v2888
        %v4355 = vpop.f32.mrf.mxu0
        %v4356 = vadd.f32 %v4195, %v4355
        %v4357 = vpop.f32.mrf.mxu0
        %v4358 = vpop.f32.mrf.mxu0
        %v4359 = vadd.f32 %v4198, %v4358
        %v4360 = vpop.f32.mrf.mxu0
        %4361 = vmatprep.mubr.bf16.mxu0 0
        %4362 = vmatmul.mubr.bf16.gmra.mxu0 %v2889
        %v4363 = vpop.f32.mrf.mxu0
        %v4364 = vadd.f32 %v4203, %v4363
        %v4365 = vpop.f32.mrf.mxu0
        %v4366 = vpop.f32.mrf.mxu0
        %v4367 = vadd.f32 %v4206, %v4366
        %v4368 = vpop.f32.mrf.mxu0
        %4369 = vmatprep.mubr.bf16.mxu0 0
        %4370 = vmatmul.mubr.bf16.gmra.mxu0 %v2890
        %v4371 = vpop.f32.mrf.mxu0
        %v4372 = vadd.f32 %v4211, %v4371
        %v4373 = vpop.f32.mrf.mxu0
        %v4374 = vpop.f32.mrf.mxu0
        %v4375 = vadd.f32 %v4214, %v4374
        %v4376 = vpop.f32.mrf.mxu0
        %4377 = vmatprep.mubr.bf16.mxu0 0
        %4378 = vmatmul.mubr.bf16.gmra.mxu0 %v2891
        %v4379 = vpop.f32.mrf.mxu0
        %v4380 = vadd.f32 %v4219, %v4379
        %v4381 = vpop.f32.mrf.mxu0
        %v4382 = vpop.f32.mrf.mxu0
        %v4383 = vadd.f32 %v4222, %v4382
        %v4384 = vpop.f32.mrf.mxu0
        %4385 = vmatprep.mubr.bf16.mxu0 0
        %4386 = vmatmul.mubr.bf16.gmra.mxu0 %v2892
        %v4387 = vpop.f32.mrf.mxu0
        %v4388 = vadd.f32 %v4227, %v4387
        %v4389 = vpop.f32.mrf.mxu0
        %v4390 = vpop.f32.mrf.mxu0
        %v4391 = vadd.f32 %v4230, %v4390
        %v4392 = vpop.f32.mrf.mxu0
        %4393 = vmatprep.mubr.bf16.mxu0 0
        %4394 = vmatmul.mubr.bf16.gmra.mxu0 %v2893
        %v4395 = vpop.f32.mrf.mxu0
        %v4396 = vadd.f32 %v4235, %v4395
        %v4397 = vpop.f32.mrf.mxu0
        %v4398 = vpop.f32.mrf.mxu0
        %v4399 = vadd.f32 %v4238, %v4398
        %v4400 = vpop.f32.mrf.mxu0
        %4401 = vmatprep.mubr.bf16.mxu0 0
        %4402 = vmatmul.mubr.bf16.gmra.mxu0 %v2894
        %v4403 = vpop.f32.mrf.mxu0
        %v4404 = vadd.f32 %v4243, %v4403
        %v4405 = vpop.f32.mrf.mxu0
        %v4406 = vpop.f32.mrf.mxu0
        %v4407 = vadd.f32 %v4246, %v4406
        %v4408 = vpop.f32.mrf.mxu0
        %4409 = vmatprep.mubr.bf16.mxu0 0
        %4410 = vmatmul.mubr.bf16.gmra.mxu0 %v2895
        %v4411 = vpop.f32.mrf.mxu0
        %v4412 = vadd.f32 %v4251, %v4411
        %v4413 = vpop.f32.mrf.mxu0
        %v4414 = vpop.f32.mrf.mxu0
        %v4415 = vadd.f32 %v4254, %v4414
        %v4416 = vpop.f32.mrf.mxu0
        %4417 = vmatprep.mubr.bf16.mxu0 0
        %4418 = vmatmul.mubr.bf16.gmra.mxu0 %v2896
        %v4419 = vpop.f32.mrf.mxu0
        %v4420 = vadd.f32 %v4259, %v4419
        %v4421 = vpop.f32.mrf.mxu0
        %v4422 = vpop.f32.mrf.mxu0
        %v4423 = vadd.f32 %v4262, %v4422
        %v4424 = vpop.f32.mrf.mxu0
        %4425 = vmatprep.mubr.bf16.mxu0 0
        %4426 = vmatmul.mubr.bf16.gmra.mxu0 %v2897
        %v4427 = vpop.f32.mrf.mxu0
        %v4428 = vadd.f32 %v4267, %v4427
        %v4429 = vpop.f32.mrf.mxu0
        %v4430 = vpop.f32.mrf.mxu0
        %v4431 = vadd.f32 %v4270, %v4430
        %v4432 = vpop.f32.mrf.mxu0
        %4433 = vmatprep.mubr.bf16.mxu0 0
        %4434 = vmatmul.mubr.bf16.gmra.mxu0 0
        %v4435 = vpop.f32.mrf.mxu0
        %v4436 = vadd.f32 %v4275, %v4435
        %v4437 = vpop.f32.mrf.mxu0
        %v4438 = vpop.f32.mrf.mxu0
        %v4439 = vadd.f32 %v4278, %v4438
        %v4440 = vpop.f32.mrf.mxu0
        %4441 = vdwg.mxu0
        %v4442 = vadd.f32 %v3801, %v4316
        %v4443 = vadd.f32 %v3804, %v4319
        %v4444 = vadd.f32 %v3809, %v4324
        %v4445 = vadd.f32 %v3812, %v4327
        %v4446 = vadd.f32 %v3817, %v4332
        %v4447 = vadd.f32 %v3820, %v4335
        %v4448 = vadd.f32 %v3825, %v4340
        %v4449 = vadd.f32 %v3828, %v4343
        %v4450 = vadd.f32 %v3833, %v4348
        %v4451 = vadd.f32 %v3836, %v4351
        %v4452 = vadd.f32 %v3841, %v4356
        %v4453 = vadd.f32 %v3844, %v4359
        %v4454 = vadd.f32 %v3849, %v4364
        %v4455 = vadd.f32 %v3852, %v4367
        %v4456 = vadd.f32 %v3857, %v4372
        %v4457 = vadd.f32 %v3860, %v4375
        %v4458 = vadd.f32 %v3865, %v4380
        %v4459 = vadd.f32 %v3868, %v4383
        %v4460 = vadd.f32 %v3873, %v4388
        %v4461 = vadd.f32 %v3876, %v4391
        %v4462 = vadd.f32 %v3881, %v4396
        %v4463 = vadd.f32 %v3884, %v4399
        %v4464 = vadd.f32 %v3889, %v4404
        %v4465 = vadd.f32 %v3892, %v4407
        %v4466 = vadd.f32 %v3897, %v4412
        %v4467 = vadd.f32 %v3900, %v4415
        %v4468 = vadd.f32 %v3905, %v4420
        %v4469 = vadd.f32 %v3908, %v4423
        %v4470 = vadd.f32 %v3913, %v4428
        %v4471 = vadd.f32 %v3916, %v4431
        %v4472 = vadd.f32 %v3921, %v4436
        %v4473 = vadd.f32 %v3924, %v4439
        %v4474 = vld [vmem:[%s4] sm:$0x1]
        %v4476 = vlaneseq
        %v4477 = vshrl.u32 %v4476, 7
        %v4478 = vsub.s32 0, %v4477
        %v4479 = vrot.slane %v4474, %v4478
        %v4481 = vadd.f32 %v4442, %v4479
        %v4482 = vadd.f32 %v4443, %v4479
        %v4483 = vadd.f32 %v4444, %v4479
        %v4484 = vadd.f32 %v4445, %v4479
        %v4485 = vadd.f32 %v4446, %v4479
        %v4486 = vadd.f32 %v4447, %v4479
        %v4487 = vadd.f32 %v4448, %v4479
        %v4488 = vadd.f32 %v4449, %v4479
        %v4489 = vadd.f32 %v4450, %v4479
        %v4490 = vadd.f32 %v4451, %v4479
        %v4491 = vadd.f32 %v4452, %v4479
        %v4492 = vadd.f32 %v4453, %v4479
        %v4493 = vadd.f32 %v4454, %v4479
        %v4494 = vadd.f32 %v4455, %v4479
        %v4495 = vadd.f32 %v4456, %v4479
        %v4496 = vadd.f32 %v4457, %v4479
        %v4497 = vadd.f32 %v4458, %v4479
        %v4498 = vadd.f32 %v4459, %v4479
        %v4499 = vadd.f32 %v4460, %v4479
        %v4500 = vadd.f32 %v4461, %v4479
        %v4501 = vadd.f32 %v4462, %v4479
        %v4502 = vadd.f32 %v4463, %v4479
        %v4503 = vadd.f32 %v4464, %v4479
        %v4504 = vadd.f32 %v4465, %v4479
        %v4505 = vadd.f32 %v4466, %v4479
        %v4506 = vadd.f32 %v4467, %v4479
        %v4507 = vadd.f32 %v4468, %v4479
        %v4508 = vadd.f32 %v4469, %v4479
        %v4509 = vadd.f32 %v4470, %v4479
        %v4510 = vadd.f32 %v4471, %v4479
        %v4511 = vadd.f32 %v4472, %v4479
        %v4512 = vadd.f32 %v4473, %v4479
        %v4513 = vadd.f32 %v4481, %v224
        %v4514 = vadd.f32 %v4482, %v225
        %v4515 = vadd.f32 %v4483, %v226
        %v4516 = vadd.f32 %v4484, %v227
        %v4517 = vadd.f32 %v4485, %v228
        %v4518 = vadd.f32 %v4486, %v229
        %v4519 = vadd.f32 %v4487, %v230
        %v4520 = vadd.f32 %v4488, %v231
        %v4521 = vadd.f32 %v4489, %v232
        %v4522 = vadd.f32 %v4490, %v233
        %v4523 = vadd.f32 %v4491, %v234
        %v4524 = vadd.f32 %v4492, %v235
        %v4525 = vadd.f32 %v4493, %v236
        %v4526 = vadd.f32 %v4494, %v237
        %v4527 = vadd.f32 %v4495, %v238
        %v4528 = vadd.f32 %v4496, %v239
        %v4529 = vadd.f32 %v4497, %v240
        %v4530 = vadd.f32 %v4498, %v241
        %v4531 = vadd.f32 %v4499, %v242
        %v4532 = vadd.f32 %v4500, %v243
        %v4533 = vadd.f32 %v4501, %v244
        %v4534 = vadd.f32 %v4502, %v245
        %v4535 = vadd.f32 %v4503, %v246
        %v4536 = vadd.f32 %v4504, %v247
        %v4537 = vadd.f32 %v4505, %v248
        %v4538 = vadd.f32 %v4506, %v249
        %v4539 = vadd.f32 %v4507, %v250
        %v4540 = vadd.f32 %v4508, %v251
        %v4541 = vadd.f32 %v4509, %v252
        %v4542 = vadd.f32 %v4510, %v253
        %v4543 = vadd.f32 %v4511, %v254
        %v4544 = vadd.f32 %v4512, %v255
        %4545 = vst [vmem:[%s217] sm:$0xff] %v4513
        %4546 = vst [vmem:[%s217 + $0x8] sm:$0xff] %v4514
        %4547 = vst [vmem:[%s217 + $0x10] sm:$0xff] %v4515
        %4548 = vst [vmem:[%s217 + $0x18] sm:$0xff] %v4516
        %4549 = vst [vmem:[%s217 + $0x20] sm:$0xff] %v4517
        %4550 = vst [vmem:[%s217 + $0x28] sm:$0xff] %v4518
        %4551 = vst [vmem:[%s217 + $0x30] sm:$0xff] %v4519
        %4552 = vst [vmem:[%s217 + $0x38] sm:$0xff] %v4520
        %4553 = vst [vmem:[%s217 + $0x40] sm:$0xff] %v4521
        %4554 = vst [vmem:[%s217 + $0x48] sm:$0xff] %v4522
        %4555 = vst [vmem:[%s217 + $0x50] sm:$0xff] %v4523
        %4556 = vst [vmem:[%s217 + $0x58] sm:$0xff] %v4524
        %4557 = vst [vmem:[%s217 + $0x60] sm:$0xff] %v4525
        %4558 = vst [vmem:[%s217 + $0x68] sm:$0xff] %v4526
        %4559 = vst [vmem:[%s217 + $0x70] sm:$0xff] %v4527
        %4560 = vst [vmem:[%s217 + $0x78] sm:$0xff] %v4528
        %4561 = vst [vmem:[%s217 + $0x80] sm:$0xff] %v4529
        %4562 = vst [vmem:[%s217 + $0x88] sm:$0xff] %v4530
        %4563 = vst [vmem:[%s217 + $0x90] sm:$0xff] %v4531
        %4564 = vst [vmem:[%s217 + $0x98] sm:$0xff] %v4532
        %4565 = vst [vmem:[%s217 + $0xa0] sm:$0xff] %v4533
        %4566 = vst [vmem:[%s217 + $0xa8] sm:$0xff] %v4534
        %4567 = vst [vmem:[%s217 + $0xb0] sm:$0xff] %v4535
        %4568 = vst [vmem:[%s217 + $0xb8] sm:$0xff] %v4536
        %4569 = vst [vmem:[%s217 + $0xc0] sm:$0xff] %v4537
        %4570 = vst [vmem:[%s217 + $0xc8] sm:$0xff] %v4538
        %4571 = vst [vmem:[%s217 + $0xd0] sm:$0xff] %v4539
        %4572 = vst [vmem:[%s217 + $0xd8] sm:$0xff] %v4540
        %4573 = vst [vmem:[%s217 + $0xe0] sm:$0xff] %v4541
        %4574 = vst [vmem:[%s217 + $0xe8] sm:$0xff] %v4542
        %4575 = vst [vmem:[%s217 + $0xf0] sm:$0xff] %v4543
        %4576 = vst [vmem:[%s217 + $0xf8] sm:$0xff] %v4544
        %s4577 = sand.u32 %s137, 1
        %s4578 = scalar_lea.sflag [#allocation3], %s4577
        %s4579 = sand.u32 %s137, 1
        %s4580 = smul.addr %s4579, 256
        %s4581 = scalar_lea.vmem [#allocation2], %s4580
        // Predicated region
        $region41: #{resblock_forward.1} parent=39 // pred_check
          %p4582 = pneg %p147
        $region42: #{resblock_forward.1} parent=39 // pred_check_branch
          %4584 = sbr.rel (%p4582) target = $region44
        $region43: #{resblock_forward.1} parent=39 // pred_region
          %s4586 = ssub.s32 4096, 4096
          %4587 = vsyncadd %s4578, %s4586
          %s4588 = smul.addr %s19, 32
          %s4589 = smul.addr %s4588, 128
          %s4590 = scalar_lea.hbm %s5, %s4589
          %s4591 = sshll.u32 %s4581, 4
          %s4592 = int_to_ptr.vmem [resolvable:$true] %s4591
          %4597 = dma.vmem_to_hbm [thread:$0]  %s4592, 4096, %s4590, %s4578, 128, 128, 8
        $region44: #{resblock_forward.1} parent=39 // pred_fallthru
          _
      $region40: #{resblock_forward.1} parent=5 // pred_fallthru
        _
      %p4598 = scmp.le.s32.totalorder 2, %s14
      // Predicated region
      $region45: #{resblock_forward.1} parent=5 // pred_check
        %p4599 = pneg %p4598
      $region46: #{resblock_forward.1} parent=5 // pred_check_branch
        %4601 = sbr.rel (%p4599) target = $region48
      $region47: #{resblock_forward.1} parent=5 // pred_region
        %s4602 = ssub.s32 %s14, 2
        // Predicated region
        $region49: #{resblock_forward.1} parent=47 // pred_check
          %p4603 = pneg %p153
        $region50: #{resblock_forward.1} parent=47 // pred_check_branch
          %4605 = sbr.rel (%p4603) target = $region52
        $region51: #{resblock_forward.1} parent=47 // pred_region
          %s4606 = sand.u32 %s138, 1
          %s4607 = scalar_lea.sflag [#allocation3], %s4606
          %s4608 = sand.u32 %s138, 1
          %s4609 = smul.addr %s4608, 256
          %s4610 = scalar_lea.vmem [#allocation2], %s4609
          %4611 = dma.done %s4607, 4096
        $region52: #{resblock_forward.1} parent=47 // pred_fallthru
          _
      $region48: #{resblock_forward.1} parent=5 // pred_fallthru
        _
    $region6: #{resblock_forward.1} parent=1 // loop_footer
      %s18 = sadd.s32 1, %s14
    $region7: #{resblock_forward.1} parent=1 // loop_footer_branch
      %13 = sbr.rel target = $region3
    $region8: #{resblock_forward.1} parent=1 // loop_exit
      _
    %4612 = vsyncpa [#allocation3], 1
    %s4613 = scalar_lea.sflag [#allocation3], 1
    %4614 = vsyncpa %s4613, 1

</llo_original>
